<compile_context>
chip_gen: v6e
topology: v6e:2x2x1
jax: 0.10.0
libtpu: 0.0.40
codegen_flags: <defaults>
</compile_context>

<pallas_src>
import functools

import jax
import jax.numpy as jnp
from jax.experimental import pallas as pl
from jax.experimental.pallas import tpu as pltpu

DTYPE = jnp.float32
MXU_DTYPE = jnp.bfloat16
BN_EPS = 1e-5


# ----------------------------------------------------------------------------
# VMEM budget / tiling helpers
# ----------------------------------------------------------------------------
@functools.lru_cache(maxsize=None)
def _vmem_limit_bytes():
    """Generation-aware VMEM limit (96 MiB on 128-MiB chips, 48 MiB on v7x / fallback)."""
    cap = 64 * 1024 * 1024
    try:
        cap = int(pltpu.get_tpu_info().vmem_capacity_bytes)
    except Exception:
        pass
    return max(32 * 1024 * 1024, min(3 * cap // 4, 96 * 1024 * 1024))


def _round_up(x, m):
    return -(-x // m) * m


def _lane_tile(m, k, r, out_bytes, vmem_limit):
    """Largest 128-multiple lane tile whose double-buffered blocks fit ~half of VMEM."""
    budget = vmem_limit // 2
    mp = _round_up(max(m, 1), 128)
    tile = 128
    for cand in (2048, 1024, 512, 256, 128):
        need = 2 * (k * cand * 2            # (K, tm) bf16 input tile (double-buffered)
                    + r * cand * out_bytes  # (R, tm) output tile
                    + r * k * 2             # (R, K) bf16 weights
                    + r * 16)               # stats partials
        if need <= budget:
            tile = cand
            break
    return min(tile, mp)


# ----------------------------------------------------------------------------
# Pallas kernels
# ----------------------------------------------------------------------------
def _linear_relu_kernel(z_ref, w_ref, b_ref, o_ref):
    y = jnp.dot(z_ref[...], w_ref[...], preferred_element_type=jnp.float32)
    o_ref[...] = jnp.maximum(y + b_ref[...], 0.0).astype(o_ref.dtype)


def _conv_relu_stats_kernel(w_ref, b_ref, x_ref, o_ref, sum_ref, sq_ref, *,
                            tm, m_real, masked):
    # w_ref: (4*Cout, 9*Cin) bf16, x_ref: (9*Cin, tm) bf16, o_ref: (4*Cout, tm) bf16
    y = jnp.dot(w_ref[...], x_ref[...], preferred_element_type=jnp.float32)
    y = jnp.maximum(y + b_ref[...], 0.0)
    o_ref[...] = y.astype(o_ref.dtype)
    if masked:  # drop lanes that are only M-padding before accumulating statistics
        col = pl.program_id(0) * tm + jax.lax.broadcasted_iota(jnp.int32, y.shape, 1)
        y = jnp.where(col < m_real, y, 0.0)
    # per-(phase,channel), per-tile partial sums; finalized (mean/rstd) in XLA
    sum_ref[...] = jnp.sum(y, axis=1, keepdims=True)
    sq_ref[...] = jnp.sum(y * y, axis=1, keepdims=True)


def _conv_sigmoid_kernel(w_ref, b_ref, x_ref, o_ref):
    y = jnp.dot(w_ref[...], x_ref[...], preferred_element_type=jnp.float32)
    y = jnp.clip(y + b_ref[...], -30.0, 30.0)
    y = pl.reciprocal(1.0 + jnp.exp(-y), approx=True)   # sigmoid on the EUP (exp + vrcp)
    o_ref[...] = jnp.clip(y, 0.0, 1.0).astype(o_ref.dtype)


# ----------------------------------------------------------------------------
# Layer wrappers
# ----------------------------------------------------------------------------
def linear_relu(z, w, b):
    """relu(z @ w.T + b); w is PyTorch Linear weight (out_f, in_f). Lane-dense over out_f."""
    Bz, L = z.shape
    F_ = w.shape[0]
    wt = jnp.asarray(w, DTYPE).T.astype(MXU_DTYPE)            # (L, F)
    zb = jnp.asarray(z, DTYPE).astype(MXU_DTYPE)              # (B, L)
    b2 = jnp.asarray(b, DTYPE).reshape(1, F_)
    vmem = _vmem_limit_bytes()
    tn = _lane_tile(F_, L, Bz, out_bytes=2, vmem_limit=vmem)
    nft = -(-F_ // tn)
    Fp = nft * tn
    if Fp > F_:
        wt = jnp.pad(wt, ((0, 0), (0, Fp - F_)))
        b2 = jnp.pad(b2, ((0, 0), (0, Fp - F_)))
    out = pl.pallas_call(
        _linear_relu_kernel,
        out_shape=jax.ShapeDtypeStruct((Bz, Fp), MXU_DTYPE),
        grid=(nft,),
        in_specs=[pl.BlockSpec((Bz, L), lambda j: (0, 0)),
                  pl.BlockSpec((L, tn), lambda j: (0, j)),
                  pl.BlockSpec((1, tn), lambda j: (0, j))],
        out_specs=pl.BlockSpec((Bz, tn), lambda j: (0, j)),
        compiler_params=pltpu.CompilerParams(
            dimension_semantics=("parallel",), vmem_limit_bytes=vmem),
    )(zb, wt, b2)
    return out[:, :F_]


def conv_transpose2d_merged(x_cnhw, w_t, bias, *, act, with_stats,
                            fold_mean=None, fold_rstd=None, eps=BN_EPS):
    """ConvTranspose2d(k=4, s=2, p=1) + activation, all 4 sub-pixel phases in one matmul.

    x_cnhw : (Cin, N, H, W) channel-major activation (bf16).  When fold_mean/fold_rstd
             are given, x is the *pre-BN* output of the previous layer and that BN is
             folded into this layer's weights (mean-valued padding keeps borders exact).
    w_t    : PyTorch ConvTranspose2d weight (Cin, Cout, 4, 4).
    Returns (Cout, N, 2H, 2W); if with_stats also this output's post-ReLU BatchNorm
    batch mean / rstd (for folding into the next layer).
    """
    Cin, N, H, W = x_cnhw.shape
    Cout = w_t.shape[1]
    M = N * H * W
    K = 9 * Cin
    R = 4 * Cout

    # --- merged phase weights (tiny f32 XLA op) ------------------------------
    w_t = jnp.asarray(w_t, DTYPE)
    w_m = jnp.zeros((R, K), DTYPE)
    for ry in (0, 1):
        for rx in (0, 1):
            p = 2 * ry + rx
            for dy in (0, 1):
                for dx in (0, 1):
                    tap = (ry + dy) * 3 + (rx + dx)
                    w_m = w_m.at[p * Cout:(p + 1) * Cout,
                                 tap * Cin:(tap + 1) * Cin].set(
                        w_t[:, :, 3 - ry - 2 * dy, 3 - rx - 2 * dx].T)
    b_m = jnp.tile(jnp.asarray(bias, DTYPE), 4)                       # (R,)
    if fold_rstd is not None:   # fold previous layer's BatchNorm into W / b (exact)
        scale_k = jnp.tile(fold_rstd, 9)                              # (K,)
        shift_k = scale_k * jnp.tile(fold_mean, 9)
        b_m = b_m - w_m @ shift_k
        w_m = w_m * scale_k[None, :]
    w_bf = w_m.astype(MXU_DTYPE)
    b_col = b_m.reshape(R, 1)

    # --- shared 9-tap im2col (pad value = folded BN mean, else 0) ------------
    if fold_mean is not None:
        pad_val = fold_mean.astype(x_cnhw.dtype).reshape(Cin, 1, 1, 1)
        xp = jnp.broadcast_to(pad_val, (Cin, N, H + 2, W + 2))
        xp = xp.at[:, :, 1:H + 1, 1:W + 1].set(x_cnhw)
    else:
        xp = jnp.pad(x_cnhw, ((0, 0), (0, 0), (1, 1), (1, 1)))
    taps = [xp[:, :, a:a + H, b:b + W] for a in (0, 1, 2) for b in (0, 1, 2)]
    bmat = jnp.stack(taps, axis=0).reshape(K, M).astype(MXU_DTYPE)    # (9*Cin, M)

    out_dtype = MXU_DTYPE if act == "relu" else DTYPE
    vmem = _vmem_limit_bytes()
    tm = _lane_tile(M, K, R, out_bytes=jnp.dtype(out_dtype).itemsize, vmem_limit=vmem)
    nmt = -(-M // tm)
    Mp = nmt * tm
    if Mp > M:
        bmat = jnp.pad(bmat, ((0, 0), (0, Mp - M)))

    w_spec = pl.BlockSpec((R, K), lambda m: (0, 0))
    b_spec = pl.BlockSpec((R, 1), lambda m: (0, 0))
    x_spec = pl.BlockSpec((K, tm), lambda m: (0, m))
    y_spec = pl.BlockSpec((R, tm), lambda m: (0, m))
    cparams = pltpu.CompilerParams(dimension_semantics=("parallel",),
                                   vmem_limit_bytes=vmem)

    if with_stats:
        kernel = functools.partial(_conv_relu_stats_kernel,
                                   tm=tm, m_real=M, masked=Mp > M)
        y, s_part, q_part = pl.pallas_call(
            kernel,
            out_shape=(jax.ShapeDtypeStruct((R, Mp), out_dtype),
                       jax.ShapeDtypeStruct((nmt, R, 1), DTYPE),
                       jax.ShapeDtypeStruct((nmt, R, 1), DTYPE)),
            grid=(nmt,),
            in_specs=[w_spec, b_spec, x_spec],
            out_specs=(y_spec,
                       pl.BlockSpec((None, R, 1), lambda m: (m, 0, 0)),
                       pl.BlockSpec((None, R, 1), lambda m: (m, 0, 0))),
            compiler_params=cparams,
        )(w_bf, b_col, bmat)
    else:
        y = pl.pallas_call(
            _conv_sigmoid_kernel,
            out_shape=jax.ShapeDtypeStruct((R, Mp), out_dtype),
            grid=(nmt,),
            in_specs=[w_spec, b_spec, x_spec],
            out_specs=y_spec,
            compiler_params=cparams,
        )(w_bf, b_col, bmat)

    # --- phase de-interleave into (Cout, N, 2H, 2W) (small XLA glue) ----------
    y = (y[:, :M].reshape(2, 2, Cout, N, H, W)
           .transpose(2, 3, 4, 0, 5, 1).reshape(Cout, N, 2 * H, 2 * W))
    if not with_stats:
        return y
    cnt = 4.0 * M
    s = s_part.sum(axis=(0, 2)).reshape(4, Cout).sum(axis=0)
    q = q_part.sum(axis=(0, 2)).reshape(4, Cout).sum(axis=0)
    mean = s / cnt
    var = jnp.maximum(q / cnt - mean * mean, 0.0)   # biased var (PyTorch train-mode BN)
    rstd = jax.lax.rsqrt(var + eps)
    return y, mean, rstd


# ----------------------------------------------------------------------------
# Generator2 forward
# ----------------------------------------------------------------------------
def generator2_forward(params, z, img_size, dim):
    fs0, fs1 = img_size[0] // 16, img_size[1] // 16
    c0 = 8 * dim
    # latent_to_features: Linear + ReLU (lane-dense over features, bf16 output)
    x = linear_relu(z, params["lin_w"], params["lin_b"])               # (N, c0*fs0*fs1)
    n = x.shape[0]
    x = x.reshape(n, c0, fs0, fs1).transpose(1, 0, 2, 3)               # -> CNHW (tiny)

    # features_to_image: ConvT+ReLU with fused BN stats; each BN folds into the next conv.
    x, m1, r1 = conv_transpose2d_merged(x, params["ct1_w"], params["ct1_b"],
                                        act="relu", with_stats=True)
    x, m2, r2 = conv_transpose2d_merged(x, params["ct2_w"], params["ct2_b"],
                                        act="relu", with_stats=True,
                                        fold_mean=m1, fold_rstd=r1)
    x, m3, r3 = conv_transpose2d_merged(x, params["ct3_w"], params["ct3_b"],
                                        act="relu", with_stats=True,
                                        fold_mean=m2, fold_rstd=r2)
    x = conv_transpose2d_merged(x, params["ct4_w"], params["ct4_b"],
                                act="sigmoid", with_stats=False,
                                fold_mean=m3, fold_rstd=r3)
    return x.transpose(1, 0, 2, 3).astype(DTYPE)                       # NCHW (PyTorch)


# ----------------------------------------------------------------------------
# Pure-JAX f32 reference for correctness checking
# ----------------------------------------------------------------------------
def _conv_t_ref(x, w_t, b):
    w = jnp.flip(w_t, axis=(2, 3)).transpose(1, 0, 2, 3)               # (Cout, Cin, 4, 4)
    y = jax.lax.conv_general_dilated(
        x, w, window_strides=(1, 1), padding=((2, 2), (2, 2)),
        lhs_dilation=(2, 2), dimension_numbers=("NCHW", "OIHW", "NCHW"))
    return y + b.reshape(1, -1, 1, 1)


def _bn_ref(x, eps=BN_EPS):
    m = jnp.mean(x, axis=(0, 2, 3), keepdims=True)
    v = jnp.mean((x - m) ** 2, axis=(0, 2, 3), keepdims=True)
    return (x - m) * jax.lax.rsqrt(v + eps)


def generator2_ref(params, z, img_size, dim):
    fs0, fs1 = img_size[0] // 16, img_size[1] // 16
    x = jnp.maximum(z @ params["lin_w"].T + params["lin_b"], 0.0)
    x = x.reshape(-1, 8 * dim, fs0, fs1)
    x = _bn_ref(jnp.maximum(_conv_t_ref(x, params["ct1_w"], params["ct1_b"]), 0.0))
    x = _bn_ref(jnp.maximum(_conv_t_ref(x, params["ct2_w"], params["ct2_b"]), 0.0))
    x = _bn_ref(jnp.maximum(_conv_t_ref(x, params["ct3_w"], params["ct3_b"]), 0.0))
    return jax.nn.sigmoid(_conv_t_ref(x, params["ct4_w"], params["ct4_b"]))


# ----------------------------------------------------------------------------
# Param init (PyTorch layer shapes)
# ----------------------------------------------------------------------------
def init_params(key, img_size, latent_dim, dim):
    fs = (img_size[0] // 16, img_size[1] // 16)
    feat = 8 * dim * fs[0] * fs[1]
    ks = jax.random.split(key, 10)

    def w(k, shape, fan_in):
        return jax.random.normal(k, shape, DTYPE) / jnp.sqrt(jnp.float32(fan_in))

    return {
        "lin_w": w(ks[0], (feat, latent_dim), latent_dim),             # nn.Linear (out, in)
        "lin_b": w(ks[1], (feat,), latent_dim),
        "ct1_w": w(ks[2], (8 * dim, 4 * dim, 4, 4), 8 * dim * 16),     # ConvT (in, out, kh, kw)
        "ct1_b": w(ks[3], (4 * dim,), 8 * dim * 16),
        "ct2_w": w(ks[4], (4 * dim, 2 * dim, 4, 4), 4 * dim * 16),
        "ct2_b": w(ks[5], (2 * dim,), 4 * dim * 16),
        "ct3_w": w(ks[6], (2 * dim, dim, 4, 4), 2 * dim * 16),
        "ct3_b": w(ks[7], (dim,), 2 * dim * 16),
        "ct4_w": w(ks[8], (dim, img_size[2], 4, 4), dim * 16),
        "ct4_b": w(ks[9], (img_size[2],), dim * 16),
    }


if __name__ == "__main__":
    # small, shape-consistent config: 32x32x1 images, latent=32, dim=8, batch=2
    img_size = (32, 32, 1)
    latent_dim = 32
    dim = 8
    batch = 2

    key = jax.random.PRNGKey(0)
    kp, kz = jax.random.split(key)
    params = init_params(kp, img_size, latent_dim, dim)
    z = jax.random.normal(kz, (batch, latent_dim), DTYPE)

    fwd = jax.jit(functools.partial(generator2_forward, img_size=img_size, dim=dim))
    out = jax.block_until_ready(fwd(params, z))

    assert out.shape == (batch, img_size[2], img_size[0], img_size[1]), out.shape
    assert bool(jnp.all(jnp.isfinite(out)))
    assert bool(jnp.all((out >= 0.0) & (out <= 1.0)))

    # numerical check against pure-JAX f32 reference (bf16 MXU operands + bf16
    # inter-layer activation storage -> loose tolerance)
    ref = jax.block_until_ready(
        jax.jit(functools.partial(generator2_ref, img_size=img_size, dim=dim))(params, z))
    err = float(jnp.max(jnp.abs(out - ref)))
    assert err < 8e-2, err

    # TODO(synk): BatchNorm running_mean/running_var buffers are not tracked
    # (training-mode batch statistics only, matching a fresh nn.BatchNorm2d).
    print("KERNEL_OK")
</pallas_src>

<mosaic_0001>
module attributes {stable_mosaic.version = 11 : i64} {
  func.func @_linear_relu_kernel(%arg0: i32, %arg1: memref<2x32xbf16, #tpu.memory_space<vmem>>, %arg2: memref<32x256xbf16, #tpu.memory_space<vmem>>, %arg3: memref<1x256xf32, #tpu.memory_space<vmem>>, %arg4: memref<2x256xbf16, #tpu.memory_space<vmem>>) attributes {dimension_semantics = [#tpu.dimension_semantics<parallel>], iteration_bounds = array<i64: 1>, scalar_prefetch = 0 : i64, scratch_operands = 0 : i64, tpu.core_type = #tpu.core_type<tc>, window_params = [{pipeline_mode = #tpu.pipeline_mode<synchronous>, transform_indices = @transform_0, window_bounds = array<i64: 2, 32>}, {transform_indices = @transform_1, window_bounds = array<i64: 32, 256>}, {transform_indices = @transform_2, window_bounds = array<i64: 1, 256>}, {transform_indices = @transform_3, window_bounds = array<i64: 2, 256>}]} {
    %c0 = arith.constant 0 : index
    %c0_0 = arith.constant 0 : index
    %0 = vector.load %arg1[%c0, %c0_0] : memref<2x32xbf16, #tpu.memory_space<vmem>>, vector<2x32xbf16>
    %c0_1 = arith.constant 0 : index
    %c0_2 = arith.constant 0 : index
    %1 = vector.load %arg2[%c0_1, %c0_2] : memref<32x256xbf16, #tpu.memory_space<vmem>>, vector<32x256xbf16>
    %cst = arith.constant dense<0.000000e+00> : vector<2x256xf32>
    %2 = tpu.matmul %0, %1, %cst {dimension_numbers = #tpu.dot_dimension_numbers<[1], [0], [0], [1], [0, 0, 1, 1], [], []>} : vector<2x32xbf16>, vector<32x256xbf16>, vector<2x256xf32> -> vector<2x256xf32>
    %c0_3 = arith.constant 0 : index
    %c0_4 = arith.constant 0 : index
    %3 = vector.load %arg3[%c0_3, %c0_4] : memref<1x256xf32, #tpu.memory_space<vmem>>, vector<1x256xf32>
    %4 = vector.broadcast %3 : vector<1x256xf32> to vector<2x256xf32>
    %5 = arith.addf %2, %4 : vector<2x256xf32>
    %cst_5 = arith.constant 0.000000e+00 : f32
    %6 = vector.broadcast %cst_5 : f32 to vector<2x256xf32>
    %7 = arith.maximumf %5, %6 : vector<2x256xf32>
    %8 = arith.truncf %7 : vector<2x256xf32> to vector<2x256xbf16>
    %c0_6 = arith.constant 0 : index
    %c0_7 = arith.constant 0 : index
    %9 = vector.load %arg4[%c0_6, %c0_7] : memref<2x256xbf16, #tpu.memory_space<vmem>>, vector<2x256xbf16>
    tpu.vector_store %arg4[%c0_6, %c0_7], %8 {strides = array<i32>} : memref<2x256xbf16, #tpu.memory_space<vmem>>, vector<2x256xbf16>,
    return
  }
  func.func @transform_0(%arg0: i32) -> (i32, i32) {
    %c0_i32 = arith.constant 0 : i32
    %c0_i32_0 = arith.constant 0 : i32
    %c0_i32_1 = arith.constant 0 : i32
    return %c0_i32, %c0_i32_0 : i32, i32
  }
  func.func @transform_1(%arg0: i32) -> (i32, i32) {
    %c0_i32 = arith.constant 0 : i32
    %c0_i32_0 = arith.constant 0 : i32
    return %c0_i32, %arg0 : i32, i32
  }
  func.func @transform_2(%arg0: i32) -> (i32, i32) {
    %c0_i32 = arith.constant 0 : i32
    %c0_i32_0 = arith.constant 0 : i32
    return %c0_i32, %arg0 : i32, i32
  }
  func.func @transform_3(%arg0: i32) -> (i32, i32) {
    %c0_i32 = arith.constant 0 : i32
    %c0_i32_0 = arith.constant 0 : i32
    return %c0_i32, %arg0 : i32, i32
  }
}

module attributes {stable_mosaic.version = 11 : i64} {
  func.func @_conv_relu_stats_kernel(%arg0: i32, %arg1: memref<128x576xbf16, #tpu.memory_space<vmem>>, %arg2: memref<128x1xf32, #tpu.memory_space<vmem>>, %arg3: memref<576x128xbf16, #tpu.memory_space<vmem>>, %arg4: memref<128x128xbf16, #tpu.memory_space<vmem>>, %arg5: memref<1x128x1xf32, #tpu.memory_space<vmem>>, %arg6: memref<1x128x1xf32, #tpu.memory_space<vmem>>) attributes {dimension_semantics = [#tpu.dimension_semantics<parallel>], iteration_bounds = array<i64: 1>, scalar_prefetch = 0 : i64, scratch_operands = 0 : i64, tpu.core_type = #tpu.core_type<tc>, window_params = [{pipeline_mode = #tpu.pipeline_mode<synchronous>, transform_indices = @transform_0, window_bounds = array<i64: 128, 576>}, {pipeline_mode = #tpu.pipeline_mode<synchronous>, transform_indices = @transform_1, window_bounds = array<i64: 128, 1>}, {transform_indices = @transform_2, window_bounds = array<i64: 576, 128>}, {transform_indices = @transform_3, window_bounds = array<i64: 128, 128>}, {transform_indices = @transform_4, window_bounds = array<i64: 1, 128, 1>}, {transform_indices = @transform_5, window_bounds = array<i64: 1, 128, 1>}]} {
    %c0 = arith.constant 0 : index
    %c0_0 = arith.constant 0 : index
    %0 = vector.load %arg1[%c0, %c0_0] : memref<128x576xbf16, #tpu.memory_space<vmem>>, vector<128x576xbf16>
    %c0_1 = arith.constant 0 : index
    %c0_2 = arith.constant 0 : index
    %1 = vector.load %arg3[%c0_1, %c0_2] : memref<576x128xbf16, #tpu.memory_space<vmem>>, vector<576x128xbf16>
    %cst = arith.constant dense<0.000000e+00> : vector<128x128xf32>
    %2 = tpu.matmul %0, %1, %cst {dimension_numbers = #tpu.dot_dimension_numbers<[1], [0], [0], [1], [0, 0, 1, 1], [], []>} : vector<128x576xbf16>, vector<576x128xbf16>, vector<128x128xf32> -> vector<128x128xf32>
    %c0_3 = arith.constant 0 : index
    %c0_4 = arith.constant 0 : index
    %3 = vector.load %arg2[%c0_3, %c0_4] : memref<128x1xf32, #tpu.memory_space<vmem>>, vector<128x1xf32>
    %4 = vector.broadcast %3 : vector<128x1xf32> to vector<128x128xf32>
    %5 = arith.addf %2, %4 : vector<128x128xf32>
    %cst_5 = arith.constant 0.000000e+00 : f32
    %6 = vector.broadcast %cst_5 : f32 to vector<128x128xf32>
    %7 = arith.maximumf %5, %6 : vector<128x128xf32>
    %8 = arith.truncf %7 : vector<128x128xf32> to vector<128x128xbf16>
    %c0_6 = arith.constant 0 : index
    %c0_7 = arith.constant 0 : index
    %9 = vector.load %arg4[%c0_6, %c0_7] : memref<128x128xbf16, #tpu.memory_space<vmem>>, vector<128x128xbf16>
    tpu.vector_store %arg4[%c0_6, %c0_7], %8 {strides = array<i32>} : memref<128x128xbf16, #tpu.memory_space<vmem>>, vector<128x128xbf16>,
    %c128_i32 = arith.constant 128 : i32
    %10 = arith.muli %arg0, %c128_i32 : i32
    %11 = tpu.iota {dimensions = array<i32: 1>} : vector<128x128xi32>
    %12 = vector.broadcast %10 : i32 to vector<128x128xi32>
    %13 = arith.addi %12, %11 : vector<128x128xi32>
    %c8_i32 = arith.constant 8 : i32
    %14 = vector.broadcast %c8_i32 : i32 to vector<128x128xi32>
    %15 = arith.cmpi slt, %13, %14 : vector<128x128xi32>
    %cst_8 = arith.constant 0.000000e+00 : f32
    %16 = vector.broadcast %cst_8 : f32 to vector<128x128xf32>
    %17 = arith.select %15, %7, %16 : vector<128x128xi1>, vector<128x128xf32>
    %cst_9 = arith.constant dense<0.000000e+00> : vector<128xf32>
    %18 = vector.multi_reduction <add>, %17, %cst_9 [1] : vector<128x128xf32> to vector<128xf32>
    %19 = vector.shape_cast %18 : vector<128xf32> to vector<128x1xf32>
    %c0_10 = arith.constant 0 : index
    %c0_11 = arith.constant 0 : index
    %c0_12 = arith.constant 0 : index
    %20 = vector.load %arg5[%c0_10, %c0_11, %c0_12] : memref<1x128x1xf32, #tpu.memory_space<vmem>>, vector<1x128x1xf32>
    %21 = vector.shape_cast %20 : vector<1x128x1xf32> to vector<128x1xf32>
    %22 = vector.shape_cast %19 : vector<128x1xf32> to vector<1x128x1xf32>
    tpu.vector_store %arg5[%c0_10, %c0_11, %c0_12], %22 {strides = array<i32>} : memref<1x128x1xf32, #tpu.memory_space<vmem>>, vector<1x128x1xf32>,
    %23 = arith.mulf %17, %17 : vector<128x128xf32>
    %cst_13 = arith.constant dense<0.000000e+00> : vector<128xf32>
    %24 = vector.multi_reduction <add>, %23, %cst_13 [1] : vector<128x128xf32> to vector<128xf32>
    %25 = vector.shape_cast %24 : vector<128xf32> to vector<128x1xf32>
    %c0_14 = arith.constant 0 : index
    %c0_15 = arith.constant 0 : index
    %c0_16 = arith.constant 0 : index
    %26 = vector.load %arg6[%c0_14, %c0_15, %c0_16] : memref<1x128x1xf32, #tpu.memory_space<vmem>>, vector<1x128x1xf32>
    %27 = vector.shape_cast %26 : vector<1x128x1xf32> to vector<128x1xf32>
    %28 = vector.shape_cast %25 : vector<128x1xf32> to vector<1x128x1xf32>
    tpu.vector_store %arg6[%c0_14, %c0_15, %c0_16], %28 {strides = array<i32>} : memref<1x128x1xf32, #tpu.memory_space<vmem>>, vector<1x128x1xf32>,
    return
  }
  func.func @transform_0(%arg0: i32) -> (i32, i32) {
    %c0_i32 = arith.constant 0 : i32
    %c0_i32_0 = arith.constant 0 : i32
    %c0_i32_1 = arith.constant 0 : i32
    return %c0_i32, %c0_i32_0 : i32, i32
  }
  func.func @transform_1(%arg0: i32) -> (i32, i32) {
    %c0_i32 = arith.constant 0 : i32
    %c0_i32_0 = arith.constant 0 : i32
    %c0_i32_1 = arith.constant 0 : i32
    return %c0_i32, %c0_i32_0 : i32, i32
  }
  func.func @transform_2(%arg0: i32) -> (i32, i32) {
    %c0_i32 = arith.constant 0 : i32
    %c0_i32_0 = arith.constant 0 : i32
    return %c0_i32, %arg0 : i32, i32
  }
  func.func @transform_3(%arg0: i32) -> (i32, i32) {
    %c0_i32 = arith.constant 0 : i32
    %c0_i32_0 = arith.constant 0 : i32
    return %c0_i32, %arg0 : i32, i32
  }
  func.func @transform_4(%arg0: i32) -> (i32, i32, i32) {
    %c0_i32 = arith.constant 0 : i32
    %c0_i32_0 = arith.constant 0 : i32
    %c0_i32_1 = arith.constant 0 : i32
    return %arg0, %c0_i32, %c0_i32_0 : i32, i32, i32
  }
  func.func @transform_5(%arg0: i32) -> (i32, i32, i32) {
    %c0_i32 = arith.constant 0 : i32
    %c0_i32_0 = arith.constant 0 : i32
    %c0_i32_1 = arith.constant 0 : i32
    return %arg0, %c0_i32, %c0_i32_0 : i32, i32, i32
  }
}

module attributes {stable_mosaic.version = 11 : i64} {
  func.func @_conv_relu_stats_kernel(%arg0: i32, %arg1: memref<64x288xbf16, #tpu.memory_space<vmem>>, %arg2: memref<64x1xf32, #tpu.memory_space<vmem>>, %arg3: memref<288x128xbf16, #tpu.memory_space<vmem>>, %arg4: memref<64x128xbf16, #tpu.memory_space<vmem>>, %arg5: memref<1x64x1xf32, #tpu.memory_space<vmem>>, %arg6: memref<1x64x1xf32, #tpu.memory_space<vmem>>) attributes {dimension_semantics = [#tpu.dimension_semantics<parallel>], iteration_bounds = array<i64: 1>, scalar_prefetch = 0 : i64, scratch_operands = 0 : i64, tpu.core_type = #tpu.core_type<tc>, window_params = [{pipeline_mode = #tpu.pipeline_mode<synchronous>, transform_indices = @transform_0, window_bounds = array<i64: 64, 288>}, {pipeline_mode = #tpu.pipeline_mode<synchronous>, transform_indices = @transform_1, window_bounds = array<i64: 64, 1>}, {transform_indices = @transform_2, window_bounds = array<i64: 288, 128>}, {transform_indices = @transform_3, window_bounds = array<i64: 64, 128>}, {transform_indices = @transform_4, window_bounds = array<i64: 1, 64, 1>}, {transform_indices = @transform_5, window_bounds = array<i64: 1, 64, 1>}]} {
    %c0 = arith.constant 0 : index
    %c0_0 = arith.constant 0 : index
    %0 = vector.load %arg1[%c0, %c0_0] : memref<64x288xbf16, #tpu.memory_space<vmem>>, vector<64x288xbf16>
    %c0_1 = arith.constant 0 : index
    %c0_2 = arith.constant 0 : index
    %1 = vector.load %arg3[%c0_1, %c0_2] : memref<288x128xbf16, #tpu.memory_space<vmem>>, vector<288x128xbf16>
    %cst = arith.constant dense<0.000000e+00> : vector<64x128xf32>
    %2 = tpu.matmul %0, %1, %cst {dimension_numbers = #tpu.dot_dimension_numbers<[1], [0], [0], [1], [0, 0, 1, 1], [], []>} : vector<64x288xbf16>, vector<288x128xbf16>, vector<64x128xf32> -> vector<64x128xf32>
    %c0_3 = arith.constant 0 : index
    %c0_4 = arith.constant 0 : index
    %3 = vector.load %arg2[%c0_3, %c0_4] : memref<64x1xf32, #tpu.memory_space<vmem>>, vector<64x1xf32>
    %4 = vector.broadcast %3 : vector<64x1xf32> to vector<64x128xf32>
    %5 = arith.addf %2, %4 : vector<64x128xf32>
    %cst_5 = arith.constant 0.000000e+00 : f32
    %6 = vector.broadcast %cst_5 : f32 to vector<64x128xf32>
    %7 = arith.maximumf %5, %6 : vector<64x128xf32>
    %8 = arith.truncf %7 : vector<64x128xf32> to vector<64x128xbf16>
    %c0_6 = arith.constant 0 : index
    %c0_7 = arith.constant 0 : index
    %9 = vector.load %arg4[%c0_6, %c0_7] : memref<64x128xbf16, #tpu.memory_space<vmem>>, vector<64x128xbf16>
    tpu.vector_store %arg4[%c0_6, %c0_7], %8 {strides = array<i32>} : memref<64x128xbf16, #tpu.memory_space<vmem>>, vector<64x128xbf16>,
    %c128_i32 = arith.constant 128 : i32
    %10 = arith.muli %arg0, %c128_i32 : i32
    %11 = tpu.iota {dimensions = array<i32: 1>} : vector<64x128xi32>
    %12 = vector.broadcast %10 : i32 to vector<64x128xi32>
    %13 = arith.addi %12, %11 : vector<64x128xi32>
    %c32_i32 = arith.constant 32 : i32
    %14 = vector.broadcast %c32_i32 : i32 to vector<64x128xi32>
    %15 = arith.cmpi slt, %13, %14 : vector<64x128xi32>
    %cst_8 = arith.constant 0.000000e+00 : f32
    %16 = vector.broadcast %cst_8 : f32 to vector<64x128xf32>
    %17 = arith.select %15, %7, %16 : vector<64x128xi1>, vector<64x128xf32>
    %cst_9 = arith.constant dense<0.000000e+00> : vector<64xf32>
    %18 = vector.multi_reduction <add>, %17, %cst_9 [1] : vector<64x128xf32> to vector<64xf32>
    %19 = vector.shape_cast %18 : vector<64xf32> to vector<64x1xf32>
    %c0_10 = arith.constant 0 : index
    %c0_11 = arith.constant 0 : index
    %c0_12 = arith.constant 0 : index
    %20 = vector.load %arg5[%c0_10, %c0_11, %c0_12] : memref<1x64x1xf32, #tpu.memory_space<vmem>>, vector<1x64x1xf32>
    %21 = vector.shape_cast %20 : vector<1x64x1xf32> to vector<64x1xf32>
    %22 = vector.shape_cast %19 : vector<64x1xf32> to vector<1x64x1xf32>
    tpu.vector_store %arg5[%c0_10, %c0_11, %c0_12], %22 {strides = array<i32>} : memref<1x64x1xf32, #tpu.memory_space<vmem>>, vector<1x64x1xf32>,
    %23 = arith.mulf %17, %17 : vector<64x128xf32>
    %cst_13 = arith.constant dense<0.000000e+00> : vector<64xf32>
    %24 = vector.multi_reduction <add>, %23, %cst_13 [1] : vector<64x128xf32> to vector<64xf32>
    %25 = vector.shape_cast %24 : vector<64xf32> to vector<64x1xf32>
    %c0_14 = arith.constant 0 : index
    %c0_15 = arith.constant 0 : index
    %c0_16 = arith.constant 0 : index
    %26 = vector.load %arg6[%c0_14, %c0_15, %c0_16] : memref<1x64x1xf32, #tpu.memory_space<vmem>>, vector<1x64x1xf32>
    %27 = vector.shape_cast %26 : vector<1x64x1xf32> to vector<64x1xf32>
    %28 = vector.shape_cast %25 : vector<64x1xf32> to vector<1x64x1xf32>
    tpu.vector_store %arg6[%c0_14, %c0_15, %c0_16], %28 {strides = array<i32>} : memref<1x64x1xf32, #tpu.memory_space<vmem>>, vector<1x64x1xf32>,
    return
  }
  func.func @transform_0(%arg0: i32) -> (i32, i32) {
    %c0_i32 = arith.constant 0 : i32
    %c0_i32_0 = arith.constant 0 : i32
    %c0_i32_1 = arith.constant 0 : i32
    return %c0_i32, %c0_i32_0 : i32, i32
  }
  func.func @transform_1(%arg0: i32) -> (i32, i32) {
    %c0_i32 = arith.constant 0 : i32
    %c0_i32_0 = arith.constant 0 : i32
    %c0_i32_1 = arith.constant 0 : i32
    return %c0_i32, %c0_i32_0 : i32, i32
  }
  func.func @transform_2(%arg0: i32) -> (i32, i32) {
    %c0_i32 = arith.constant 0 : i32
    %c0_i32_0 = arith.constant 0 : i32
    return %c0_i32, %arg0 : i32, i32
  }
  func.func @transform_3(%arg0: i32) -> (i32, i32) {
    %c0_i32 = arith.constant 0 : i32
    %c0_i32_0 = arith.constant 0 : i32
    return %c0_i32, %arg0 : i32, i32
  }
  func.func @transform_4(%arg0: i32) -> (i32, i32, i32) {
    %c0_i32 = arith.constant 0 : i32
    %c0_i32_0 = arith.constant 0 : i32
    %c0_i32_1 = arith.constant 0 : i32
    return %arg0, %c0_i32, %c0_i32_0 : i32, i32, i32
  }
  func.func @transform_5(%arg0: i32) -> (i32, i32, i32) {
    %c0_i32 = arith.constant 0 : i32
    %c0_i32_0 = arith.constant 0 : i32
    %c0_i32_1 = arith.constant 0 : i32
    return %arg0, %c0_i32, %c0_i32_0 : i32, i32, i32
  }
}

module attributes {stable_mosaic.version = 11 : i64} {
  func.func @_conv_relu_stats_kernel(%arg0: i32, %arg1: memref<32x144xbf16, #tpu.memory_space<vmem>>, %arg2: memref<32x1xf32, #tpu.memory_space<vmem>>, %arg3: memref<144x128xbf16, #tpu.memory_space<vmem>>, %arg4: memref<32x128xbf16, #tpu.memory_space<vmem>>, %arg5: memref<1x32x1xf32, #tpu.memory_space<vmem>>, %arg6: memref<1x32x1xf32, #tpu.memory_space<vmem>>) attributes {dimension_semantics = [#tpu.dimension_semantics<parallel>], iteration_bounds = array<i64: 1>, scalar_prefetch = 0 : i64, scratch_operands = 0 : i64, tpu.core_type = #tpu.core_type<tc>, window_params = [{pipeline_mode = #tpu.pipeline_mode<synchronous>, transform_indices = @transform_0, window_bounds = array<i64: 32, 144>}, {pipeline_mode = #tpu.pipeline_mode<synchronous>, transform_indices = @transform_1, window_bounds = array<i64: 32, 1>}, {transform_indices = @transform_2, window_bounds = array<i64: 144, 128>}, {transform_indices = @transform_3, window_bounds = array<i64: 32, 128>}, {transform_indices = @transform_4, window_bounds = array<i64: 1, 32, 1>}, {transform_indices = @transform_5, window_bounds = array<i64: 1, 32, 1>}]} {
    %c0 = arith.constant 0 : index
    %c0_0 = arith.constant 0 : index
    %0 = vector.load %arg1[%c0, %c0_0] : memref<32x144xbf16, #tpu.memory_space<vmem>>, vector<32x144xbf16>
    %c0_1 = arith.constant 0 : index
    %c0_2 = arith.constant 0 : index
    %1 = vector.load %arg3[%c0_1, %c0_2] : memref<144x128xbf16, #tpu.memory_space<vmem>>, vector<144x128xbf16>
    %cst = arith.constant dense<0.000000e+00> : vector<32x128xf32>
    %2 = tpu.matmul %0, %1, %cst {dimension_numbers = #tpu.dot_dimension_numbers<[1], [0], [0], [1], [0, 0, 1, 1], [], []>} : vector<32x144xbf16>, vector<144x128xbf16>, vector<32x128xf32> -> vector<32x128xf32>
    %c0_3 = arith.constant 0 : index
    %c0_4 = arith.constant 0 : index
    %3 = vector.load %arg2[%c0_3, %c0_4] : memref<32x1xf32, #tpu.memory_space<vmem>>, vector<32x1xf32>
    %4 = vector.broadcast %3 : vector<32x1xf32> to vector<32x128xf32>
    %5 = arith.addf %2, %4 : vector<32x128xf32>
    %cst_5 = arith.constant 0.000000e+00 : f32
    %6 = vector.broadcast %cst_5 : f32 to vector<32x128xf32>
    %7 = arith.maximumf %5, %6 : vector<32x128xf32>
    %8 = arith.truncf %7 : vector<32x128xf32> to vector<32x128xbf16>
    %c0_6 = arith.constant 0 : index
    %c0_7 = arith.constant 0 : index
    %9 = vector.load %arg4[%c0_6, %c0_7] : memref<32x128xbf16, #tpu.memory_space<vmem>>, vector<32x128xbf16>
    tpu.vector_store %arg4[%c0_6, %c0_7], %8 {strides = array<i32>} : memref<32x128xbf16, #tpu.memory_space<vmem>>, vector<32x128xbf16>,
    %cst_8 = arith.constant dense<0.000000e+00> : vector<32xf32>
    %10 = vector.multi_reduction <add>, %7, %cst_8 [1] : vector<32x128xf32> to vector<32xf32>
    %11 = vector.shape_cast %10 : vector<32xf32> to vector<32x1xf32>
    %c0_9 = arith.constant 0 : index
    %c0_10 = arith.constant 0 : index
    %c0_11 = arith.constant 0 : index
    %12 = vector.load %arg5[%c0_9, %c0_10, %c0_11] : memref<1x32x1xf32, #tpu.memory_space<vmem>>, vector<1x32x1xf32>
    %13 = vector.shape_cast %12 : vector<1x32x1xf32> to vector<32x1xf32>
    %14 = vector.shape_cast %11 : vector<32x1xf32> to vector<1x32x1xf32>
    tpu.vector_store %arg5[%c0_9, %c0_10, %c0_11], %14 {strides = array<i32>} : memref<1x32x1xf32, #tpu.memory_space<vmem>>, vector<1x32x1xf32>,
    %15 = arith.mulf %7, %7 : vector<32x128xf32>
    %cst_12 = arith.constant dense<0.000000e+00> : vector<32xf32>
    %16 = vector.multi_reduction <add>, %15, %cst_12 [1] : vector<32x128xf32> to vector<32xf32>
    %17 = vector.shape_cast %16 : vector<32xf32> to vector<32x1xf32>
    %c0_13 = arith.constant 0 : index
    %c0_14 = arith.constant 0 : index
    %c0_15 = arith.constant 0 : index
    %18 = vector.load %arg6[%c0_13, %c0_14, %c0_15] : memref<1x32x1xf32, #tpu.memory_space<vmem>>, vector<1x32x1xf32>
    %19 = vector.shape_cast %18 : vector<1x32x1xf32> to vector<32x1xf32>
    %20 = vector.shape_cast %17 : vector<32x1xf32> to vector<1x32x1xf32>
    tpu.vector_store %arg6[%c0_13, %c0_14, %c0_15], %20 {strides = array<i32>} : memref<1x32x1xf32, #tpu.memory_space<vmem>>, vector<1x32x1xf32>,
    return
  }
  func.func @transform_0(%arg0: i32) -> (i32, i32) {
    %c0_i32 = arith.constant 0 : i32
    %c0_i32_0 = arith.constant 0 : i32
    %c0_i32_1 = arith.constant 0 : i32
    return %c0_i32, %c0_i32_0 : i32, i32
  }
  func.func @transform_1(%arg0: i32) -> (i32, i32) {
    %c0_i32 = arith.constant 0 : i32
    %c0_i32_0 = arith.constant 0 : i32
    %c0_i32_1 = arith.constant 0 : i32
    return %c0_i32, %c0_i32_0 : i32, i32
  }
  func.func @transform_2(%arg0: i32) -> (i32, i32) {
    %c0_i32 = arith.constant 0 : i32
    %c0_i32_0 = arith.constant 0 : i32
    return %c0_i32, %arg0 : i32, i32
  }
  func.func @transform_3(%arg0: i32) -> (i32, i32) {
    %c0_i32 = arith.constant 0 : i32
    %c0_i32_0 = arith.constant 0 : i32
    return %c0_i32, %arg0 : i32, i32
  }
  func.func @transform_4(%arg0: i32) -> (i32, i32, i32) {
    %c0_i32 = arith.constant 0 : i32
    %c0_i32_0 = arith.constant 0 : i32
    %c0_i32_1 = arith.constant 0 : i32
    return %arg0, %c0_i32, %c0_i32_0 : i32, i32, i32
  }
  func.func @transform_5(%arg0: i32) -> (i32, i32, i32) {
    %c0_i32 = arith.constant 0 : i32
    %c0_i32_0 = arith.constant 0 : i32
    %c0_i32_1 = arith.constant 0 : i32
    return %arg0, %c0_i32, %c0_i32_0 : i32, i32, i32
  }
}

module attributes {stable_mosaic.version = 11 : i64} {
  func.func @_conv_sigmoid_kernel(%arg0: i32, %arg1: memref<4x72xbf16, #tpu.memory_space<vmem>>, %arg2: memref<4x1xf32, #tpu.memory_space<vmem>>, %arg3: memref<72x512xbf16, #tpu.memory_space<vmem>>, %arg4: memref<4x512xf32, #tpu.memory_space<vmem>>) attributes {dimension_semantics = [#tpu.dimension_semantics<parallel>], iteration_bounds = array<i64: 1>, scalar_prefetch = 0 : i64, scratch_operands = 0 : i64, tpu.core_type = #tpu.core_type<tc>, window_params = [{pipeline_mode = #tpu.pipeline_mode<synchronous>, transform_indices = @transform_0, window_bounds = array<i64: 4, 72>}, {pipeline_mode = #tpu.pipeline_mode<synchronous>, transform_indices = @transform_1, window_bounds = array<i64: 4, 1>}, {transform_indices = @transform_2, window_bounds = array<i64: 72, 512>}, {transform_indices = @transform_3, window_bounds = array<i64: 4, 512>}]} {
    %c0 = arith.constant 0 : index
    %c0_0 = arith.constant 0 : index
    %0 = vector.load %arg1[%c0, %c0_0] : memref<4x72xbf16, #tpu.memory_space<vmem>>, vector<4x72xbf16>
    %c0_1 = arith.constant 0 : index
    %c0_2 = arith.constant 0 : index
    %1 = vector.load %arg3[%c0_1, %c0_2] : memref<72x512xbf16, #tpu.memory_space<vmem>>, vector<72x512xbf16>
    %cst = arith.constant dense<0.000000e+00> : vector<4x512xf32>
    %2 = tpu.matmul %0, %1, %cst {dimension_numbers = #tpu.dot_dimension_numbers<[1], [0], [0], [1], [0, 0, 1, 1], [], []>} : vector<4x72xbf16>, vector<72x512xbf16>, vector<4x512xf32> -> vector<4x512xf32>
    %c0_3 = arith.constant 0 : index
    %c0_4 = arith.constant 0 : index
    %3 = vector.load %arg2[%c0_3, %c0_4] : memref<4x1xf32, #tpu.memory_space<vmem>>, vector<4x1xf32>
    %4 = vector.broadcast %3 : vector<4x1xf32> to vector<4x512xf32>
    %5 = arith.addf %2, %4 : vector<4x512xf32>
    %cst_5 = arith.constant -3.000000e+01 : f32
    %cst_6 = arith.constant 3.000000e+01 : f32
    %6 = vector.broadcast %cst_5 : f32 to vector<4x512xf32>
    %7 = arith.maximumf %6, %5 : vector<4x512xf32>
    %8 = vector.broadcast %cst_6 : f32 to vector<4x512xf32>
    %9 = arith.minimumf %8, %7 : vector<4x512xf32>
    %cst_7 = arith.constant 0.000000e+00 : f32
    %10 = vector.broadcast %cst_7 : f32 to vector<4x512xf32>
    %11 = arith.subf %10, %9 : vector<4x512xf32>
    %12 = math.exp %11 : vector<4x512xf32>
    %cst_8 = arith.constant 1.000000e+00 : f32
    %13 = vector.broadcast %cst_8 : f32 to vector<4x512xf32>
    %14 = arith.addf %13, %12 : vector<4x512xf32>
    %15 = tpu.reciprocal %14 {approx = true} : vector<4x512xf32> -> vector<4x512xf32>
    %cst_9 = arith.constant 0.000000e+00 : f32
    %cst_10 = arith.constant 1.000000e+00 : f32
    %16 = vector.broadcast %cst_9 : f32 to vector<4x512xf32>
    %17 = arith.maximumf %16, %15 : vector<4x512xf32>
    %18 = vector.broadcast %cst_10 : f32 to vector<4x512xf32>
    %19 = arith.minimumf %18, %17 : vector<4x512xf32>
    %c0_11 = arith.constant 0 : index
    %c0_12 = arith.constant 0 : index
    %20 = vector.load %arg4[%c0_11, %c0_12] : memref<4x512xf32, #tpu.memory_space<vmem>>, vector<4x512xf32>
    tpu.vector_store %arg4[%c0_11, %c0_12], %19 {strides = array<i32>} : memref<4x512xf32, #tpu.memory_space<vmem>>, vector<4x512xf32>,
    return
  }
  func.func @transform_0(%arg0: i32) -> (i32, i32) {
    %c0_i32 = arith.constant 0 : i32
    %c0_i32_0 = arith.constant 0 : i32
    %c0_i32_1 = arith.constant 0 : i32
    return %c0_i32, %c0_i32_0 : i32, i32
  }
  func.func @transform_1(%arg0: i32) -> (i32, i32) {
    %c0_i32 = arith.constant 0 : i32
    %c0_i32_0 = arith.constant 0 : i32
    %c0_i32_1 = arith.constant 0 : i32
    return %c0_i32, %c0_i32_0 : i32, i32
  }
  func.func @transform_2(%arg0: i32) -> (i32, i32) {
    %c0_i32 = arith.constant 0 : i32
    %c0_i32_0 = arith.constant 0 : i32
    return %c0_i32, %arg0 : i32, i32
  }
  func.func @transform_3(%arg0: i32) -> (i32, i32) {
    %c0_i32 = arith.constant 0 : i32
    %c0_i32_0 = arith.constant 0 : i32
    return %c0_i32, %arg0 : i32, i32
  }
}

</mosaic_0001>

<llo_original>
// kernel: generator2_forward.5
$region0: #{generator2_forward.5}
  #allocation0 [shape = 'u32[]', space=smem, size = 0x4, offset = 0x4, fixed_abs, tag = 'smem constant byte address 0x4 - core index']
  #allocation1 [shape = 'u32[144,128]{1,0:T(1,128)}', space=vmem, size = 0x12000, scoped, tag = 'internal scratch']
  %s0 = inlined_call_operand.vmem [shape: bf16[2,32], index: 0, kind: input, shape index: {}]
  %s1 = inlined_call_operand.vmem [shape: bf16[32,256], index: 1, kind: input, shape index: {}]
  %s2 = inlined_call_operand.vmem [shape: f32[1,256], index: 2, kind: input, shape index: {}]
  %s3 = inlined_call_operand.vmem [shape: bf16[2,256], index: 3, kind: output, shape index: {}]
  %s4 = sld [smem:[#allocation0]]
  $region22: #{generator2_forward.5} parent=0
    _
  %s6 = ssub.s32 1, %s4
  %s7 = scalar_select 0, %s6, %s4
  // Predicated region
  $region2: #{generator2_forward.5} parent=0 // pred_check
    _
  $region3: #{generator2_forward.5} parent=0 // pred_check_branch
    %9 = sbr.rel (0) target = $region5
  $region4: #{generator2_forward.5} parent=0 // pred_region
    _
  $region5: #{generator2_forward.5} parent=0 // pred_fallthru
    _
  // Predicated region
  $region6: #{generator2_forward.5} parent=0 // pred_check
    _
  $region7: #{generator2_forward.5} parent=0 // pred_check_branch
    %11 = sbr.rel (0) target = $region9
  $region8: #{generator2_forward.5} parent=0 // pred_region
    _
  $region9: #{generator2_forward.5} parent=0 // pred_fallthru
    _
  // Predicated region
  $region10: #{generator2_forward.5} parent=0 // pred_check
    _
  $region11: #{generator2_forward.5} parent=0 // pred_check_branch
    %13 = sbr.rel (0) target = $region13
  $region12: #{generator2_forward.5} parent=0 // pred_region
    _
  $region13: #{generator2_forward.5} parent=0 // pred_fallthru
    _
  %v15 = vld [vmem:[%s0] sm:$0x1]
  %v16 = vld [vmem:[%s1] sm:$0xff]
  %v17 = vld [vmem:[%s1 + $0x8] sm:$0xff]
  %v18 = vld [vmem:[%s1 + $0x10] sm:$0xff]
  %v19 = vld [vmem:[%s1 + $0x18] sm:$0xff]
  %v20 = vld [vmem:[%s2] sm:$0x3]
  %v22 = vlaneseq
  %v23 = vshrl.u32 %v22, 7
  %v24 = vsub.s32 0, %v23
  %v25 = vrot.slane %v20, %v24
  %v26 = vlaneseq
  %v27 = vshrl.u32 %v26, 7
  %v28 = vsub.s32 1, %v27
  %v29 = vrot.slane %v20, %v28
  %v36 = vunpack.c.l.b16 %v16
  %v37 = vunpack.c.h.b16 %v16
  %v38 = vunpack.c.l.b16 %v17
  %v39 = vunpack.c.h.b16 %v17
  %v40 = vunpack.c.l.b16 %v18
  %v41 = vunpack.c.h.b16 %v18
  %v42 = vunpack.c.l.b16 %v19
  %v43 = vunpack.c.h.b16 %v19
  %v44 = vpack.c.b16 %v38, %v36
  %v45 = vpack.c.b16 %v39, %v37
  %v46 = vpack.c.b16 %v42, %v40
  %v47 = vpack.c.b16 %v43, %v41
  %vm52 = vcmask 261120
  %v54 = vsel %vm52, %v15, 0
  %56 = vmatprep.subr.bf16.mxu0 0
  %57 = vmatpush1.bf16.msra.mxu0 0
  %58 = vmatprep.subr.bf16.mxu0 0
  %59 = vmatpush1.bf16.msra.mxu0 0
  %60 = vmatprep.subr.bf16.mxu0 0
  %61 = vmatpush1.bf16.msra.mxu0 0
  %62 = vmatprep.subr.bf16.mxu0 0
  %63 = vmatpush1.bf16.msra.mxu0 0
  %64 = vmatprep.subr.bf16.mxu0 0
  %65 = vmatpush1.bf16.msra.mxu0 0
  %66 = vmatprep.subr.bf16.mxu0 0
  %67 = vmatpush1.bf16.msra.mxu0 0
  %68 = vmatprep.subr.bf16.mxu0 %v47
  %69 = vmatpush1.bf16.msra.mxu0 %v46
  %70 = vmatprep.subr.bf16.mxu0 %v45
  %71 = vmatpush1.bf16.msra.mxu0 %v44
  %72 = vmatprep.subr.bf16.mxu0 0
  %73 = vmatpush2.bf16.msra.mxu0 0
  %74 = vmatprep.subr.bf16.mxu0 0
  %75 = vmatpush2.bf16.msra.mxu0 0
  %76 = vmatprep.subr.bf16.mxu0 0
  %77 = vmatpush2.bf16.msra.mxu0 0
  %78 = vmatprep.subr.bf16.mxu0 0
  %79 = vmatpush2.bf16.msra.mxu0 0
  %80 = vmatprep.subr.bf16.mxu0 0
  %81 = vmatpush2.bf16.msra.mxu0 0
  %82 = vmatprep.subr.bf16.mxu0 0
  %83 = vmatpush2.bf16.msra.mxu0 0
  %84 = vmatprep.subr.bf16.mxu0 0
  %85 = vmatpush2.bf16.msra.mxu0 0
  %86 = vmatprep.subr.bf16.mxu0 0
  %87 = vmatpush2.bf16.msra.mxu0 0
  %88 = vmatprep.mubr.bf16.mxu0 0
  %89 = vmatmul.mubr.bf16.gmra.mxu0 %v54
  %v90 = vpop.f32.mrf.mxu0
  %v91 = vadd.f32 %v25, %v90
  %v92 = vpop.f32.mrf.mxu0
  %v93 = vadd.f32 %v29, %v92
  %v94 = vpop.f32.mrf.mxu0
  %v95 = vpop.f32.mrf.mxu0
  %96 = vdwg.mxu0
  %v97 = vmax.f32 %v91, 0.0
  %v98 = vmax.f32 %v93, 0.0
  %v99 = vpack.c.bf16 %v97, %v97
  %v100 = vpack.c.bf16 %v98, %v98
  %v103 = vcombine.low %v99, %v100
  %v105 = vunpack.c.l.s4 1966171168
  %v106 = vunpack.c.0.s8 %v105
  %v107 = vlaneseq
  %v108 = vshrl.u32 %v107, 7
  %v109 = vsub.s32 %v106, %v108
  %v110 = vrot.slane %v103, %v109
  %v112 = vunpack.c.l.s4 1966171168
  %v113 = vunpack.c.0.s8 %v112
  %v114 = vlaneseq
  %v115 = vshrl.u32 %v114, 7
  %v116 = vsub.s32 %v113, %v115
  %v117 = vrot.slane %v110, %v116
  %119 = vst [vmem:[%s3] sm:$0x3] %v117
  // Predicated region
  $region14: #{generator2_forward.5} parent=0 // pred_check
    _
  $region15: #{generator2_forward.5} parent=0 // pred_check_branch
    %121 = sbr.rel (0) target = $region17
  $region16: #{generator2_forward.5} parent=0 // pred_region
    _
  $region17: #{generator2_forward.5} parent=0 // pred_fallthru
    _
  // Predicated region
  $region18: #{generator2_forward.5} parent=0 // pred_check
    _
  $region19: #{generator2_forward.5} parent=0 // pred_check_branch
    %123 = sbr.rel (0) target = $region21
  $region20: #{generator2_forward.5} parent=0 // pred_region
    _
  $region21: #{generator2_forward.5} parent=0 // pred_fallthru
    _

// kernel: tile.56
$region0: #{tile.56}
  #allocation0 [shape = 's32[1]{0}', space=sflag, size = 0x4, scoped, tag = 'scoped memory for tile.56']
  %s0 = inlined_call_operand.vmem [shape: f32[32], index: 0, kind: input, shape index: {}]
  %s1 = inlined_call_operand.vmem [shape: f32[4,32], index: 1, kind: output, shape index: {}]
  // Predicated region
  $region2: #{tile.56} parent=0 // pred_check
    _
  $region3: #{tile.56} parent=0 // pred_check_branch
    %3 = sbr.rel (0) target = $region5
  $region4: #{tile.56} parent=0 // pred_region
    _
  $region5: #{tile.56} parent=0 // pred_fallthru
    _
  %v4 = vld [vmem:[%s0] ss:$0 sm:$0xff]
  %5 = vst [vmem:[%s1] sm:$0xf] %v4

// kernel: tile.0
$region0: #{tile.0}
  %s0 = inlined_call_operand.vmem [shape: f32[4,32], index: 0, kind: input, shape index: {}]
  %s1 = inlined_call_operand.vmem [shape: f32[128,1], index: 1, kind: output, shape index: {}]
  $region1: #{tile.0} parent=0
    #allocation0 [shape = 'u8[4096]{0}', space=vmem, size = 0x1000, scoped, tag = 'scoped mem for input reshape']
    %s3 = sshll.u32 1, 4
    %s4 = ssub.s32 %s3, 1
    %v5 = vld [vmem:[%s0] sm:%s4]
    %6 = vst [vmem:[#allocation0] sm:%s4] %v5
    %v7 = vld [vmem:[#allocation0] sm:$0xf]
    %vm8 = vcmask 7168
    %9 = vst.msk [vmem:[%s1] sm:$0x1] %vm8, %v7
    %s10 = scalar_lea.vmem %s1, 31
    %11 = vst.msk [vmem:[%s10] sm:$0x2] %vm8, %v7
    %s12 = scalar_lea.vmem %s1, 62
    %13 = vst.msk [vmem:[%s12] sm:$0x4] %vm8, %v7
    %s14 = scalar_lea.vmem %s1, 93
    %15 = vst.msk [vmem:[%s14] sm:$0x8] %vm8, %v7
    %v16 = vld [vmem:[#allocation0] sm:$0xf]
    %17 = vrot.lane.b32.xlu0 %v16, 127
    %v18 = vpop.permute.xlu0 %17
    %vm19 = vcmask 7168
    %s20 = scalar_lea.vmem %s1, 1
    %21 = vst.msk [vmem:[%s20] sm:$0x1] %vm19, %v18
    %s22 = scalar_lea.vmem %s1, 32
    %23 = vst.msk [vmem:[%s22] sm:$0x2] %vm19, %v18
    %s24 = scalar_lea.vmem %s1, 63
    %25 = vst.msk [vmem:[%s24] sm:$0x4] %vm19, %v18
    %s26 = scalar_lea.vmem %s1, 94
    %27 = vst.msk [vmem:[%s26] sm:$0x8] %vm19, %v18
    %v28 = vld [vmem:[#allocation0] sm:$0xf]
    %29 = vrot.lane.b32.xlu0 %v28, 126
    %v30 = vpop.permute.xlu0 %29
    %vm31 = vcmask 7168
    %s32 = scalar_lea.vmem %s1, 2
    %33 = vst.msk [vmem:[%s32] sm:$0x1] %vm31, %v30
    %s34 = scalar_lea.vmem %s1, 33
    %35 = vst.msk [vmem:[%s34] sm:$0x2] %vm31, %v30
    %s36 = scalar_lea.vmem %s1, 64
    %37 = vst.msk [vmem:[%s36] sm:$0x4] %vm31, %v30
    %s38 = scalar_lea.vmem %s1, 95
    %39 = vst.msk [vmem:[%s38] sm:$0x8] %vm31, %v30
    %v40 = vld [vmem:[#allocation0] sm:$0xf]
    %41 = vrot.lane.b32.xlu0 %v40, 125
    %v42 = vpop.permute.xlu0 %41
    %vm43 = vcmask 7168
    %s44 = scalar_lea.vmem %s1, 3
    %45 = vst.msk [vmem:[%s44] sm:$0x1] %vm43, %v42
    %s46 = scalar_lea.vmem %s1, 34
    %47 = vst.msk [vmem:[%s46] sm:$0x2] %vm43, %v42
    %s48 = scalar_lea.vmem %s1, 65
    %49 = vst.msk [vmem:[%s48] sm:$0x4] %vm43, %v42
    %s50 = scalar_lea.vmem %s1, 96
    %51 = vst.msk [vmem:[%s50] sm:$0x8] %vm43, %v42
    %v52 = vld [vmem:[#allocation0] sm:$0xf]
    %53 = vrot.lane.b32.xlu0 %v52, 124
    %v54 = vpop.permute.xlu0 %53
    %vm55 = vcmask 7168
    %s56 = scalar_lea.vmem %s1, 4
    %57 = vst.msk [vmem:[%s56] sm:$0x1] %vm55, %v54
    %s58 = scalar_lea.vmem %s1, 35
    %59 = vst.msk [vmem:[%s58] sm:$0x2] %vm55, %v54
    %s60 = scalar_lea.vmem %s1, 66
    %61 = vst.msk [vmem:[%s60] sm:$0x4] %vm55, %v54
    %s62 = scalar_lea.vmem %s1, 97
    %63 = vst.msk [vmem:[%s62] sm:$0x8] %vm55, %v54
    %v64 = vld [vmem:[#allocation0] sm:$0xf]
    %65 = vrot.lane.b32.xlu0 %v64, 123
    %v66 = vpop.permute.xlu0 %65
    %vm67 = vcmask 7168
    %s68 = scalar_lea.vmem %s1, 5
    %69 = vst.msk [vmem:[%s68] sm:$0x1] %vm67, %v66
    %s70 = scalar_lea.vmem %s1, 36
    %71 = vst.msk [vmem:[%s70] sm:$0x2] %vm67, %v66
    %s72 = scalar_lea.vmem %s1, 67
    %73 = vst.msk [vmem:[%s72] sm:$0x4] %vm67, %v66
    %s74 = scalar_lea.vmem %s1, 98
    %75 = vst.msk [vmem:[%s74] sm:$0x8] %vm67, %v66
    %v76 = vld [vmem:[#allocation0] sm:$0xf]
    %77 = vrot.lane.b32.xlu0 %v76, 122
    %v78 = vpop.permute.xlu0 %77
    %vm79 = vcmask 7168
    %s80 = scalar_lea.vmem %s1, 6
    %81 = vst.msk [vmem:[%s80] sm:$0x1] %vm79, %v78
    %s82 = scalar_lea.vmem %s1, 37
    %83 = vst.msk [vmem:[%s82] sm:$0x2] %vm79, %v78
    %s84 = scalar_lea.vmem %s1, 68
    %85 = vst.msk [vmem:[%s84] sm:$0x4] %vm79, %v78
    %s86 = scalar_lea.vmem %s1, 99
    %87 = vst.msk [vmem:[%s86] sm:$0x8] %vm79, %v78
    %v88 = vld [vmem:[#allocation0] sm:$0xf]
    %89 = vrot.lane.b32.xlu0 %v88, 121
    %v90 = vpop.permute.xlu0 %89
    %vm91 = vcmask 7168
    %s92 = scalar_lea.vmem %s1, 7
    %93 = vst.msk [vmem:[%s92] sm:$0x1] %vm91, %v90
    %s94 = scalar_lea.vmem %s1, 38
    %95 = vst.msk [vmem:[%s94] sm:$0x2] %vm91, %v90
    %s96 = scalar_lea.vmem %s1, 69
    %97 = vst.msk [vmem:[%s96] sm:$0x4] %vm91, %v90
    %s98 = scalar_lea.vmem %s1, 100
    %99 = vst.msk [vmem:[%s98] sm:$0x8] %vm91, %v90
    %v100 = vld [vmem:[#allocation0] sm:$0xf]
    %101 = vrot.lane.b32.xlu0 %v100, 120
    %v102 = vpop.permute.xlu0 %101
    %vm103 = vcmask 7168
    %s104 = scalar_lea.vmem %s1, 8
    %105 = vst.msk [vmem:[%s104] sm:$0x1] %vm103, %v102
    %s106 = scalar_lea.vmem %s1, 39
    %107 = vst.msk [vmem:[%s106] sm:$0x2] %vm103, %v102
    %s108 = scalar_lea.vmem %s1, 70
    %109 = vst.msk [vmem:[%s108] sm:$0x4] %vm103, %v102
    %s110 = scalar_lea.vmem %s1, 101
    %111 = vst.msk [vmem:[%s110] sm:$0x8] %vm103, %v102
    %v112 = vld [vmem:[#allocation0] sm:$0xf]
    %113 = vrot.lane.b32.xlu0 %v112, 119
    %v114 = vpop.permute.xlu0 %113
    %vm115 = vcmask 7168
    %s116 = scalar_lea.vmem %s1, 9
    %117 = vst.msk [vmem:[%s116] sm:$0x1] %vm115, %v114
    %s118 = scalar_lea.vmem %s1, 40
    %119 = vst.msk [vmem:[%s118] sm:$0x2] %vm115, %v114
    %s120 = scalar_lea.vmem %s1, 71
    %121 = vst.msk [vmem:[%s120] sm:$0x4] %vm115, %v114
    %s122 = scalar_lea.vmem %s1, 102
    %123 = vst.msk [vmem:[%s122] sm:$0x8] %vm115, %v114
    %v124 = vld [vmem:[#allocation0] sm:$0xf]
    %125 = vrot.lane.b32.xlu0 %v124, 118
    %v126 = vpop.permute.xlu0 %125
    %vm127 = vcmask 7168
    %s128 = scalar_lea.vmem %s1, 10
    %129 = vst.msk [vmem:[%s128] sm:$0x1] %vm127, %v126
    %s130 = scalar_lea.vmem %s1, 41
    %131 = vst.msk [vmem:[%s130] sm:$0x2] %vm127, %v126
    %s132 = scalar_lea.vmem %s1, 72
    %133 = vst.msk [vmem:[%s132] sm:$0x4] %vm127, %v126
    %s134 = scalar_lea.vmem %s1, 103
    %135 = vst.msk [vmem:[%s134] sm:$0x8] %vm127, %v126
    %v136 = vld [vmem:[#allocation0] sm:$0xf]
    %137 = vrot.lane.b32.xlu0 %v136, 117
    %v138 = vpop.permute.xlu0 %137
    %vm139 = vcmask 7168
    %s140 = scalar_lea.vmem %s1, 11
    %141 = vst.msk [vmem:[%s140] sm:$0x1] %vm139, %v138
    %s142 = scalar_lea.vmem %s1, 42
    %143 = vst.msk [vmem:[%s142] sm:$0x2] %vm139, %v138
    %s144 = scalar_lea.vmem %s1, 73
    %145 = vst.msk [vmem:[%s144] sm:$0x4] %vm139, %v138
    %s146 = scalar_lea.vmem %s1, 104
    %147 = vst.msk [vmem:[%s146] sm:$0x8] %vm139, %v138
    %v148 = vld [vmem:[#allocation0] sm:$0xf]
    %149 = vrot.lane.b32.xlu0 %v148, 116
    %v150 = vpop.permute.xlu0 %149
    %vm151 = vcmask 7168
    %s152 = scalar_lea.vmem %s1, 12
    %153 = vst.msk [vmem:[%s152] sm:$0x1] %vm151, %v150
    %s154 = scalar_lea.vmem %s1, 43
    %155 = vst.msk [vmem:[%s154] sm:$0x2] %vm151, %v150
    %s156 = scalar_lea.vmem %s1, 74
    %157 = vst.msk [vmem:[%s156] sm:$0x4] %vm151, %v150
    %s158 = scalar_lea.vmem %s1, 105
    %159 = vst.msk [vmem:[%s158] sm:$0x8] %vm151, %v150
    %v160 = vld [vmem:[#allocation0] sm:$0xf]
    %161 = vrot.lane.b32.xlu0 %v160, 115
    %v162 = vpop.permute.xlu0 %161
    %vm163 = vcmask 7168
    %s164 = scalar_lea.vmem %s1, 13
    %165 = vst.msk [vmem:[%s164] sm:$0x1] %vm163, %v162
    %s166 = scalar_lea.vmem %s1, 44
    %167 = vst.msk [vmem:[%s166] sm:$0x2] %vm163, %v162
    %s168 = scalar_lea.vmem %s1, 75
    %169 = vst.msk [vmem:[%s168] sm:$0x4] %vm163, %v162
    %s170 = scalar_lea.vmem %s1, 106
    %171 = vst.msk [vmem:[%s170] sm:$0x8] %vm163, %v162
    %v172 = vld [vmem:[#allocation0] sm:$0xf]
    %173 = vrot.lane.b32.xlu0 %v172, 114
    %v174 = vpop.permute.xlu0 %173
    %vm175 = vcmask 7168
    %s176 = scalar_lea.vmem %s1, 14
    %177 = vst.msk [vmem:[%s176] sm:$0x1] %vm175, %v174
    %s178 = scalar_lea.vmem %s1, 45
    %179 = vst.msk [vmem:[%s178] sm:$0x2] %vm175, %v174
    %s180 = scalar_lea.vmem %s1, 76
    %181 = vst.msk [vmem:[%s180] sm:$0x4] %vm175, %v174
    %s182 = scalar_lea.vmem %s1, 107
    %183 = vst.msk [vmem:[%s182] sm:$0x8] %vm175, %v174
    %v184 = vld [vmem:[#allocation0] sm:$0xf]
    %185 = vrot.lane.b32.xlu0 %v184, 113
    %v186 = vpop.permute.xlu0 %185
    %vm187 = vcmask 7168
    %s188 = scalar_lea.vmem %s1, 15
    %189 = vst.msk [vmem:[%s188] sm:$0x1] %vm187, %v186
    %s190 = scalar_lea.vmem %s1, 46
    %191 = vst.msk [vmem:[%s190] sm:$0x2] %vm187, %v186
    %s192 = scalar_lea.vmem %s1, 77
    %193 = vst.msk [vmem:[%s192] sm:$0x4] %vm187, %v186
    %s194 = scalar_lea.vmem %s1, 108
    %195 = vst.msk [vmem:[%s194] sm:$0x8] %vm187, %v186
    %v196 = vld [vmem:[#allocation0] sm:$0xf]
    %197 = vrot.lane.b32.xlu0 %v196, 112
    %v198 = vpop.permute.xlu0 %197
    %vm199 = vcmask 7168
    %s200 = scalar_lea.vmem %s1, 16
    %201 = vst.msk [vmem:[%s200] sm:$0x1] %vm199, %v198
    %s202 = scalar_lea.vmem %s1, 47
    %203 = vst.msk [vmem:[%s202] sm:$0x2] %vm199, %v198
    %s204 = scalar_lea.vmem %s1, 78
    %205 = vst.msk [vmem:[%s204] sm:$0x4] %vm199, %v198
    %s206 = scalar_lea.vmem %s1, 109
    %207 = vst.msk [vmem:[%s206] sm:$0x8] %vm199, %v198
    %v208 = vld [vmem:[#allocation0] sm:$0xf]
    %209 = vrot.lane.b32.xlu0 %v208, 111
    %v210 = vpop.permute.xlu0 %209
    %vm211 = vcmask 7168
    %s212 = scalar_lea.vmem %s1, 17
    %213 = vst.msk [vmem:[%s212] sm:$0x1] %vm211, %v210
    %s214 = scalar_lea.vmem %s1, 48
    %215 = vst.msk [vmem:[%s214] sm:$0x2] %vm211, %v210
    %s216 = scalar_lea.vmem %s1, 79
    %217 = vst.msk [vmem:[%s216] sm:$0x4] %vm211, %v210
    %s218 = scalar_lea.vmem %s1, 110
    %219 = vst.msk [vmem:[%s218] sm:$0x8] %vm211, %v210
    %v220 = vld [vmem:[#allocation0] sm:$0xf]
    %221 = vrot.lane.b32.xlu0 %v220, 110
    %v222 = vpop.permute.xlu0 %221
    %vm223 = vcmask 7168
    %s224 = scalar_lea.vmem %s1, 18
    %225 = vst.msk [vmem:[%s224] sm:$0x1] %vm223, %v222
    %s226 = scalar_lea.vmem %s1, 49
    %227 = vst.msk [vmem:[%s226] sm:$0x2] %vm223, %v222
    %s228 = scalar_lea.vmem %s1, 80
    %229 = vst.msk [vmem:[%s228] sm:$0x4] %vm223, %v222
    %s230 = scalar_lea.vmem %s1, 111
    %231 = vst.msk [vmem:[%s230] sm:$0x8] %vm223, %v222
    %v232 = vld [vmem:[#allocation0] sm:$0xf]
    %233 = vrot.lane.b32.xlu0 %v232, 109
    %v234 = vpop.permute.xlu0 %233
    %vm235 = vcmask 7168
    %s236 = scalar_lea.vmem %s1, 19
    %237 = vst.msk [vmem:[%s236] sm:$0x1] %vm235, %v234
    %s238 = scalar_lea.vmem %s1, 50
    %239 = vst.msk [vmem:[%s238] sm:$0x2] %vm235, %v234
    %s240 = scalar_lea.vmem %s1, 81
    %241 = vst.msk [vmem:[%s240] sm:$0x4] %vm235, %v234
    %s242 = scalar_lea.vmem %s1, 112
    %243 = vst.msk [vmem:[%s242] sm:$0x8] %vm235, %v234
    %v244 = vld [vmem:[#allocation0] sm:$0xf]
    %245 = vrot.lane.b32.xlu0 %v244, 108
    %v246 = vpop.permute.xlu0 %245
    %vm247 = vcmask 7168
    %s248 = scalar_lea.vmem %s1, 20
    %249 = vst.msk [vmem:[%s248] sm:$0x1] %vm247, %v246
    %s250 = scalar_lea.vmem %s1, 51
    %251 = vst.msk [vmem:[%s250] sm:$0x2] %vm247, %v246
    %s252 = scalar_lea.vmem %s1, 82
    %253 = vst.msk [vmem:[%s252] sm:$0x4] %vm247, %v246
    %s254 = scalar_lea.vmem %s1, 113
    %255 = vst.msk [vmem:[%s254] sm:$0x8] %vm247, %v246
    %v256 = vld [vmem:[#allocation0] sm:$0xf]
    %257 = vrot.lane.b32.xlu0 %v256, 107
    %v258 = vpop.permute.xlu0 %257
    %vm259 = vcmask 7168
    %s260 = scalar_lea.vmem %s1, 21
    %261 = vst.msk [vmem:[%s260] sm:$0x1] %vm259, %v258
    %s262 = scalar_lea.vmem %s1, 52
    %263 = vst.msk [vmem:[%s262] sm:$0x2] %vm259, %v258
    %s264 = scalar_lea.vmem %s1, 83
    %265 = vst.msk [vmem:[%s264] sm:$0x4] %vm259, %v258
    %s266 = scalar_lea.vmem %s1, 114
    %267 = vst.msk [vmem:[%s266] sm:$0x8] %vm259, %v258
    %v268 = vld [vmem:[#allocation0] sm:$0xf]
    %269 = vrot.lane.b32.xlu0 %v268, 106
    %v270 = vpop.permute.xlu0 %269
    %vm271 = vcmask 7168
    %s272 = scalar_lea.vmem %s1, 22
    %273 = vst.msk [vmem:[%s272] sm:$0x1] %vm271, %v270
    %s274 = scalar_lea.vmem %s1, 53
    %275 = vst.msk [vmem:[%s274] sm:$0x2] %vm271, %v270
    %s276 = scalar_lea.vmem %s1, 84
    %277 = vst.msk [vmem:[%s276] sm:$0x4] %vm271, %v270
    %s278 = scalar_lea.vmem %s1, 115
    %279 = vst.msk [vmem:[%s278] sm:$0x8] %vm271, %v270
    %v280 = vld [vmem:[#allocation0] sm:$0xf]
    %281 = vrot.lane.b32.xlu0 %v280, 105
    %v282 = vpop.permute.xlu0 %281
    %vm283 = vcmask 7168
    %s284 = scalar_lea.vmem %s1, 23
    %285 = vst.msk [vmem:[%s284] sm:$0x1] %vm283, %v282
    %s286 = scalar_lea.vmem %s1, 54
    %287 = vst.msk [vmem:[%s286] sm:$0x2] %vm283, %v282
    %s288 = scalar_lea.vmem %s1, 85
    %289 = vst.msk [vmem:[%s288] sm:$0x4] %vm283, %v282
    %s290 = scalar_lea.vmem %s1, 116
    %291 = vst.msk [vmem:[%s290] sm:$0x8] %vm283, %v282
    %v292 = vld [vmem:[#allocation0] sm:$0xf]
    %293 = vrot.lane.b32.xlu0 %v292, 104
    %v294 = vpop.permute.xlu0 %293
    %vm295 = vcmask 7168
    %s296 = scalar_lea.vmem %s1, 24
    %297 = vst.msk [vmem:[%s296] sm:$0x1] %vm295, %v294
    %s298 = scalar_lea.vmem %s1, 55
    %299 = vst.msk [vmem:[%s298] sm:$0x2] %vm295, %v294
    %s300 = scalar_lea.vmem %s1, 86
    %301 = vst.msk [vmem:[%s300] sm:$0x4] %vm295, %v294
    %s302 = scalar_lea.vmem %s1, 117
    %303 = vst.msk [vmem:[%s302] sm:$0x8] %vm295, %v294
    %v304 = vld [vmem:[#allocation0] sm:$0xf]
    %305 = vrot.lane.b32.xlu0 %v304, 103
    %v306 = vpop.permute.xlu0 %305
    %vm307 = vcmask 7168
    %s308 = scalar_lea.vmem %s1, 25
    %309 = vst.msk [vmem:[%s308] sm:$0x1] %vm307, %v306
    %s310 = scalar_lea.vmem %s1, 56
    %311 = vst.msk [vmem:[%s310] sm:$0x2] %vm307, %v306
    %s312 = scalar_lea.vmem %s1, 87
    %313 = vst.msk [vmem:[%s312] sm:$0x4] %vm307, %v306
    %s314 = scalar_lea.vmem %s1, 118
    %315 = vst.msk [vmem:[%s314] sm:$0x8] %vm307, %v306
    %v316 = vld [vmem:[#allocation0] sm:$0xf]
    %317 = vrot.lane.b32.xlu0 %v316, 102
    %v318 = vpop.permute.xlu0 %317
    %vm319 = vcmask 7168
    %s320 = scalar_lea.vmem %s1, 26
    %321 = vst.msk [vmem:[%s320] sm:$0x1] %vm319, %v318
    %s322 = scalar_lea.vmem %s1, 57
    %323 = vst.msk [vmem:[%s322] sm:$0x2] %vm319, %v318
    %s324 = scalar_lea.vmem %s1, 88
    %325 = vst.msk [vmem:[%s324] sm:$0x4] %vm319, %v318
    %s326 = scalar_lea.vmem %s1, 119
    %327 = vst.msk [vmem:[%s326] sm:$0x8] %vm319, %v318
    %v328 = vld [vmem:[#allocation0] sm:$0xf]
    %329 = vrot.lane.b32.xlu0 %v328, 101
    %v330 = vpop.permute.xlu0 %329
    %vm331 = vcmask 7168
    %s332 = scalar_lea.vmem %s1, 27
    %333 = vst.msk [vmem:[%s332] sm:$0x1] %vm331, %v330
    %s334 = scalar_lea.vmem %s1, 58
    %335 = vst.msk [vmem:[%s334] sm:$0x2] %vm331, %v330
    %s336 = scalar_lea.vmem %s1, 89
    %337 = vst.msk [vmem:[%s336] sm:$0x4] %vm331, %v330
    %s338 = scalar_lea.vmem %s1, 120
    %339 = vst.msk [vmem:[%s338] sm:$0x8] %vm331, %v330
    %v340 = vld [vmem:[#allocation0] sm:$0xf]
    %341 = vrot.lane.b32.xlu0 %v340, 100
    %v342 = vpop.permute.xlu0 %341
    %vm343 = vcmask 7168
    %s344 = scalar_lea.vmem %s1, 28
    %345 = vst.msk [vmem:[%s344] sm:$0x1] %vm343, %v342
    %s346 = scalar_lea.vmem %s1, 59
    %347 = vst.msk [vmem:[%s346] sm:$0x2] %vm343, %v342
    %s348 = scalar_lea.vmem %s1, 90
    %349 = vst.msk [vmem:[%s348] sm:$0x4] %vm343, %v342
    %s350 = scalar_lea.vmem %s1, 121
    %351 = vst.msk [vmem:[%s350] sm:$0x8] %vm343, %v342
    %v352 = vld [vmem:[#allocation0] sm:$0xf]
    %353 = vrot.lane.b32.xlu0 %v352, 99
    %v354 = vpop.permute.xlu0 %353
    %vm355 = vcmask 7168
    %s356 = scalar_lea.vmem %s1, 29
    %357 = vst.msk [vmem:[%s356] sm:$0x1] %vm355, %v354
    %s358 = scalar_lea.vmem %s1, 60
    %359 = vst.msk [vmem:[%s358] sm:$0x2] %vm355, %v354
    %s360 = scalar_lea.vmem %s1, 91
    %361 = vst.msk [vmem:[%s360] sm:$0x4] %vm355, %v354
    %s362 = scalar_lea.vmem %s1, 122
    %363 = vst.msk [vmem:[%s362] sm:$0x8] %vm355, %v354
    %v364 = vld [vmem:[#allocation0] sm:$0xf]
    %365 = vrot.lane.b32.xlu0 %v364, 98
    %v366 = vpop.permute.xlu0 %365
    %vm367 = vcmask 7168
    %s368 = scalar_lea.vmem %s1, 30
    %369 = vst.msk [vmem:[%s368] sm:$0x1] %vm367, %v366
    %s370 = scalar_lea.vmem %s1, 61
    %371 = vst.msk [vmem:[%s370] sm:$0x2] %vm367, %v366
    %s372 = scalar_lea.vmem %s1, 92
    %373 = vst.msk [vmem:[%s372] sm:$0x4] %vm367, %v366
    %s374 = scalar_lea.vmem %s1, 123
    %375 = vst.msk [vmem:[%s374] sm:$0x8] %vm367, %v366
    %v376 = vld [vmem:[#allocation0] sm:$0xf]
    %377 = vrot.lane.b32.xlu0 %v376, 97
    %v378 = vpop.permute.xlu0 %377
    %vm379 = vcmask 7168
    %s380 = scalar_lea.vmem %s1, 31
    %381 = vst.msk [vmem:[%s380] sm:$0x1] %vm379, %v378
    %s382 = scalar_lea.vmem %s1, 62
    %383 = vst.msk [vmem:[%s382] sm:$0x2] %vm379, %v378
    %s384 = scalar_lea.vmem %s1, 93
    %385 = vst.msk [vmem:[%s384] sm:$0x4] %vm379, %v378
    %s386 = scalar_lea.vmem %s1, 124
    %387 = vst.msk [vmem:[%s386] sm:$0x8] %vm379, %v378

// kernel: tile.66
$region0: #{tile.66}
  #allocation0 [shape = 's32[1]{0}', space=sflag, size = 0x4, scoped, tag = 'scoped memory for tile.66']
  %s0 = inlined_call_operand.vmem [shape: f32[32], index: 0, kind: input, shape index: {}]
  %s1 = inlined_call_operand.vmem [shape: f32[9,32], index: 1, kind: output, shape index: {}]
  // Predicated region
  $region2: #{tile.66} parent=0 // pred_check
    _
  $region3: #{tile.66} parent=0 // pred_check_branch
    %3 = sbr.rel (0) target = $region5
  $region4: #{tile.66} parent=0 // pred_region
    _
  $region5: #{tile.66} parent=0 // pred_fallthru
    _
  %v4 = vld [vmem:[%s0] ss:$0 sm:$0xff]
  %5 = vst [vmem:[%s1] sm:$0xff] %v4
  %s6 = scalar_lea.vmem %s1, 8
  %7 = vst [vmem:[%s6] sm:$0xff] %v4

// kernel: mul.21
$region0: #{mul.21}
  %s0 = inlined_call_operand.vmem [shape: f32[9,32], index: 0, kind: input, shape index: {}]
  %s1 = inlined_call_operand.vmem [shape: f32[288], index: 1, kind: output, shape index: {}]
  $region1: #{mul.21} parent=0
    #allocation0 [shape = 'u8[4096]{0}', space=vmem, size = 0x1000, scoped, tag = 'scoped mem for output reshape']
    %v2 = vld [vmem:[%s0] ss:$4 sm:$0x7]
    %vm3 = vcmask 261120
    %4 = vst.msk [vmem:[#allocation0] sm:$0x7] %vm3, %v2
    %s5 = scalar_lea.vmem %s0, 3
    %s6 = smov 3
    %v7 = vld [vmem:[%s5] ss:$4 sm:%s6]
    %8 = vrot.lane.b32.xlu0 %v7, 96
    %v9 = vpop.permute.xlu0 %8
    %vm10 = vcmask 1048320
    %11 = vst.msk [vmem:[#allocation0] sm:$0x3] %vm10, %v9
    %s12 = scalar_lea.vmem %s0, 2
    %s13 = smov 3
    %v14 = vld [vmem:[%s12] ss:$4 sm:%s13]
    %15 = vrot.lane.b32.xlu0 %v14, 64
    %v16 = vpop.permute.xlu0 %15
    %vm17 = vcmask 785920
    %18 = vst.msk [vmem:[#allocation0] sm:$0x3] %vm17, %v16
    %s19 = scalar_lea.vmem %s0, 1
    %s20 = smov 3
    %v21 = vld [vmem:[%s19] ss:$4 sm:%s20]
    %22 = vrot.lane.b32.xlu0 %v21, 32
    %v23 = vpop.permute.xlu0 %22
    %vm24 = vcmask 523520
    %25 = vst.msk [vmem:[#allocation0] sm:$0x3] %vm24, %v23
    %s27 = sshll.u32 1, 4
    %s28 = ssub.s32 %s27, 1
    %v30 = vld [vmem:[#allocation0] sm:%s28]
    %s31 = sshll.u32 1, 4
    %s32 = ssub.s32 %s31, 1
    %33 = vst [vmem:[%s1] sm:%s32] %v30

// kernel: mul.19
$region0: #{mul.19}
  #allocation0 [shape = 's32[1]{0}', space=sflag, size = 0x4, scoped, tag = 'scoped memory for mul.19']
  %s0 = inlined_call_operand.vmem [shape: f32[288], index: 0, kind: input, shape index: {}]
  %s1 = inlined_call_operand.vmem [shape: f32[288], index: 1, kind: input, shape index: {}]
  %s2 = inlined_call_operand.vmem [shape: f32[288], index: 2, kind: output, shape index: {}]
  %v3 = vld [vmem:[%s0] sm:$0x7]
  %v4 = vld [vmem:[%s1] sm:$0x7]
  %5 = xla_tuple %v3, %v4
  %6 = xla_tuple %5
  %v7 = vmul.f32 %v3, %v4
  %8 = xla_tuple %v7
  %9 = vst [vmem:[%s2] sm:$0xf] %v7

// kernel: generator2_forward.6
$region0: #{generator2_forward.6}
  #allocation0 [shape = 'u32[]', space=smem, size = 0x4, offset = 0x4, fixed_abs, tag = 'smem constant byte address 0x4 - core index']
  #allocation1 [shape = 'u32[144,128]{1,0:T(1,128)}', space=vmem, size = 0x12000, scoped, tag = 'internal scratch']
  %s0 = inlined_call_operand.vmem [shape: bf16[128,576], index: 0, kind: input, shape index: {}]
  %s1 = inlined_call_operand.vmem [shape: f32[128,1], index: 1, kind: input, shape index: {}]
  %s2 = inlined_call_operand.vmem [shape: bf16[576,128], index: 2, kind: input, shape index: {}]
  %s3 = inlined_call_operand.vmem [shape: bf16[128,128], index: 3, kind: output, shape index: {0}]
  %s4 = inlined_call_operand.vmem [shape: f32[1,128,1], index: 4, kind: output, shape index: {1}]
  %s5 = inlined_call_operand.vmem [shape: f32[1,128,1], index: 5, kind: output, shape index: {2}]
  %6 = xla_tuple %s3, %s4, %s5
  %s7 = sld [smem:[#allocation0]]
  $region38: #{generator2_forward.6} parent=0
    _
  %s9 = ssub.s32 1, %s7
  %s10 = scalar_select 0, %s9, %s7
  // Predicated region
  $region2: #{generator2_forward.6} parent=0 // pred_check
    _
  $region3: #{generator2_forward.6} parent=0 // pred_check_branch
    %12 = sbr.rel (0) target = $region5
  $region4: #{generator2_forward.6} parent=0 // pred_region
    _
  $region5: #{generator2_forward.6} parent=0 // pred_fallthru
    _
  // Predicated region
  $region6: #{generator2_forward.6} parent=0 // pred_check
    _
  $region7: #{generator2_forward.6} parent=0 // pred_check_branch
    %14 = sbr.rel (0) target = $region9
  $region8: #{generator2_forward.6} parent=0 // pred_region
    _
  $region9: #{generator2_forward.6} parent=0 // pred_fallthru
    _
  // Predicated region
  $region10: #{generator2_forward.6} parent=0 // pred_check
    _
  $region11: #{generator2_forward.6} parent=0 // pred_check_branch
    %16 = sbr.rel (0) target = $region13
  $region12: #{generator2_forward.6} parent=0 // pred_region
    _
  $region13: #{generator2_forward.6} parent=0 // pred_fallthru
    _
  %v18 = vld [vmem:[%s0] sm:$0xff]
  %v19 = vld [vmem:[%s0 + $0x8] sm:$0xff]
  %v20 = vld [vmem:[%s0 + $0x10] sm:$0xf]
  %v21 = vld [vmem:[%s0 + $0x14] sm:$0xff]
  %v22 = vld [vmem:[%s0 + $0x1c] sm:$0xff]
  %v23 = vld [vmem:[%s0 + $0x24] sm:$0xf]
  %v24 = vld [vmem:[%s0 + $0x28] sm:$0xff]
  %v25 = vld [vmem:[%s0 + $0x30] sm:$0xff]
  %v26 = vld [vmem:[%s0 + $0x38] sm:$0xf]
  %v27 = vld [vmem:[%s0 + $0x3c] sm:$0xff]
  %v28 = vld [vmem:[%s0 + $0x44] sm:$0xff]
  %v29 = vld [vmem:[%s0 + $0x4c] sm:$0xf]
  %v30 = vld [vmem:[%s0 + $0x50] sm:$0xff]
  %v31 = vld [vmem:[%s0 + $0x58] sm:$0xff]
  %v32 = vld [vmem:[%s0 + $0x60] sm:$0xf]
  %v33 = vld [vmem:[%s0 + $0x64] sm:$0xff]
  %v34 = vld [vmem:[%s0 + $0x6c] sm:$0xff]
  %v35 = vld [vmem:[%s0 + $0x74] sm:$0xf]
  %v36 = vld [vmem:[%s0 + $0x78] sm:$0xff]
  %v37 = vld [vmem:[%s0 + $0x80] sm:$0xff]
  %v38 = vld [vmem:[%s0 + $0x88] sm:$0xf]
  %v39 = vld [vmem:[%s0 + $0x8c] sm:$0xff]
  %v40 = vld [vmem:[%s0 + $0x94] sm:$0xff]
  %v41 = vld [vmem:[%s0 + $0x9c] sm:$0xf]
  %v42 = vld [vmem:[%s0 + $0xa0] sm:$0xff]
  %v43 = vld [vmem:[%s0 + $0xa8] sm:$0xff]
  %v44 = vld [vmem:[%s0 + $0xb0] sm:$0xf]
  %v45 = vld [vmem:[%s0 + $0xb4] sm:$0xff]
  %v46 = vld [vmem:[%s0 + $0xbc] sm:$0xff]
  %v47 = vld [vmem:[%s0 + $0xc4] sm:$0xf]
  %v48 = vld [vmem:[%s0 + $0xc8] sm:$0xff]
  %v49 = vld [vmem:[%s0 + $0xd0] sm:$0xff]
  %v50 = vld [vmem:[%s0 + $0xd8] sm:$0xf]
  %v51 = vld [vmem:[%s0 + $0xdc] sm:$0xff]
  %v52 = vld [vmem:[%s0 + $0xe4] sm:$0xff]
  %v53 = vld [vmem:[%s0 + $0xec] sm:$0xf]
  %v54 = vld [vmem:[%s0 + $0xf0] sm:$0xff]
  %v55 = vld [vmem:[%s0 + $0xf8] sm:$0xff]
  %v56 = vld [vmem:[%s0 + $0x100] sm:$0xf]
  %v57 = vld [vmem:[%s0 + $0x104] sm:$0xff]
  %v58 = vld [vmem:[%s0 + $0x10c] sm:$0xff]
  %v59 = vld [vmem:[%s0 + $0x114] sm:$0xf]
  %v60 = vld [vmem:[%s0 + $0x118] sm:$0xff]
  %v61 = vld [vmem:[%s0 + $0x120] sm:$0xff]
  %v62 = vld [vmem:[%s0 + $0x128] sm:$0xf]
  %v63 = vld [vmem:[%s0 + $0x12c] sm:$0xff]
  %v64 = vld [vmem:[%s0 + $0x134] sm:$0xff]
  %v65 = vld [vmem:[%s0 + $0x13c] sm:$0xf]
  %v66 = vld [vmem:[%s2] sm:$0xf]
  %v67 = vld [vmem:[%s2 + $0x4] sm:$0xf]
  %v68 = vld [vmem:[%s2 + $0x8] sm:$0xf]
  %v69 = vld [vmem:[%s2 + $0xc] sm:$0xf]
  %v70 = vld [vmem:[%s2 + $0x10] sm:$0xf]
  %v71 = vld [vmem:[%s2 + $0x14] sm:$0xf]
  %v72 = vld [vmem:[%s2 + $0x18] sm:$0xf]
  %v73 = vld [vmem:[%s2 + $0x1c] sm:$0xf]
  %v74 = vld [vmem:[%s2 + $0x20] sm:$0xf]
  %v75 = vld [vmem:[%s2 + $0x24] sm:$0xf]
  %v76 = vld [vmem:[%s2 + $0x28] sm:$0xf]
  %v77 = vld [vmem:[%s2 + $0x2c] sm:$0xf]
  %v78 = vld [vmem:[%s2 + $0x30] sm:$0xf]
  %v79 = vld [vmem:[%s2 + $0x34] sm:$0xf]
  %v80 = vld [vmem:[%s2 + $0x38] sm:$0xf]
  %v81 = vld [vmem:[%s2 + $0x3c] sm:$0xf]
  %v82 = vld [vmem:[%s2 + $0x40] sm:$0xf]
  %v83 = vld [vmem:[%s2 + $0x44] sm:$0xf]
  %v84 = vld [vmem:[%s2 + $0x48] sm:$0xf]
  %v85 = vld [vmem:[%s2 + $0x4c] sm:$0xf]
  %v86 = vld [vmem:[%s2 + $0x50] sm:$0xf]
  %v87 = vld [vmem:[%s2 + $0x54] sm:$0xf]
  %v88 = vld [vmem:[%s2 + $0x58] sm:$0xf]
  %v89 = vld [vmem:[%s2 + $0x5c] sm:$0xf]
  %v90 = vld [vmem:[%s2 + $0x60] sm:$0xf]
  %v91 = vld [vmem:[%s2 + $0x64] sm:$0xf]
  %v92 = vld [vmem:[%s2 + $0x68] sm:$0xf]
  %v93 = vld [vmem:[%s2 + $0x6c] sm:$0xf]
  %v94 = vld [vmem:[%s2 + $0x70] sm:$0xf]
  %v95 = vld [vmem:[%s2 + $0x74] sm:$0xf]
  %v96 = vld [vmem:[%s2 + $0x78] sm:$0xf]
  %v97 = vld [vmem:[%s2 + $0x7c] sm:$0xf]
  %v98 = vld [vmem:[%s2 + $0x80] sm:$0xf]
  %v99 = vld [vmem:[%s2 + $0x84] sm:$0xf]
  %v100 = vld [vmem:[%s2 + $0x88] sm:$0xf]
  %v101 = vld [vmem:[%s2 + $0x8c] sm:$0xf]
  %v102 = vld [vmem:[%s2 + $0x90] sm:$0xf]
  %v103 = vld [vmem:[%s2 + $0x94] sm:$0xf]
  %v104 = vld [vmem:[%s2 + $0x98] sm:$0xf]
  %v105 = vld [vmem:[%s2 + $0x9c] sm:$0xf]
  %v106 = vld [vmem:[%s2 + $0xa0] sm:$0xf]
  %v107 = vld [vmem:[%s2 + $0xa4] sm:$0xf]
  %v108 = vld [vmem:[%s2 + $0xa8] sm:$0xf]
  %v109 = vld [vmem:[%s2 + $0xac] sm:$0xf]
  %v110 = vld [vmem:[%s2 + $0xb0] sm:$0xf]
  %v111 = vld [vmem:[%s2 + $0xb4] sm:$0xf]
  %v112 = vld [vmem:[%s2 + $0xb8] sm:$0xf]
  %v113 = vld [vmem:[%s2 + $0xbc] sm:$0xf]
  %v114 = vld [vmem:[%s2 + $0xc0] sm:$0xf]
  %v115 = vld [vmem:[%s2 + $0xc4] sm:$0xf]
  %v116 = vld [vmem:[%s2 + $0xc8] sm:$0xf]
  %v117 = vld [vmem:[%s2 + $0xcc] sm:$0xf]
  %v118 = vld [vmem:[%s2 + $0xd0] sm:$0xf]
  %v119 = vld [vmem:[%s2 + $0xd4] sm:$0xf]
  %v120 = vld [vmem:[%s2 + $0xd8] sm:$0xf]
  %v121 = vld [vmem:[%s2 + $0xdc] sm:$0xf]
  %v122 = vld [vmem:[%s2 + $0xe0] sm:$0xf]
  %v123 = vld [vmem:[%s2 + $0xe4] sm:$0xf]
  %v124 = vld [vmem:[%s2 + $0xe8] sm:$0xf]
  %v125 = vld [vmem:[%s2 + $0xec] sm:$0xf]
  %v126 = vld [vmem:[%s2 + $0xf0] sm:$0xf]
  %v127 = vld [vmem:[%s2 + $0xf4] sm:$0xf]
  %v128 = vld [vmem:[%s2 + $0xf8] sm:$0xf]
  %v129 = vld [vmem:[%s2 + $0xfc] sm:$0xf]
  %v130 = vld [vmem:[%s2 + $0x100] sm:$0xf]
  %v131 = vld [vmem:[%s2 + $0x104] sm:$0xf]
  %v132 = vld [vmem:[%s2 + $0x108] sm:$0xf]
  %v133 = vld [vmem:[%s2 + $0x10c] sm:$0xf]
  %v134 = vld [vmem:[%s2 + $0x110] sm:$0xf]
  %v135 = vld [vmem:[%s2 + $0x114] sm:$0xf]
  %v136 = vld [vmem:[%s2 + $0x118] sm:$0xf]
  %v137 = vld [vmem:[%s2 + $0x11c] sm:$0xf]
  %v138 = vld [vmem:[%s1] sm:$0xff]
  %v139 = vld [vmem:[%s1 + $0x8] sm:$0xff]
  %v140 = vld [vmem:[%s1 + $0x10] sm:$0xff]
  %v141 = vld [vmem:[%s1 + $0x18] sm:$0xff]
  %v142 = vld [vmem:[%s1 + $0x20] sm:$0xff]
  %v143 = vld [vmem:[%s1 + $0x28] sm:$0xff]
  %v144 = vld [vmem:[%s1 + $0x30] sm:$0xff]
  %v145 = vld [vmem:[%s1 + $0x38] sm:$0xff]
  %v146 = vld [vmem:[%s1 + $0x40] sm:$0xff]
  %v147 = vld [vmem:[%s1 + $0x48] sm:$0xff]
  %v148 = vld [vmem:[%s1 + $0x50] sm:$0xff]
  %v149 = vld [vmem:[%s1 + $0x58] sm:$0xff]
  %v150 = vld [vmem:[%s1 + $0x60] sm:$0xff]
  %v151 = vld [vmem:[%s1 + $0x68] sm:$0xff]
  %v152 = vld [vmem:[%s1 + $0x70] sm:$0xff]
  %v153 = vld [vmem:[%s1 + $0x78] sm:$0xff]
  %155 = vset.pattern.permute.xlu0 0
  %156 = vperm.xlu0 %155, %v138
  %v157 = vpop.permute.xlu0 %156
  %160 = vset.pattern.permute.xlu0 0
  %161 = vperm.xlu0 %160, %v139
  %v162 = vpop.permute.xlu0 %161
  %165 = vset.pattern.permute.xlu0 0
  %166 = vperm.xlu0 %165, %v140
  %v167 = vpop.permute.xlu0 %166
  %170 = vset.pattern.permute.xlu0 0
  %171 = vperm.xlu0 %170, %v141
  %v172 = vpop.permute.xlu0 %171
  %175 = vset.pattern.permute.xlu0 0
  %176 = vperm.xlu0 %175, %v142
  %v177 = vpop.permute.xlu0 %176
  %180 = vset.pattern.permute.xlu0 0
  %181 = vperm.xlu0 %180, %v143
  %v182 = vpop.permute.xlu0 %181
  %185 = vset.pattern.permute.xlu0 0
  %186 = vperm.xlu0 %185, %v144
  %v187 = vpop.permute.xlu0 %186
  %190 = vset.pattern.permute.xlu0 0
  %191 = vperm.xlu0 %190, %v145
  %v192 = vpop.permute.xlu0 %191
  %195 = vset.pattern.permute.xlu0 0
  %196 = vperm.xlu0 %195, %v146
  %v197 = vpop.permute.xlu0 %196
  %200 = vset.pattern.permute.xlu0 0
  %201 = vperm.xlu0 %200, %v147
  %v202 = vpop.permute.xlu0 %201
  %205 = vset.pattern.permute.xlu0 0
  %206 = vperm.xlu0 %205, %v148
  %v207 = vpop.permute.xlu0 %206
  %210 = vset.pattern.permute.xlu0 0
  %211 = vperm.xlu0 %210, %v149
  %v212 = vpop.permute.xlu0 %211
  %215 = vset.pattern.permute.xlu0 0
  %216 = vperm.xlu0 %215, %v150
  %v217 = vpop.permute.xlu0 %216
  %220 = vset.pattern.permute.xlu0 0
  %221 = vperm.xlu0 %220, %v151
  %v222 = vpop.permute.xlu0 %221
  %225 = vset.pattern.permute.xlu0 0
  %226 = vperm.xlu0 %225, %v152
  %v227 = vpop.permute.xlu0 %226
  %230 = vset.pattern.permute.xlu0 0
  %231 = vperm.xlu0 %230, %v153
  %v232 = vpop.permute.xlu0 %231
  %v282 = vunpack.c.l.b16 %v18
  %v283 = vunpack.c.h.b16 %v18
  %v284 = vunpack.c.l.b16 %v19
  %v285 = vunpack.c.h.b16 %v19
  %v286 = vunpack.c.l.b16 %v20
  %v287 = vunpack.c.l.b16 %v21
  %v288 = vunpack.c.h.b16 %v21
  %v289 = vunpack.c.l.b16 %v22
  %v290 = vunpack.c.h.b16 %v22
  %v291 = vunpack.c.l.b16 %v23
  %v292 = vunpack.c.l.b16 %v24
  %v293 = vunpack.c.h.b16 %v24
  %v294 = vunpack.c.l.b16 %v25
  %v295 = vunpack.c.h.b16 %v25
  %v296 = vunpack.c.l.b16 %v26
  %v297 = vunpack.c.l.b16 %v27
  %v298 = vunpack.c.h.b16 %v27
  %v299 = vunpack.c.l.b16 %v28
  %v300 = vunpack.c.h.b16 %v28
  %v301 = vunpack.c.l.b16 %v29
  %v302 = vunpack.c.l.b16 %v30
  %v303 = vunpack.c.h.b16 %v30
  %v304 = vunpack.c.l.b16 %v31
  %v305 = vunpack.c.h.b16 %v31
  %v306 = vunpack.c.l.b16 %v32
  %v307 = vunpack.c.l.b16 %v33
  %v308 = vunpack.c.h.b16 %v33
  %v309 = vunpack.c.l.b16 %v34
  %v310 = vunpack.c.h.b16 %v34
  %v311 = vunpack.c.l.b16 %v35
  %v312 = vunpack.c.l.b16 %v36
  %v313 = vunpack.c.h.b16 %v36
  %v314 = vunpack.c.l.b16 %v37
  %v315 = vunpack.c.h.b16 %v37
  %v316 = vunpack.c.l.b16 %v38
  %v317 = vunpack.c.l.b16 %v39
  %v318 = vunpack.c.h.b16 %v39
  %v319 = vunpack.c.l.b16 %v40
  %v320 = vunpack.c.h.b16 %v40
  %v321 = vunpack.c.l.b16 %v41
  %v322 = vunpack.c.l.b16 %v42
  %v323 = vunpack.c.h.b16 %v42
  %v324 = vunpack.c.l.b16 %v43
  %v325 = vunpack.c.h.b16 %v43
  %v326 = vunpack.c.l.b16 %v44
  %v327 = vunpack.c.l.b16 %v45
  %v328 = vunpack.c.h.b16 %v45
  %v329 = vunpack.c.l.b16 %v46
  %v330 = vunpack.c.h.b16 %v46
  %v331 = vunpack.c.l.b16 %v47
  %v332 = vunpack.c.l.b16 %v48
  %v333 = vunpack.c.h.b16 %v48
  %v334 = vunpack.c.l.b16 %v49
  %v335 = vunpack.c.h.b16 %v49
  %v336 = vunpack.c.l.b16 %v50
  %v337 = vunpack.c.l.b16 %v51
  %v338 = vunpack.c.h.b16 %v51
  %v339 = vunpack.c.l.b16 %v52
  %v340 = vunpack.c.h.b16 %v52
  %v341 = vunpack.c.l.b16 %v53
  %v342 = vunpack.c.l.b16 %v54
  %v343 = vunpack.c.h.b16 %v54
  %v344 = vunpack.c.l.b16 %v55
  %v345 = vunpack.c.h.b16 %v55
  %v346 = vunpack.c.l.b16 %v56
  %v347 = vunpack.c.l.b16 %v57
  %v348 = vunpack.c.h.b16 %v57
  %v349 = vunpack.c.l.b16 %v58
  %v350 = vunpack.c.h.b16 %v58
  %v351 = vunpack.c.l.b16 %v59
  %v352 = vunpack.c.l.b16 %v60
  %v353 = vunpack.c.h.b16 %v60
  %v354 = vunpack.c.l.b16 %v61
  %v355 = vunpack.c.h.b16 %v61
  %v356 = vunpack.c.l.b16 %v62
  %v357 = vunpack.c.l.b16 %v63
  %v358 = vunpack.c.h.b16 %v63
  %v359 = vunpack.c.l.b16 %v64
  %v360 = vunpack.c.h.b16 %v64
  %v361 = vunpack.c.l.b16 %v65
  %v362 = vpack.c.b16 %v287, %v282
  %v363 = vpack.c.b16 %v288, %v283
  %v364 = vpack.c.b16 %v289, %v284
  %v365 = vpack.c.b16 %v290, %v285
  %v366 = vpack.c.b16 %v291, %v286
  %v367 = vpack.c.b16 %v297, %v292
  %v368 = vpack.c.b16 %v298, %v293
  %v369 = vpack.c.b16 %v299, %v294
  %v370 = vpack.c.b16 %v300, %v295
  %v371 = vpack.c.b16 %v301, %v296
  %v372 = vpack.c.b16 %v307, %v302
  %v373 = vpack.c.b16 %v308, %v303
  %v374 = vpack.c.b16 %v309, %v304
  %v375 = vpack.c.b16 %v310, %v305
  %v376 = vpack.c.b16 %v311, %v306
  %v377 = vpack.c.b16 %v317, %v312
  %v378 = vpack.c.b16 %v318, %v313
  %v379 = vpack.c.b16 %v319, %v314
  %v380 = vpack.c.b16 %v320, %v315
  %v381 = vpack.c.b16 %v321, %v316
  %v382 = vpack.c.b16 %v327, %v322
  %v383 = vpack.c.b16 %v328, %v323
  %v384 = vpack.c.b16 %v329, %v324
  %v385 = vpack.c.b16 %v330, %v325
  %v386 = vpack.c.b16 %v331, %v326
  %v387 = vpack.c.b16 %v337, %v332
  %v388 = vpack.c.b16 %v338, %v333
  %v389 = vpack.c.b16 %v339, %v334
  %v390 = vpack.c.b16 %v340, %v335
  %v391 = vpack.c.b16 %v341, %v336
  %v392 = vpack.c.b16 %v347, %v342
  %v393 = vpack.c.b16 %v348, %v343
  %v394 = vpack.c.b16 %v349, %v344
  %v395 = vpack.c.b16 %v350, %v345
  %v396 = vpack.c.b16 %v351, %v346
  %v397 = vpack.c.b16 %v357, %v352
  %v398 = vpack.c.b16 %v358, %v353
  %v399 = vpack.c.b16 %v359, %v354
  %v400 = vpack.c.b16 %v360, %v355
  %v401 = vpack.c.b16 %v361, %v356
  %v506 = vunpack.c.l.b16 %v66
  %v507 = vunpack.c.l.b16 %v67
  %v508 = vunpack.c.l.b16 %v68
  %v509 = vunpack.c.l.b16 %v69
  %v510 = vunpack.c.l.b16 %v70
  %v511 = vunpack.c.l.b16 %v71
  %v512 = vunpack.c.l.b16 %v72
  %v513 = vunpack.c.l.b16 %v73
  %v514 = vunpack.c.l.b16 %v74
  %v515 = vunpack.c.l.b16 %v75
  %v516 = vunpack.c.l.b16 %v76
  %v517 = vunpack.c.l.b16 %v77
  %v518 = vunpack.c.l.b16 %v78
  %v519 = vunpack.c.l.b16 %v79
  %v520 = vunpack.c.l.b16 %v80
  %v521 = vunpack.c.l.b16 %v81
  %v522 = vunpack.c.l.b16 %v82
  %v523 = vunpack.c.l.b16 %v83
  %v524 = vunpack.c.l.b16 %v84
  %v525 = vunpack.c.l.b16 %v85
  %v526 = vunpack.c.l.b16 %v86
  %v527 = vunpack.c.l.b16 %v87
  %v528 = vunpack.c.l.b16 %v88
  %v529 = vunpack.c.l.b16 %v89
  %v530 = vunpack.c.l.b16 %v90
  %v531 = vunpack.c.l.b16 %v91
  %v532 = vunpack.c.l.b16 %v92
  %v533 = vunpack.c.l.b16 %v93
  %v534 = vunpack.c.l.b16 %v94
  %v535 = vunpack.c.l.b16 %v95
  %v536 = vunpack.c.l.b16 %v96
  %v537 = vunpack.c.l.b16 %v97
  %v538 = vunpack.c.l.b16 %v98
  %v539 = vunpack.c.l.b16 %v99
  %v540 = vunpack.c.l.b16 %v100
  %v541 = vunpack.c.l.b16 %v101
  %v542 = vunpack.c.l.b16 %v102
  %v543 = vunpack.c.l.b16 %v103
  %v544 = vunpack.c.l.b16 %v104
  %v545 = vunpack.c.l.b16 %v105
  %v546 = vunpack.c.l.b16 %v106
  %v547 = vunpack.c.l.b16 %v107
  %v548 = vunpack.c.l.b16 %v108
  %v549 = vunpack.c.l.b16 %v109
  %v550 = vunpack.c.l.b16 %v110
  %v551 = vunpack.c.l.b16 %v111
  %v552 = vunpack.c.l.b16 %v112
  %v553 = vunpack.c.l.b16 %v113
  %v554 = vunpack.c.l.b16 %v114
  %v555 = vunpack.c.l.b16 %v115
  %v556 = vunpack.c.l.b16 %v116
  %v557 = vunpack.c.l.b16 %v117
  %v558 = vunpack.c.l.b16 %v118
  %v559 = vunpack.c.l.b16 %v119
  %v560 = vunpack.c.l.b16 %v120
  %v561 = vunpack.c.l.b16 %v121
  %v562 = vunpack.c.l.b16 %v122
  %v563 = vunpack.c.l.b16 %v123
  %v564 = vunpack.c.l.b16 %v124
  %v565 = vunpack.c.l.b16 %v125
  %v566 = vunpack.c.l.b16 %v126
  %v567 = vunpack.c.l.b16 %v127
  %v568 = vunpack.c.l.b16 %v128
  %v569 = vunpack.c.l.b16 %v129
  %v570 = vunpack.c.l.b16 %v130
  %v571 = vunpack.c.l.b16 %v131
  %v572 = vunpack.c.l.b16 %v132
  %v573 = vunpack.c.l.b16 %v133
  %v574 = vunpack.c.l.b16 %v134
  %v575 = vunpack.c.l.b16 %v135
  %v576 = vunpack.c.l.b16 %v136
  %v577 = vunpack.c.l.b16 %v137
  %v578 = vpack.c.b16 %v507, %v506
  %v579 = vpack.c.b16 %v509, %v508
  %v580 = vpack.c.b16 %v511, %v510
  %v581 = vpack.c.b16 %v513, %v512
  %v582 = vpack.c.b16 %v515, %v514
  %v583 = vpack.c.b16 %v517, %v516
  %v584 = vpack.c.b16 %v519, %v518
  %v585 = vpack.c.b16 %v521, %v520
  %v586 = vpack.c.b16 %v523, %v522
  %v587 = vpack.c.b16 %v525, %v524
  %v588 = vpack.c.b16 %v527, %v526
  %v589 = vpack.c.b16 %v529, %v528
  %v590 = vpack.c.b16 %v531, %v530
  %v591 = vpack.c.b16 %v533, %v532
  %v592 = vpack.c.b16 %v535, %v534
  %v593 = vpack.c.b16 %v537, %v536
  %v594 = vpack.c.b16 %v539, %v538
  %v595 = vpack.c.b16 %v541, %v540
  %v596 = vpack.c.b16 %v543, %v542
  %v597 = vpack.c.b16 %v545, %v544
  %v598 = vpack.c.b16 %v547, %v546
  %v599 = vpack.c.b16 %v549, %v548
  %v600 = vpack.c.b16 %v551, %v550
  %v601 = vpack.c.b16 %v553, %v552
  %v602 = vpack.c.b16 %v555, %v554
  %v603 = vpack.c.b16 %v557, %v556
  %v604 = vpack.c.b16 %v559, %v558
  %v605 = vpack.c.b16 %v561, %v560
  %v606 = vpack.c.b16 %v563, %v562
  %v607 = vpack.c.b16 %v565, %v564
  %v608 = vpack.c.b16 %v567, %v566
  %v609 = vpack.c.b16 %v569, %v568
  %v610 = vpack.c.b16 %v571, %v570
  %v611 = vpack.c.b16 %v573, %v572
  %v612 = vpack.c.b16 %v575, %v574
  %v613 = vpack.c.b16 %v577, %v576
  %vm650 = vcmask 523264
  %v652 = vsel %vm650, %v366, 0
  %v655 = vsel %vm650, %v371, 0
  %v658 = vsel %vm650, %v376, 0
  %v661 = vsel %vm650, %v381, 0
  %v664 = vsel %vm650, %v386, 0
  %v667 = vsel %vm650, %v391, 0
  %v670 = vsel %vm650, %v396, 0
  %v673 = vsel %vm650, %v401, 0
  %675 = vmatprep.subr.bf16.mxu0 0
  %676 = vmatpush1.bf16.msra.mxu0 %v585
  %677 = vmatprep.subr.bf16.mxu0 0
  %678 = vmatpush1.bf16.msra.mxu0 %v584
  %679 = vmatprep.subr.bf16.mxu0 0
  %680 = vmatpush1.bf16.msra.mxu0 %v583
  %681 = vmatprep.subr.bf16.mxu0 0
  %682 = vmatpush1.bf16.msra.mxu0 %v582
  %683 = vmatprep.subr.bf16.mxu0 0
  %684 = vmatpush1.bf16.msra.mxu0 %v581
  %685 = vmatprep.subr.bf16.mxu0 0
  %686 = vmatpush1.bf16.msra.mxu0 %v580
  %687 = vmatprep.subr.bf16.mxu0 0
  %688 = vmatpush1.bf16.msra.mxu0 %v579
  %689 = vmatprep.subr.bf16.mxu0 0
  %690 = vmatpush1.bf16.msra.mxu0 %v578
  %691 = vmatprep.subr.bf16.mxu0 0
  %692 = vmatpush2.bf16.msra.mxu0 %v593
  %693 = vmatprep.subr.bf16.mxu0 0
  %694 = vmatpush2.bf16.msra.mxu0 %v592
  %695 = vmatprep.subr.bf16.mxu0 0
  %696 = vmatpush2.bf16.msra.mxu0 %v591
  %697 = vmatprep.subr.bf16.mxu0 0
  %698 = vmatpush2.bf16.msra.mxu0 %v590
  %699 = vmatprep.subr.bf16.mxu0 0
  %700 = vmatpush2.bf16.msra.mxu0 %v589
  %701 = vmatprep.subr.bf16.mxu0 0
  %702 = vmatpush2.bf16.msra.mxu0 %v588
  %703 = vmatprep.subr.bf16.mxu0 0
  %704 = vmatpush2.bf16.msra.mxu0 %v587
  %705 = vmatprep.subr.bf16.mxu0 0
  %706 = vmatpush2.bf16.msra.mxu0 %v586
  %707 = vmatprep.mubr.bf16.mxu0 %v363
  %708 = vmatmul.mubr.bf16.gmra.mxu0 %v362
  %v709 = vpop.f32.mrf.mxu0
  %v710 = vadd.f32 %v157, %v709
  %v711 = vpop.f32.mrf.mxu0
  %v712 = vpop.f32.mrf.mxu0
  %v713 = vadd.f32 %v162, %v712
  %v714 = vpop.f32.mrf.mxu0
  %715 = vmatprep.mubr.bf16.mxu0 %v368
  %716 = vmatmul.mubr.bf16.gmra.mxu0 %v367
  %v717 = vpop.f32.mrf.mxu0
  %v718 = vadd.f32 %v167, %v717
  %v719 = vpop.f32.mrf.mxu0
  %v720 = vpop.f32.mrf.mxu0
  %v721 = vadd.f32 %v172, %v720
  %v722 = vpop.f32.mrf.mxu0
  %723 = vmatprep.mubr.bf16.mxu0 %v373
  %724 = vmatmul.mubr.bf16.gmra.mxu0 %v372
  %v725 = vpop.f32.mrf.mxu0
  %v726 = vadd.f32 %v177, %v725
  %v727 = vpop.f32.mrf.mxu0
  %v728 = vpop.f32.mrf.mxu0
  %v729 = vadd.f32 %v182, %v728
  %v730 = vpop.f32.mrf.mxu0
  %731 = vmatprep.mubr.bf16.mxu0 %v378
  %732 = vmatmul.mubr.bf16.gmra.mxu0 %v377
  %v733 = vpop.f32.mrf.mxu0
  %v734 = vadd.f32 %v187, %v733
  %v735 = vpop.f32.mrf.mxu0
  %v736 = vpop.f32.mrf.mxu0
  %v737 = vadd.f32 %v192, %v736
  %v738 = vpop.f32.mrf.mxu0
  %739 = vmatprep.mubr.bf16.mxu0 %v383
  %740 = vmatmul.mubr.bf16.gmra.mxu0 %v382
  %v741 = vpop.f32.mrf.mxu0
  %v742 = vadd.f32 %v197, %v741
  %v743 = vpop.f32.mrf.mxu0
  %v744 = vpop.f32.mrf.mxu0
  %v745 = vadd.f32 %v202, %v744
  %v746 = vpop.f32.mrf.mxu0
  %747 = vmatprep.mubr.bf16.mxu0 %v388
  %748 = vmatmul.mubr.bf16.gmra.mxu0 %v387
  %v749 = vpop.f32.mrf.mxu0
  %v750 = vadd.f32 %v207, %v749
  %v751 = vpop.f32.mrf.mxu0
  %v752 = vpop.f32.mrf.mxu0
  %v753 = vadd.f32 %v212, %v752
  %v754 = vpop.f32.mrf.mxu0
  %755 = vmatprep.mubr.bf16.mxu0 %v393
  %756 = vmatmul.mubr.bf16.gmra.mxu0 %v392
  %v757 = vpop.f32.mrf.mxu0
  %v758 = vadd.f32 %v217, %v757
  %v759 = vpop.f32.mrf.mxu0
  %v760 = vpop.f32.mrf.mxu0
  %v761 = vadd.f32 %v222, %v760
  %v762 = vpop.f32.mrf.mxu0
  %763 = vmatprep.mubr.bf16.mxu0 %v398
  %764 = vmatmul.mubr.bf16.gmra.mxu0 %v397
  %v765 = vpop.f32.mrf.mxu0
  %v766 = vadd.f32 %v227, %v765
  %v767 = vpop.f32.mrf.mxu0
  %v768 = vpop.f32.mrf.mxu0
  %v769 = vadd.f32 %v232, %v768
  %v770 = vpop.f32.mrf.mxu0
  %771 = vdwg.mxu0
  %772 = vmatprep.subr.bf16.mxu0 0
  %773 = vmatpush1.bf16.msra.mxu0 %v601
  %774 = vmatprep.subr.bf16.mxu0 0
  %775 = vmatpush1.bf16.msra.mxu0 %v600
  %776 = vmatprep.subr.bf16.mxu0 0
  %777 = vmatpush1.bf16.msra.mxu0 %v599
  %778 = vmatprep.subr.bf16.mxu0 0
  %779 = vmatpush1.bf16.msra.mxu0 %v598
  %780 = vmatprep.subr.bf16.mxu0 0
  %781 = vmatpush1.bf16.msra.mxu0 %v597
  %782 = vmatprep.subr.bf16.mxu0 0
  %783 = vmatpush1.bf16.msra.mxu0 %v596
  %784 = vmatprep.subr.bf16.mxu0 0
  %785 = vmatpush1.bf16.msra.mxu0 %v595
  %786 = vmatprep.subr.bf16.mxu0 0
  %787 = vmatpush1.bf16.msra.mxu0 %v594
  %788 = vmatprep.subr.bf16.mxu0 0
  %789 = vmatpush2.bf16.msra.mxu0 %v609
  %790 = vmatprep.subr.bf16.mxu0 0
  %791 = vmatpush2.bf16.msra.mxu0 %v608
  %792 = vmatprep.subr.bf16.mxu0 0
  %793 = vmatpush2.bf16.msra.mxu0 %v607
  %794 = vmatprep.subr.bf16.mxu0 0
  %795 = vmatpush2.bf16.msra.mxu0 %v606
  %796 = vmatprep.subr.bf16.mxu0 0
  %797 = vmatpush2.bf16.msra.mxu0 %v605
  %798 = vmatprep.subr.bf16.mxu0 0
  %799 = vmatpush2.bf16.msra.mxu0 %v604
  %800 = vmatprep.subr.bf16.mxu0 0
  %801 = vmatpush2.bf16.msra.mxu0 %v603
  %802 = vmatprep.subr.bf16.mxu0 0
  %803 = vmatpush2.bf16.msra.mxu0 %v602
  %804 = vmatprep.mubr.bf16.mxu0 %v365
  %805 = vmatmul.mubr.bf16.gmra.mxu0 %v364
  %v806 = vpop.f32.mrf.mxu0
  %v807 = vadd.f32 %v710, %v806
  %v808 = vpop.f32.mrf.mxu0
  %v809 = vpop.f32.mrf.mxu0
  %v810 = vadd.f32 %v713, %v809
  %v811 = vpop.f32.mrf.mxu0
  %812 = vmatprep.mubr.bf16.mxu0 %v370
  %813 = vmatmul.mubr.bf16.gmra.mxu0 %v369
  %v814 = vpop.f32.mrf.mxu0
  %v815 = vadd.f32 %v718, %v814
  %v816 = vpop.f32.mrf.mxu0
  %v817 = vpop.f32.mrf.mxu0
  %v818 = vadd.f32 %v721, %v817
  %v819 = vpop.f32.mrf.mxu0
  %820 = vmatprep.mubr.bf16.mxu0 %v375
  %821 = vmatmul.mubr.bf16.gmra.mxu0 %v374
  %v822 = vpop.f32.mrf.mxu0
  %v823 = vadd.f32 %v726, %v822
  %v824 = vpop.f32.mrf.mxu0
  %v825 = vpop.f32.mrf.mxu0
  %v826 = vadd.f32 %v729, %v825
  %v827 = vpop.f32.mrf.mxu0
  %828 = vmatprep.mubr.bf16.mxu0 %v380
  %829 = vmatmul.mubr.bf16.gmra.mxu0 %v379
  %v830 = vpop.f32.mrf.mxu0
  %v831 = vadd.f32 %v734, %v830
  %v832 = vpop.f32.mrf.mxu0
  %v833 = vpop.f32.mrf.mxu0
  %v834 = vadd.f32 %v737, %v833
  %v835 = vpop.f32.mrf.mxu0
  %836 = vmatprep.mubr.bf16.mxu0 %v385
  %837 = vmatmul.mubr.bf16.gmra.mxu0 %v384
  %v838 = vpop.f32.mrf.mxu0
  %v839 = vadd.f32 %v742, %v838
  %v840 = vpop.f32.mrf.mxu0
  %v841 = vpop.f32.mrf.mxu0
  %v842 = vadd.f32 %v745, %v841
  %v843 = vpop.f32.mrf.mxu0
  %844 = vmatprep.mubr.bf16.mxu0 %v390
  %845 = vmatmul.mubr.bf16.gmra.mxu0 %v389
  %v846 = vpop.f32.mrf.mxu0
  %v847 = vadd.f32 %v750, %v846
  %v848 = vpop.f32.mrf.mxu0
  %v849 = vpop.f32.mrf.mxu0
  %v850 = vadd.f32 %v753, %v849
  %v851 = vpop.f32.mrf.mxu0
  %852 = vmatprep.mubr.bf16.mxu0 %v395
  %853 = vmatmul.mubr.bf16.gmra.mxu0 %v394
  %v854 = vpop.f32.mrf.mxu0
  %v855 = vadd.f32 %v758, %v854
  %v856 = vpop.f32.mrf.mxu0
  %v857 = vpop.f32.mrf.mxu0
  %v858 = vadd.f32 %v761, %v857
  %v859 = vpop.f32.mrf.mxu0
  %860 = vmatprep.mubr.bf16.mxu0 %v400
  %861 = vmatmul.mubr.bf16.gmra.mxu0 %v399
  %v862 = vpop.f32.mrf.mxu0
  %v863 = vadd.f32 %v766, %v862
  %v864 = vpop.f32.mrf.mxu0
  %v865 = vpop.f32.mrf.mxu0
  %v866 = vadd.f32 %v769, %v865
  %v867 = vpop.f32.mrf.mxu0
  %868 = vdwg.mxu0
  %869 = vmatprep.subr.bf16.mxu0 0
  %870 = vmatpush1.bf16.msra.mxu0 0
  %871 = vmatprep.subr.bf16.mxu0 0
  %872 = vmatpush1.bf16.msra.mxu0 0
  %873 = vmatprep.subr.bf16.mxu0 0
  %874 = vmatpush1.bf16.msra.mxu0 0
  %875 = vmatprep.subr.bf16.mxu0 0
  %876 = vmatpush1.bf16.msra.mxu0 0
  %877 = vmatprep.subr.bf16.mxu0 0
  %878 = vmatpush1.bf16.msra.mxu0 %v613
  %879 = vmatprep.subr.bf16.mxu0 0
  %880 = vmatpush1.bf16.msra.mxu0 %v612
  %881 = vmatprep.subr.bf16.mxu0 0
  %882 = vmatpush1.bf16.msra.mxu0 %v611
  %883 = vmatprep.subr.bf16.mxu0 0
  %884 = vmatpush1.bf16.msra.mxu0 %v610
  %885 = vmatprep.subr.bf16.mxu0 0
  %886 = vmatpush2.bf16.msra.mxu0 0
  %887 = vmatprep.subr.bf16.mxu0 0
  %888 = vmatpush2.bf16.msra.mxu0 0
  %889 = vmatprep.subr.bf16.mxu0 0
  %890 = vmatpush2.bf16.msra.mxu0 0
  %891 = vmatprep.subr.bf16.mxu0 0
  %892 = vmatpush2.bf16.msra.mxu0 0
  %893 = vmatprep.subr.bf16.mxu0 0
  %894 = vmatpush2.bf16.msra.mxu0 0
  %895 = vmatprep.subr.bf16.mxu0 0
  %896 = vmatpush2.bf16.msra.mxu0 0
  %897 = vmatprep.subr.bf16.mxu0 0
  %898 = vmatpush2.bf16.msra.mxu0 0
  %899 = vmatprep.subr.bf16.mxu0 0
  %900 = vmatpush2.bf16.msra.mxu0 0
  %901 = vmatprep.mubr.bf16.mxu0 0
  %902 = vmatmul.mubr.bf16.gmra.mxu0 %v652
  %v903 = vpop.f32.mrf.mxu0
  %v904 = vadd.f32 %v807, %v903
  %v905 = vpop.f32.mrf.mxu0
  %v906 = vpop.f32.mrf.mxu0
  %v907 = vadd.f32 %v810, %v906
  %v908 = vpop.f32.mrf.mxu0
  %909 = vmatprep.mubr.bf16.mxu0 0
  %910 = vmatmul.mubr.bf16.gmra.mxu0 %v655
  %v911 = vpop.f32.mrf.mxu0
  %v912 = vadd.f32 %v815, %v911
  %v913 = vpop.f32.mrf.mxu0
  %v914 = vpop.f32.mrf.mxu0
  %v915 = vadd.f32 %v818, %v914
  %v916 = vpop.f32.mrf.mxu0
  %917 = vmatprep.mubr.bf16.mxu0 0
  %918 = vmatmul.mubr.bf16.gmra.mxu0 %v658
  %v919 = vpop.f32.mrf.mxu0
  %v920 = vadd.f32 %v823, %v919
  %v921 = vpop.f32.mrf.mxu0
  %v922 = vpop.f32.mrf.mxu0
  %v923 = vadd.f32 %v826, %v922
  %v924 = vpop.f32.mrf.mxu0
  %925 = vmatprep.mubr.bf16.mxu0 0
  %926 = vmatmul.mubr.bf16.gmra.mxu0 %v661
  %v927 = vpop.f32.mrf.mxu0
  %v928 = vadd.f32 %v831, %v927
  %v929 = vpop.f32.mrf.mxu0
  %v930 = vpop.f32.mrf.mxu0
  %v931 = vadd.f32 %v834, %v930
  %v932 = vpop.f32.mrf.mxu0
  %933 = vmatprep.mubr.bf16.mxu0 0
  %934 = vmatmul.mubr.bf16.gmra.mxu0 %v664
  %v935 = vpop.f32.mrf.mxu0
  %v936 = vadd.f32 %v839, %v935
  %v937 = vpop.f32.mrf.mxu0
  %v938 = vpop.f32.mrf.mxu0
  %v939 = vadd.f32 %v842, %v938
  %v940 = vpop.f32.mrf.mxu0
  %941 = vmatprep.mubr.bf16.mxu0 0
  %942 = vmatmul.mubr.bf16.gmra.mxu0 %v667
  %v943 = vpop.f32.mrf.mxu0
  %v944 = vadd.f32 %v847, %v943
  %v945 = vpop.f32.mrf.mxu0
  %v946 = vpop.f32.mrf.mxu0
  %v947 = vadd.f32 %v850, %v946
  %v948 = vpop.f32.mrf.mxu0
  %949 = vmatprep.mubr.bf16.mxu0 0
  %950 = vmatmul.mubr.bf16.gmra.mxu0 %v670
  %v951 = vpop.f32.mrf.mxu0
  %v952 = vadd.f32 %v855, %v951
  %v953 = vpop.f32.mrf.mxu0
  %v954 = vpop.f32.mrf.mxu0
  %v955 = vadd.f32 %v858, %v954
  %v956 = vpop.f32.mrf.mxu0
  %957 = vmatprep.mubr.bf16.mxu0 0
  %958 = vmatmul.mubr.bf16.gmra.mxu0 %v673
  %v959 = vpop.f32.mrf.mxu0
  %v960 = vadd.f32 %v863, %v959
  %v961 = vpop.f32.mrf.mxu0
  %v962 = vpop.f32.mrf.mxu0
  %v963 = vadd.f32 %v866, %v962
  %v964 = vpop.f32.mrf.mxu0
  %965 = vdwg.mxu0
  %v966 = vmax.f32 %v904, 0.0
  %v967 = vmax.f32 %v907, 0.0
  %v968 = vmax.f32 %v912, 0.0
  %v969 = vmax.f32 %v915, 0.0
  %v970 = vmax.f32 %v920, 0.0
  %v971 = vmax.f32 %v923, 0.0
  %v972 = vmax.f32 %v928, 0.0
  %v973 = vmax.f32 %v931, 0.0
  %v974 = vmax.f32 %v936, 0.0
  %v975 = vmax.f32 %v939, 0.0
  %v976 = vmax.f32 %v944, 0.0
  %v977 = vmax.f32 %v947, 0.0
  %v978 = vmax.f32 %v952, 0.0
  %v979 = vmax.f32 %v955, 0.0
  %v980 = vmax.f32 %v960, 0.0
  %v981 = vmax.f32 %v963, 0.0
  %v982 = vpack.c.bf16 %v967, %v966
  %v983 = vpack.c.bf16 %v969, %v968
  %v984 = vpack.c.bf16 %v971, %v970
  %v985 = vpack.c.bf16 %v973, %v972
  %v986 = vpack.c.bf16 %v975, %v974
  %v987 = vpack.c.bf16 %v977, %v976
  %v988 = vpack.c.bf16 %v979, %v978
  %v989 = vpack.c.bf16 %v981, %v980
  %v998 = vunpack.c.l.b16 %v982
  %v999 = vunpack.c.h.b16 %v982
  %v1000 = vunpack.c.l.b16 %v983
  %v1001 = vunpack.c.h.b16 %v983
  %v1002 = vunpack.c.l.b16 %v984
  %v1003 = vunpack.c.h.b16 %v984
  %v1004 = vunpack.c.l.b16 %v985
  %v1005 = vunpack.c.h.b16 %v985
  %v1006 = vunpack.c.l.b16 %v986
  %v1007 = vunpack.c.h.b16 %v986
  %v1008 = vunpack.c.l.b16 %v987
  %v1009 = vunpack.c.h.b16 %v987
  %v1010 = vunpack.c.l.b16 %v988
  %v1011 = vunpack.c.h.b16 %v988
  %v1012 = vunpack.c.l.b16 %v989
  %v1013 = vunpack.c.h.b16 %v989
  %v1014 = vpack.c.b16 %v998, %v998
  %v1015 = vpack.c.b16 %v999, %v999
  %v1016 = vpack.c.b16 %v1000, %v1000
  %v1017 = vpack.c.b16 %v1001, %v1001
  %v1018 = vpack.c.b16 %v1002, %v1002
  %v1019 = vpack.c.b16 %v1003, %v1003
  %v1020 = vpack.c.b16 %v1004, %v1004
  %v1021 = vpack.c.b16 %v1005, %v1005
  %v1022 = vpack.c.b16 %v1006, %v1006
  %v1023 = vpack.c.b16 %v1007, %v1007
  %v1024 = vpack.c.b16 %v1008, %v1008
  %v1025 = vpack.c.b16 %v1009, %v1009
  %v1026 = vpack.c.b16 %v1010, %v1010
  %v1027 = vpack.c.b16 %v1011, %v1011
  %v1028 = vpack.c.b16 %v1012, %v1012
  %v1029 = vpack.c.b16 %v1013, %v1013
  %1046 = vst [vmem:[%s3] sm:$0xf] %v1014
  %1047 = vst [vmem:[%s3 + $0x4] sm:$0xf] %v1015
  %1048 = vst [vmem:[%s3 + $0x8] sm:$0xf] %v1016
  %1049 = vst [vmem:[%s3 + $0xc] sm:$0xf] %v1017
  %1050 = vst [vmem:[%s3 + $0x10] sm:$0xf] %v1018
  %1051 = vst [vmem:[%s3 + $0x14] sm:$0xf] %v1019
  %1052 = vst [vmem:[%s3 + $0x18] sm:$0xf] %v1020
  %1053 = vst [vmem:[%s3 + $0x1c] sm:$0xf] %v1021
  %1054 = vst [vmem:[%s3 + $0x20] sm:$0xf] %v1022
  %1055 = vst [vmem:[%s3 + $0x24] sm:$0xf] %v1023
  %1056 = vst [vmem:[%s3 + $0x28] sm:$0xf] %v1024
  %1057 = vst [vmem:[%s3 + $0x2c] sm:$0xf] %v1025
  %1058 = vst [vmem:[%s3 + $0x30] sm:$0xf] %v1026
  %1059 = vst [vmem:[%s3 + $0x34] sm:$0xf] %v1027
  %1060 = vst [vmem:[%s3 + $0x38] sm:$0xf] %v1028
  %1061 = vst [vmem:[%s3 + $0x3c] sm:$0xf] %v1029
  %s1062 = smul.u32 0, 128
  %v1063 = vlaneseq
  %v1064 = vand.u32 %v1063, 127
  %v1065 = vstv %s1062
  %v1066 = vadd.s32 %v1065, %v1064
  %vm1067 = vcmp.lt.s32.totalorder %v1066, 8
  %v1068 = vsel %vm1067, %v966, 0.0
  %v1069 = vsel %vm1067, %v967, 0.0
  %v1070 = vsel %vm1067, %v968, 0.0
  %v1071 = vsel %vm1067, %v969, 0.0
  %v1072 = vsel %vm1067, %v970, 0.0
  %v1073 = vsel %vm1067, %v971, 0.0
  %v1074 = vsel %vm1067, %v972, 0.0
  %v1075 = vsel %vm1067, %v973, 0.0
  %v1076 = vsel %vm1067, %v974, 0.0
  %v1077 = vsel %vm1067, %v975, 0.0
  %v1078 = vsel %vm1067, %v976, 0.0
  %v1079 = vsel %vm1067, %v977, 0.0
  %v1080 = vsel %vm1067, %v978, 0.0
  %v1081 = vsel %vm1067, %v979, 0.0
  %v1082 = vsel %vm1067, %v980, 0.0
  %v1083 = vsel %vm1067, %v981, 0.0
  %1084 = vadd.xlane.f32.xlu0 %v1068
  %v1085 = vpop.xlane.xlu0 %1084
  %1086 = vadd.xlane.f32.xlu0 %v1069
  %v1087 = vpop.xlane.xlu0 %1086
  %1088 = vadd.xlane.f32.xlu0 %v1070
  %v1089 = vpop.xlane.xlu0 %1088
  %1090 = vadd.xlane.f32.xlu0 %v1071
  %v1091 = vpop.xlane.xlu0 %1090
  %1092 = vadd.xlane.f32.xlu0 %v1072
  %v1093 = vpop.xlane.xlu0 %1092
  %1094 = vadd.xlane.f32.xlu0 %v1073
  %v1095 = vpop.xlane.xlu0 %1094
  %1096 = vadd.xlane.f32.xlu0 %v1074
  %v1097 = vpop.xlane.xlu0 %1096
  %1098 = vadd.xlane.f32.xlu0 %v1075
  %v1099 = vpop.xlane.xlu0 %1098
  %1100 = vadd.xlane.f32.xlu0 %v1076
  %v1101 = vpop.xlane.xlu0 %1100
  %1102 = vadd.xlane.f32.xlu0 %v1077
  %v1103 = vpop.xlane.xlu0 %1102
  %1104 = vadd.xlane.f32.xlu0 %v1078
  %v1105 = vpop.xlane.xlu0 %1104
  %1106 = vadd.xlane.f32.xlu0 %v1079
  %v1107 = vpop.xlane.xlu0 %1106
  %1108 = vadd.xlane.f32.xlu0 %v1080
  %v1109 = vpop.xlane.xlu0 %1108
  %1110 = vadd.xlane.f32.xlu0 %v1081
  %v1111 = vpop.xlane.xlu0 %1110
  %1112 = vadd.xlane.f32.xlu0 %v1082
  %v1113 = vpop.xlane.xlu0 %1112
  %1114 = vadd.xlane.f32.xlu0 %v1083
  %v1115 = vpop.xlane.xlu0 %1114
  %vm1116 = vcmask 7168
  %1117 = vst.msk [vmem:[%s4] sm:$0xff] %vm1116, %v1085
  %1118 = vst.msk [vmem:[%s4 + $0x8] sm:$0xff] %vm1116, %v1087
  %1119 = vst.msk [vmem:[%s4 + $0x10] sm:$0xff] %vm1116, %v1089
  %1120 = vst.msk [vmem:[%s4 + $0x18] sm:$0xff] %vm1116, %v1091
  %1121 = vst.msk [vmem:[%s4 + $0x20] sm:$0xff] %vm1116, %v1093
  %1122 = vst.msk [vmem:[%s4 + $0x28] sm:$0xff] %vm1116, %v1095
  %1123 = vst.msk [vmem:[%s4 + $0x30] sm:$0xff] %vm1116, %v1097
  %1124 = vst.msk [vmem:[%s4 + $0x38] sm:$0xff] %vm1116, %v1099
  %1125 = vst.msk [vmem:[%s4 + $0x40] sm:$0xff] %vm1116, %v1101
  %1126 = vst.msk [vmem:[%s4 + $0x48] sm:$0xff] %vm1116, %v1103
  %1127 = vst.msk [vmem:[%s4 + $0x50] sm:$0xff] %vm1116, %v1105
  %1128 = vst.msk [vmem:[%s4 + $0x58] sm:$0xff] %vm1116, %v1107
  %1129 = vst.msk [vmem:[%s4 + $0x60] sm:$0xff] %vm1116, %v1109
  %1130 = vst.msk [vmem:[%s4 + $0x68] sm:$0xff] %vm1116, %v1111
  %1131 = vst.msk [vmem:[%s4 + $0x70] sm:$0xff] %vm1116, %v1113
  %1132 = vst.msk [vmem:[%s4 + $0x78] sm:$0xff] %vm1116, %v1115
  %v1133 = vmul.f32 %v1068, %v1068
  %v1134 = vmul.f32 %v1069, %v1069
  %v1135 = vmul.f32 %v1070, %v1070
  %v1136 = vmul.f32 %v1071, %v1071
  %v1137 = vmul.f32 %v1072, %v1072
  %v1138 = vmul.f32 %v1073, %v1073
  %v1139 = vmul.f32 %v1074, %v1074
  %v1140 = vmul.f32 %v1075, %v1075
  %v1141 = vmul.f32 %v1076, %v1076
  %v1142 = vmul.f32 %v1077, %v1077
  %v1143 = vmul.f32 %v1078, %v1078
  %v1144 = vmul.f32 %v1079, %v1079
  %v1145 = vmul.f32 %v1080, %v1080
  %v1146 = vmul.f32 %v1081, %v1081
  %v1147 = vmul.f32 %v1082, %v1082
  %v1148 = vmul.f32 %v1083, %v1083
  %1149 = vadd.xlane.f32.xlu0 %v1133
  %v1150 = vpop.xlane.xlu0 %1149
  %1151 = vadd.xlane.f32.xlu0 %v1134
  %v1152 = vpop.xlane.xlu0 %1151
  %1153 = vadd.xlane.f32.xlu0 %v1135
  %v1154 = vpop.xlane.xlu0 %1153
  %1155 = vadd.xlane.f32.xlu0 %v1136
  %v1156 = vpop.xlane.xlu0 %1155
  %1157 = vadd.xlane.f32.xlu0 %v1137
  %v1158 = vpop.xlane.xlu0 %1157
  %1159 = vadd.xlane.f32.xlu0 %v1138
  %v1160 = vpop.xlane.xlu0 %1159
  %1161 = vadd.xlane.f32.xlu0 %v1139
  %v1162 = vpop.xlane.xlu0 %1161
  %1163 = vadd.xlane.f32.xlu0 %v1140
  %v1164 = vpop.xlane.xlu0 %1163
  %1165 = vadd.xlane.f32.xlu0 %v1141
  %v1166 = vpop.xlane.xlu0 %1165
  %1167 = vadd.xlane.f32.xlu0 %v1142
  %v1168 = vpop.xlane.xlu0 %1167
  %1169 = vadd.xlane.f32.xlu0 %v1143
  %v1170 = vpop.xlane.xlu0 %1169
  %1171 = vadd.xlane.f32.xlu0 %v1144
  %v1172 = vpop.xlane.xlu0 %1171
  %1173 = vadd.xlane.f32.xlu0 %v1145
  %v1174 = vpop.xlane.xlu0 %1173
  %1175 = vadd.xlane.f32.xlu0 %v1146
  %v1176 = vpop.xlane.xlu0 %1175
  %1177 = vadd.xlane.f32.xlu0 %v1147
  %v1178 = vpop.xlane.xlu0 %1177
  %1179 = vadd.xlane.f32.xlu0 %v1148
  %v1180 = vpop.xlane.xlu0 %1179
  %1181 = vst.msk [vmem:[%s5] sm:$0xff] %vm1116, %v1150
  %1182 = vst.msk [vmem:[%s5 + $0x8] sm:$0xff] %vm1116, %v1152
  %1183 = vst.msk [vmem:[%s5 + $0x10] sm:$0xff] %vm1116, %v1154
  %1184 = vst.msk [vmem:[%s5 + $0x18] sm:$0xff] %vm1116, %v1156
  %1185 = vst.msk [vmem:[%s5 + $0x20] sm:$0xff] %vm1116, %v1158
  %1186 = vst.msk [vmem:[%s5 + $0x28] sm:$0xff] %vm1116, %v1160
  %1187 = vst.msk [vmem:[%s5 + $0x30] sm:$0xff] %vm1116, %v1162
  %1188 = vst.msk [vmem:[%s5 + $0x38] sm:$0xff] %vm1116, %v1164
  %1189 = vst.msk [vmem:[%s5 + $0x40] sm:$0xff] %vm1116, %v1166
  %1190 = vst.msk [vmem:[%s5 + $0x48] sm:$0xff] %vm1116, %v1168
  %1191 = vst.msk [vmem:[%s5 + $0x50] sm:$0xff] %vm1116, %v1170
  %1192 = vst.msk [vmem:[%s5 + $0x58] sm:$0xff] %vm1116, %v1172
  %1193 = vst.msk [vmem:[%s5 + $0x60] sm:$0xff] %vm1116, %v1174
  %1194 = vst.msk [vmem:[%s5 + $0x68] sm:$0xff] %vm1116, %v1176
  %1195 = vst.msk [vmem:[%s5 + $0x70] sm:$0xff] %vm1116, %v1178
  %1196 = vst.msk [vmem:[%s5 + $0x78] sm:$0xff] %vm1116, %v1180
  // Predicated region
  $region14: #{generator2_forward.6} parent=0 // pred_check
    _
  $region15: #{generator2_forward.6} parent=0 // pred_check_branch
    %1198 = sbr.rel (0) target = $region17
  $region16: #{generator2_forward.6} parent=0 // pred_region
    _
  $region17: #{generator2_forward.6} parent=0 // pred_fallthru
    _
  // Predicated region
  $region18: #{generator2_forward.6} parent=0 // pred_check
    _
  $region19: #{generator2_forward.6} parent=0 // pred_check_branch
    %1200 = sbr.rel (0) target = $region21
  $region20: #{generator2_forward.6} parent=0 // pred_region
    _
  $region21: #{generator2_forward.6} parent=0 // pred_fallthru
    _
  // Predicated region
  $region22: #{generator2_forward.6} parent=0 // pred_check
    _
  $region23: #{generator2_forward.6} parent=0 // pred_check_branch
    %1202 = sbr.rel (0) target = $region25
  $region24: #{generator2_forward.6} parent=0 // pred_region
    _
  $region25: #{generator2_forward.6} parent=0 // pred_fallthru
    _
  // Predicated region
  $region26: #{generator2_forward.6} parent=0 // pred_check
    _
  $region27: #{generator2_forward.6} parent=0 // pred_check_branch
    %1204 = sbr.rel (0) target = $region29
  $region28: #{generator2_forward.6} parent=0 // pred_region
    _
  $region29: #{generator2_forward.6} parent=0 // pred_fallthru
    _
  // Predicated region
  $region30: #{generator2_forward.6} parent=0 // pred_check
    _
  $region31: #{generator2_forward.6} parent=0 // pred_check_branch
    %1206 = sbr.rel (0) target = $region33
  $region32: #{generator2_forward.6} parent=0 // pred_region
    _
  $region33: #{generator2_forward.6} parent=0 // pred_fallthru
    _
  // Predicated region
  $region34: #{generator2_forward.6} parent=0 // pred_check
    _
  $region35: #{generator2_forward.6} parent=0 // pred_check_branch
    %1208 = sbr.rel (0) target = $region37
  $region36: #{generator2_forward.6} parent=0 // pred_region
    _
  $region37: #{generator2_forward.6} parent=0 // pred_fallthru
    _

// kernel: tile.61
$region0: #{tile.61}
  #allocation0 [shape = 's32[1]{0}', space=sflag, size = 0x4, scoped, tag = 'scoped memory for tile.61']
  %s0 = inlined_call_operand.vmem [shape: f32[16], index: 0, kind: input, shape index: {}]
  %s1 = inlined_call_operand.vmem [shape: f32[4,16], index: 1, kind: output, shape index: {}]
  // Predicated region
  $region2: #{tile.61} parent=0 // pred_check
    _
  $region3: #{tile.61} parent=0 // pred_check_branch
    %3 = sbr.rel (0) target = $region5
  $region4: #{tile.61} parent=0 // pred_region
    _
  $region5: #{tile.61} parent=0 // pred_fallthru
    _
  %v4 = vld [vmem:[%s0] ss:$0 sm:$0xff]
  %5 = vst [vmem:[%s1] sm:$0xf] %v4

// kernel: tile.82
$region0: #{tile.82}
  #allocation0 [shape = 's32[1]{0}', space=sflag, size = 0x4, scoped, tag = 'scoped memory for tile.82']
  %s0 = inlined_call_operand.vmem [shape: f32[16], index: 0, kind: input, shape index: {}]
  %s1 = inlined_call_operand.vmem [shape: f32[9,16], index: 1, kind: output, shape index: {}]
  // Predicated region
  $region2: #{tile.82} parent=0 // pred_check
    _
  $region3: #{tile.82} parent=0 // pred_check_branch
    %3 = sbr.rel (0) target = $region5
  $region4: #{tile.82} parent=0 // pred_region
    _
  $region5: #{tile.82} parent=0 // pred_fallthru
    _
  %v4 = vld [vmem:[%s0] ss:$0 sm:$0xff]
  %5 = vst [vmem:[%s1] sm:$0xff] %v4
  %s6 = scalar_lea.vmem %s1, 8
  %7 = vst [vmem:[%s6] sm:$0xff] %v4

// kernel: mul.27
$region0: #{mul.27}
  %s0 = inlined_call_operand.vmem [shape: f32[9,16], index: 0, kind: input, shape index: {}]
  %s1 = inlined_call_operand.vmem [shape: f32[144], index: 1, kind: output, shape index: {}]
  $region1: #{mul.27} parent=0
    #allocation0 [shape = 'u8[4096]{0}', space=vmem, size = 0x1000, scoped, tag = 'scoped mem for output reshape']
    %s2 = smov 3
    %v3 = vld [vmem:[%s0] ss:$8 sm:%s2]
    %vm4 = vcmask 130048
    %5 = vst.msk [vmem:[#allocation0] sm:$0x3] %vm4, %v3
    %s6 = scalar_lea.vmem %s0, 7
    %v7 = vld [vmem:[%s6] sm:$0x1]
    %8 = vrot.lane.b32.xlu0 %v7, 112
    %v9 = vpop.permute.xlu0 %8
    %vm10 = vcmask 1048448
    %11 = vst.msk [vmem:[#allocation0] sm:$0x1] %vm10, %v9
    %s12 = scalar_lea.vmem %s0, 6
    %v13 = vld [vmem:[%s12] sm:$0x1]
    %14 = vrot.lane.b32.xlu0 %v13, 96
    %v15 = vpop.permute.xlu0 %14
    %vm16 = vcmask 917248
    %17 = vst.msk [vmem:[#allocation0] sm:$0x1] %vm16, %v15
    %s18 = scalar_lea.vmem %s0, 5
    %v19 = vld [vmem:[%s18] sm:$0x1]
    %20 = vrot.lane.b32.xlu0 %v19, 80
    %v21 = vpop.permute.xlu0 %20
    %vm22 = vcmask 786048
    %23 = vst.msk [vmem:[#allocation0] sm:$0x1] %vm22, %v21
    %s24 = scalar_lea.vmem %s0, 4
    %v25 = vld [vmem:[%s24] sm:$0x1]
    %26 = vrot.lane.b32.xlu0 %v25, 64
    %v27 = vpop.permute.xlu0 %26
    %vm28 = vcmask 654848
    %29 = vst.msk [vmem:[#allocation0] sm:$0x1] %vm28, %v27
    %s30 = scalar_lea.vmem %s0, 3
    %v31 = vld [vmem:[%s30] sm:$0x1]
    %32 = vrot.lane.b32.xlu0 %v31, 48
    %v33 = vpop.permute.xlu0 %32
    %vm34 = vcmask 523648
    %35 = vst.msk [vmem:[#allocation0] sm:$0x1] %vm34, %v33
    %s36 = scalar_lea.vmem %s0, 2
    %v37 = vld [vmem:[%s36] sm:$0x1]
    %38 = vrot.lane.b32.xlu0 %v37, 32
    %v39 = vpop.permute.xlu0 %38
    %vm40 = vcmask 392448
    %41 = vst.msk [vmem:[#allocation0] sm:$0x1] %vm40, %v39
    %s42 = scalar_lea.vmem %s0, 1
    %v43 = vld [vmem:[%s42] sm:$0x1]
    %44 = vrot.lane.b32.xlu0 %v43, 16
    %v45 = vpop.permute.xlu0 %44
    %vm46 = vcmask 261248
    %47 = vst.msk [vmem:[#allocation0] sm:$0x1] %vm46, %v45
    %s49 = sshll.u32 1, 2
    %s50 = ssub.s32 %s49, 1
    %v52 = vld [vmem:[#allocation0] sm:%s50]
    %s53 = sshll.u32 1, 2
    %s54 = ssub.s32 %s53, 1
    %55 = vst [vmem:[%s1] sm:%s54] %v52

// kernel: generator2_forward.7
$region0: #{generator2_forward.7}
  #allocation0 [shape = 'u32[]', space=smem, size = 0x4, offset = 0x4, fixed_abs, tag = 'smem constant byte address 0x4 - core index']
  #allocation1 [shape = 'u32[144,128]{1,0:T(1,128)}', space=vmem, size = 0x12000, scoped, tag = 'internal scratch']
  %s0 = inlined_call_operand.vmem [shape: bf16[64,288], index: 0, kind: input, shape index: {}]
  %s1 = inlined_call_operand.vmem [shape: f32[64,1], index: 1, kind: input, shape index: {}]
  %s2 = inlined_call_operand.vmem [shape: bf16[288,128], index: 2, kind: input, shape index: {}]
  %s3 = inlined_call_operand.vmem [shape: bf16[64,128], index: 3, kind: output, shape index: {0}]
  %s4 = inlined_call_operand.vmem [shape: f32[1,64,1], index: 4, kind: output, shape index: {1}]
  %s5 = inlined_call_operand.vmem [shape: f32[1,64,1], index: 5, kind: output, shape index: {2}]
  %6 = xla_tuple %s3, %s4, %s5
  %s7 = sld [smem:[#allocation0]]
  $region38: #{generator2_forward.7} parent=0
    _
  %s9 = ssub.s32 1, %s7
  %s10 = scalar_select 0, %s9, %s7
  // Predicated region
  $region2: #{generator2_forward.7} parent=0 // pred_check
    _
  $region3: #{generator2_forward.7} parent=0 // pred_check_branch
    %12 = sbr.rel (0) target = $region5
  $region4: #{generator2_forward.7} parent=0 // pred_region
    _
  $region5: #{generator2_forward.7} parent=0 // pred_fallthru
    _
  // Predicated region
  $region6: #{generator2_forward.7} parent=0 // pred_check
    _
  $region7: #{generator2_forward.7} parent=0 // pred_check_branch
    %14 = sbr.rel (0) target = $region9
  $region8: #{generator2_forward.7} parent=0 // pred_region
    _
  $region9: #{generator2_forward.7} parent=0 // pred_fallthru
    _
  // Predicated region
  $region10: #{generator2_forward.7} parent=0 // pred_check
    _
  $region11: #{generator2_forward.7} parent=0 // pred_check_branch
    %16 = sbr.rel (0) target = $region13
  $region12: #{generator2_forward.7} parent=0 // pred_region
    _
  $region13: #{generator2_forward.7} parent=0 // pred_fallthru
    _
  %v18 = vld [vmem:[%s0] sm:$0xff]
  %v19 = vld [vmem:[%s0 + $0x8] sm:$0xf]
  %v20 = vld [vmem:[%s0 + $0xc] sm:$0xff]
  %v21 = vld [vmem:[%s0 + $0x14] sm:$0xf]
  %v22 = vld [vmem:[%s0 + $0x18] sm:$0xff]
  %v23 = vld [vmem:[%s0 + $0x20] sm:$0xf]
  %v24 = vld [vmem:[%s0 + $0x24] sm:$0xff]
  %v25 = vld [vmem:[%s0 + $0x2c] sm:$0xf]
  %v26 = vld [vmem:[%s0 + $0x30] sm:$0xff]
  %v27 = vld [vmem:[%s0 + $0x38] sm:$0xf]
  %v28 = vld [vmem:[%s0 + $0x3c] sm:$0xff]
  %v29 = vld [vmem:[%s0 + $0x44] sm:$0xf]
  %v30 = vld [vmem:[%s0 + $0x48] sm:$0xff]
  %v31 = vld [vmem:[%s0 + $0x50] sm:$0xf]
  %v32 = vld [vmem:[%s0 + $0x54] sm:$0xff]
  %v33 = vld [vmem:[%s0 + $0x5c] sm:$0xf]
  %v34 = vld [vmem:[%s2] sm:$0xf]
  %v35 = vld [vmem:[%s2 + $0x4] sm:$0xf]
  %v36 = vld [vmem:[%s2 + $0x8] sm:$0xf]
  %v37 = vld [vmem:[%s2 + $0xc] sm:$0xf]
  %v38 = vld [vmem:[%s2 + $0x10] sm:$0xf]
  %v39 = vld [vmem:[%s2 + $0x14] sm:$0xf]
  %v40 = vld [vmem:[%s2 + $0x18] sm:$0xf]
  %v41 = vld [vmem:[%s2 + $0x1c] sm:$0xf]
  %v42 = vld [vmem:[%s2 + $0x20] sm:$0xf]
  %v43 = vld [vmem:[%s2 + $0x24] sm:$0xf]
  %v44 = vld [vmem:[%s2 + $0x28] sm:$0xf]
  %v45 = vld [vmem:[%s2 + $0x2c] sm:$0xf]
  %v46 = vld [vmem:[%s2 + $0x30] sm:$0xf]
  %v47 = vld [vmem:[%s2 + $0x34] sm:$0xf]
  %v48 = vld [vmem:[%s2 + $0x38] sm:$0xf]
  %v49 = vld [vmem:[%s2 + $0x3c] sm:$0xf]
  %v50 = vld [vmem:[%s2 + $0x40] sm:$0xf]
  %v51 = vld [vmem:[%s2 + $0x44] sm:$0xf]
  %v52 = vld [vmem:[%s2 + $0x48] sm:$0xf]
  %v53 = vld [vmem:[%s2 + $0x4c] sm:$0xf]
  %v54 = vld [vmem:[%s2 + $0x50] sm:$0xf]
  %v55 = vld [vmem:[%s2 + $0x54] sm:$0xf]
  %v56 = vld [vmem:[%s2 + $0x58] sm:$0xf]
  %v57 = vld [vmem:[%s2 + $0x5c] sm:$0xf]
  %v58 = vld [vmem:[%s2 + $0x60] sm:$0xf]
  %v59 = vld [vmem:[%s2 + $0x64] sm:$0xf]
  %v60 = vld [vmem:[%s2 + $0x68] sm:$0xf]
  %v61 = vld [vmem:[%s2 + $0x6c] sm:$0xf]
  %v62 = vld [vmem:[%s2 + $0x70] sm:$0xf]
  %v63 = vld [vmem:[%s2 + $0x74] sm:$0xf]
  %v64 = vld [vmem:[%s2 + $0x78] sm:$0xf]
  %v65 = vld [vmem:[%s2 + $0x7c] sm:$0xf]
  %v66 = vld [vmem:[%s2 + $0x80] sm:$0xf]
  %v67 = vld [vmem:[%s2 + $0x84] sm:$0xf]
  %v68 = vld [vmem:[%s2 + $0x88] sm:$0xf]
  %v69 = vld [vmem:[%s2 + $0x8c] sm:$0xf]
  %v70 = vld [vmem:[%s1] sm:$0xff]
  %v71 = vld [vmem:[%s1 + $0x8] sm:$0xff]
  %v72 = vld [vmem:[%s1 + $0x10] sm:$0xff]
  %v73 = vld [vmem:[%s1 + $0x18] sm:$0xff]
  %v74 = vld [vmem:[%s1 + $0x20] sm:$0xff]
  %v75 = vld [vmem:[%s1 + $0x28] sm:$0xff]
  %v76 = vld [vmem:[%s1 + $0x30] sm:$0xff]
  %v77 = vld [vmem:[%s1 + $0x38] sm:$0xff]
  %79 = vset.pattern.permute.xlu0 0
  %80 = vperm.xlu0 %79, %v70
  %v81 = vpop.permute.xlu0 %80
  %84 = vset.pattern.permute.xlu0 0
  %85 = vperm.xlu0 %84, %v71
  %v86 = vpop.permute.xlu0 %85
  %89 = vset.pattern.permute.xlu0 0
  %90 = vperm.xlu0 %89, %v72
  %v91 = vpop.permute.xlu0 %90
  %94 = vset.pattern.permute.xlu0 0
  %95 = vperm.xlu0 %94, %v73
  %v96 = vpop.permute.xlu0 %95
  %99 = vset.pattern.permute.xlu0 0
  %100 = vperm.xlu0 %99, %v74
  %v101 = vpop.permute.xlu0 %100
  %104 = vset.pattern.permute.xlu0 0
  %105 = vperm.xlu0 %104, %v75
  %v106 = vpop.permute.xlu0 %105
  %109 = vset.pattern.permute.xlu0 0
  %110 = vperm.xlu0 %109, %v76
  %v111 = vpop.permute.xlu0 %110
  %114 = vset.pattern.permute.xlu0 0
  %115 = vperm.xlu0 %114, %v77
  %v116 = vpop.permute.xlu0 %115
  %v134 = vunpack.c.l.b16 %v18
  %v135 = vunpack.c.h.b16 %v18
  %v136 = vunpack.c.l.b16 %v19
  %v137 = vunpack.c.l.b16 %v20
  %v138 = vunpack.c.h.b16 %v20
  %v139 = vunpack.c.l.b16 %v21
  %v140 = vunpack.c.l.b16 %v22
  %v141 = vunpack.c.h.b16 %v22
  %v142 = vunpack.c.l.b16 %v23
  %v143 = vunpack.c.l.b16 %v24
  %v144 = vunpack.c.h.b16 %v24
  %v145 = vunpack.c.l.b16 %v25
  %v146 = vunpack.c.l.b16 %v26
  %v147 = vunpack.c.h.b16 %v26
  %v148 = vunpack.c.l.b16 %v27
  %v149 = vunpack.c.l.b16 %v28
  %v150 = vunpack.c.h.b16 %v28
  %v151 = vunpack.c.l.b16 %v29
  %v152 = vunpack.c.l.b16 %v30
  %v153 = vunpack.c.h.b16 %v30
  %v154 = vunpack.c.l.b16 %v31
  %v155 = vunpack.c.l.b16 %v32
  %v156 = vunpack.c.h.b16 %v32
  %v157 = vunpack.c.l.b16 %v33
  %v158 = vpack.c.b16 %v137, %v134
  %v159 = vpack.c.b16 %v138, %v135
  %v160 = vpack.c.b16 %v139, %v136
  %v161 = vpack.c.b16 %v143, %v140
  %v162 = vpack.c.b16 %v144, %v141
  %v163 = vpack.c.b16 %v145, %v142
  %v164 = vpack.c.b16 %v149, %v146
  %v165 = vpack.c.b16 %v150, %v147
  %v166 = vpack.c.b16 %v151, %v148
  %v167 = vpack.c.b16 %v155, %v152
  %v168 = vpack.c.b16 %v156, %v153
  %v169 = vpack.c.b16 %v157, %v154
  %v214 = vunpack.c.l.b16 %v34
  %v215 = vunpack.c.l.b16 %v35
  %v216 = vunpack.c.l.b16 %v36
  %v217 = vunpack.c.l.b16 %v37
  %v218 = vunpack.c.l.b16 %v38
  %v219 = vunpack.c.l.b16 %v39
  %v220 = vunpack.c.l.b16 %v40
  %v221 = vunpack.c.l.b16 %v41
  %v222 = vunpack.c.l.b16 %v42
  %v223 = vunpack.c.l.b16 %v43
  %v224 = vunpack.c.l.b16 %v44
  %v225 = vunpack.c.l.b16 %v45
  %v226 = vunpack.c.l.b16 %v46
  %v227 = vunpack.c.l.b16 %v47
  %v228 = vunpack.c.l.b16 %v48
  %v229 = vunpack.c.l.b16 %v49
  %v230 = vunpack.c.l.b16 %v50
  %v231 = vunpack.c.l.b16 %v51
  %v232 = vunpack.c.l.b16 %v52
  %v233 = vunpack.c.l.b16 %v53
  %v234 = vunpack.c.l.b16 %v54
  %v235 = vunpack.c.l.b16 %v55
  %v236 = vunpack.c.l.b16 %v56
  %v237 = vunpack.c.l.b16 %v57
  %v238 = vunpack.c.l.b16 %v58
  %v239 = vunpack.c.l.b16 %v59
  %v240 = vunpack.c.l.b16 %v60
  %v241 = vunpack.c.l.b16 %v61
  %v242 = vunpack.c.l.b16 %v62
  %v243 = vunpack.c.l.b16 %v63
  %v244 = vunpack.c.l.b16 %v64
  %v245 = vunpack.c.l.b16 %v65
  %v246 = vunpack.c.l.b16 %v66
  %v247 = vunpack.c.l.b16 %v67
  %v248 = vunpack.c.l.b16 %v68
  %v249 = vunpack.c.l.b16 %v69
  %v250 = vpack.c.b16 %v215, %v214
  %v251 = vpack.c.b16 %v217, %v216
  %v252 = vpack.c.b16 %v219, %v218
  %v253 = vpack.c.b16 %v221, %v220
  %v254 = vpack.c.b16 %v223, %v222
  %v255 = vpack.c.b16 %v225, %v224
  %v256 = vpack.c.b16 %v227, %v226
  %v257 = vpack.c.b16 %v229, %v228
  %v258 = vpack.c.b16 %v231, %v230
  %v259 = vpack.c.b16 %v233, %v232
  %v260 = vpack.c.b16 %v235, %v234
  %v261 = vpack.c.b16 %v237, %v236
  %v262 = vpack.c.b16 %v239, %v238
  %v263 = vpack.c.b16 %v241, %v240
  %v264 = vpack.c.b16 %v243, %v242
  %v265 = vpack.c.b16 %v245, %v244
  %v266 = vpack.c.b16 %v247, %v246
  %v267 = vpack.c.b16 %v249, %v248
  %vm286 = vcmask 261120
  %v288 = vsel %vm286, %v160, 0
  %v291 = vsel %vm286, %v163, 0
  %v294 = vsel %vm286, %v166, 0
  %v297 = vsel %vm286, %v169, 0
  %299 = vmatprep.subr.bf16.mxu0 0
  %300 = vmatpush1.bf16.msra.mxu0 %v257
  %301 = vmatprep.subr.bf16.mxu0 0
  %302 = vmatpush1.bf16.msra.mxu0 %v256
  %303 = vmatprep.subr.bf16.mxu0 0
  %304 = vmatpush1.bf16.msra.mxu0 %v255
  %305 = vmatprep.subr.bf16.mxu0 0
  %306 = vmatpush1.bf16.msra.mxu0 %v254
  %307 = vmatprep.subr.bf16.mxu0 0
  %308 = vmatpush1.bf16.msra.mxu0 %v253
  %309 = vmatprep.subr.bf16.mxu0 0
  %310 = vmatpush1.bf16.msra.mxu0 %v252
  %311 = vmatprep.subr.bf16.mxu0 0
  %312 = vmatpush1.bf16.msra.mxu0 %v251
  %313 = vmatprep.subr.bf16.mxu0 0
  %314 = vmatpush1.bf16.msra.mxu0 %v250
  %315 = vmatprep.subr.bf16.mxu0 0
  %316 = vmatpush2.bf16.msra.mxu0 %v265
  %317 = vmatprep.subr.bf16.mxu0 0
  %318 = vmatpush2.bf16.msra.mxu0 %v264
  %319 = vmatprep.subr.bf16.mxu0 0
  %320 = vmatpush2.bf16.msra.mxu0 %v263
  %321 = vmatprep.subr.bf16.mxu0 0
  %322 = vmatpush2.bf16.msra.mxu0 %v262
  %323 = vmatprep.subr.bf16.mxu0 0
  %324 = vmatpush2.bf16.msra.mxu0 %v261
  %325 = vmatprep.subr.bf16.mxu0 0
  %326 = vmatpush2.bf16.msra.mxu0 %v260
  %327 = vmatprep.subr.bf16.mxu0 0
  %328 = vmatpush2.bf16.msra.mxu0 %v259
  %329 = vmatprep.subr.bf16.mxu0 0
  %330 = vmatpush2.bf16.msra.mxu0 %v258
  %331 = vmatprep.mubr.bf16.mxu0 %v159
  %332 = vmatmul.mubr.bf16.gmra.mxu0 %v158
  %v333 = vpop.f32.mrf.mxu0
  %v334 = vadd.f32 %v81, %v333
  %v335 = vpop.f32.mrf.mxu0
  %v336 = vpop.f32.mrf.mxu0
  %v337 = vadd.f32 %v86, %v336
  %v338 = vpop.f32.mrf.mxu0
  %339 = vmatprep.mubr.bf16.mxu0 %v162
  %340 = vmatmul.mubr.bf16.gmra.mxu0 %v161
  %v341 = vpop.f32.mrf.mxu0
  %v342 = vadd.f32 %v91, %v341
  %v343 = vpop.f32.mrf.mxu0
  %v344 = vpop.f32.mrf.mxu0
  %v345 = vadd.f32 %v96, %v344
  %v346 = vpop.f32.mrf.mxu0
  %347 = vmatprep.mubr.bf16.mxu0 %v165
  %348 = vmatmul.mubr.bf16.gmra.mxu0 %v164
  %v349 = vpop.f32.mrf.mxu0
  %v350 = vadd.f32 %v101, %v349
  %v351 = vpop.f32.mrf.mxu0
  %v352 = vpop.f32.mrf.mxu0
  %v353 = vadd.f32 %v106, %v352
  %v354 = vpop.f32.mrf.mxu0
  %355 = vmatprep.mubr.bf16.mxu0 %v168
  %356 = vmatmul.mubr.bf16.gmra.mxu0 %v167
  %v357 = vpop.f32.mrf.mxu0
  %v358 = vadd.f32 %v111, %v357
  %v359 = vpop.f32.mrf.mxu0
  %v360 = vpop.f32.mrf.mxu0
  %v361 = vadd.f32 %v116, %v360
  %v362 = vpop.f32.mrf.mxu0
  %363 = vdwg.mxu0
  %364 = vmatprep.subr.bf16.mxu0 0
  %365 = vmatpush1.bf16.msra.mxu0 0
  %366 = vmatprep.subr.bf16.mxu0 0
  %367 = vmatpush1.bf16.msra.mxu0 0
  %368 = vmatprep.subr.bf16.mxu0 0
  %369 = vmatpush1.bf16.msra.mxu0 0
  %370 = vmatprep.subr.bf16.mxu0 0
  %371 = vmatpush1.bf16.msra.mxu0 0
  %372 = vmatprep.subr.bf16.mxu0 0
  %373 = vmatpush1.bf16.msra.mxu0 0
  %374 = vmatprep.subr.bf16.mxu0 0
  %375 = vmatpush1.bf16.msra.mxu0 0
  %376 = vmatprep.subr.bf16.mxu0 0
  %377 = vmatpush1.bf16.msra.mxu0 %v267
  %378 = vmatprep.subr.bf16.mxu0 0
  %379 = vmatpush1.bf16.msra.mxu0 %v266
  %380 = vmatprep.subr.bf16.mxu0 0
  %381 = vmatpush2.bf16.msra.mxu0 0
  %382 = vmatprep.subr.bf16.mxu0 0
  %383 = vmatpush2.bf16.msra.mxu0 0
  %384 = vmatprep.subr.bf16.mxu0 0
  %385 = vmatpush2.bf16.msra.mxu0 0
  %386 = vmatprep.subr.bf16.mxu0 0
  %387 = vmatpush2.bf16.msra.mxu0 0
  %388 = vmatprep.subr.bf16.mxu0 0
  %389 = vmatpush2.bf16.msra.mxu0 0
  %390 = vmatprep.subr.bf16.mxu0 0
  %391 = vmatpush2.bf16.msra.mxu0 0
  %392 = vmatprep.subr.bf16.mxu0 0
  %393 = vmatpush2.bf16.msra.mxu0 0
  %394 = vmatprep.subr.bf16.mxu0 0
  %395 = vmatpush2.bf16.msra.mxu0 0
  %396 = vmatprep.mubr.bf16.mxu0 0
  %397 = vmatmul.mubr.bf16.gmra.mxu0 %v288
  %v398 = vpop.f32.mrf.mxu0
  %v399 = vadd.f32 %v334, %v398
  %v400 = vpop.f32.mrf.mxu0
  %v401 = vpop.f32.mrf.mxu0
  %v402 = vadd.f32 %v337, %v401
  %v403 = vpop.f32.mrf.mxu0
  %404 = vmatprep.mubr.bf16.mxu0 0
  %405 = vmatmul.mubr.bf16.gmra.mxu0 %v291
  %v406 = vpop.f32.mrf.mxu0
  %v407 = vadd.f32 %v342, %v406
  %v408 = vpop.f32.mrf.mxu0
  %v409 = vpop.f32.mrf.mxu0
  %v410 = vadd.f32 %v345, %v409
  %v411 = vpop.f32.mrf.mxu0
  %412 = vmatprep.mubr.bf16.mxu0 0
  %413 = vmatmul.mubr.bf16.gmra.mxu0 %v294
  %v414 = vpop.f32.mrf.mxu0
  %v415 = vadd.f32 %v350, %v414
  %v416 = vpop.f32.mrf.mxu0
  %v417 = vpop.f32.mrf.mxu0
  %v418 = vadd.f32 %v353, %v417
  %v419 = vpop.f32.mrf.mxu0
  %420 = vmatprep.mubr.bf16.mxu0 0
  %421 = vmatmul.mubr.bf16.gmra.mxu0 %v297
  %v422 = vpop.f32.mrf.mxu0
  %v423 = vadd.f32 %v358, %v422
  %v424 = vpop.f32.mrf.mxu0
  %v425 = vpop.f32.mrf.mxu0
  %v426 = vadd.f32 %v361, %v425
  %v427 = vpop.f32.mrf.mxu0
  %428 = vdwg.mxu0
  %v429 = vmax.f32 %v399, 0.0
  %v430 = vmax.f32 %v402, 0.0
  %v431 = vmax.f32 %v407, 0.0
  %v432 = vmax.f32 %v410, 0.0
  %v433 = vmax.f32 %v415, 0.0
  %v434 = vmax.f32 %v418, 0.0
  %v435 = vmax.f32 %v423, 0.0
  %v436 = vmax.f32 %v426, 0.0
  %v437 = vpack.c.bf16 %v430, %v429
  %v438 = vpack.c.bf16 %v432, %v431
  %v439 = vpack.c.bf16 %v434, %v433
  %v440 = vpack.c.bf16 %v436, %v435
  %v445 = vunpack.c.l.b16 %v437
  %v446 = vunpack.c.h.b16 %v437
  %v447 = vunpack.c.l.b16 %v438
  %v448 = vunpack.c.h.b16 %v438
  %v449 = vunpack.c.l.b16 %v439
  %v450 = vunpack.c.h.b16 %v439
  %v451 = vunpack.c.l.b16 %v440
  %v452 = vunpack.c.h.b16 %v440
  %v453 = vpack.c.b16 %v445, %v445
  %v454 = vpack.c.b16 %v446, %v446
  %v455 = vpack.c.b16 %v447, %v447
  %v456 = vpack.c.b16 %v448, %v448
  %v457 = vpack.c.b16 %v449, %v449
  %v458 = vpack.c.b16 %v450, %v450
  %v459 = vpack.c.b16 %v451, %v451
  %v460 = vpack.c.b16 %v452, %v452
  %469 = vst [vmem:[%s3] sm:$0xf] %v453
  %470 = vst [vmem:[%s3 + $0x4] sm:$0xf] %v454
  %471 = vst [vmem:[%s3 + $0x8] sm:$0xf] %v455
  %472 = vst [vmem:[%s3 + $0xc] sm:$0xf] %v456
  %473 = vst [vmem:[%s3 + $0x10] sm:$0xf] %v457
  %474 = vst [vmem:[%s3 + $0x14] sm:$0xf] %v458
  %475 = vst [vmem:[%s3 + $0x18] sm:$0xf] %v459
  %476 = vst [vmem:[%s3 + $0x1c] sm:$0xf] %v460
  %s477 = smul.u32 0, 128
  %v478 = vlaneseq
  %v479 = vand.u32 %v478, 127
  %v480 = vstv %s477
  %v481 = vadd.s32 %v480, %v479
  %vm482 = vcmp.lt.s32.totalorder %v481, 32
  %v483 = vsel %vm482, %v429, 0.0
  %v484 = vsel %vm482, %v430, 0.0
  %v485 = vsel %vm482, %v431, 0.0
  %v486 = vsel %vm482, %v432, 0.0
  %v487 = vsel %vm482, %v433, 0.0
  %v488 = vsel %vm482, %v434, 0.0
  %v489 = vsel %vm482, %v435, 0.0
  %v490 = vsel %vm482, %v436, 0.0
  %491 = vadd.xlane.f32.xlu0 %v483
  %v492 = vpop.xlane.xlu0 %491
  %493 = vadd.xlane.f32.xlu0 %v484
  %v494 = vpop.xlane.xlu0 %493
  %495 = vadd.xlane.f32.xlu0 %v485
  %v496 = vpop.xlane.xlu0 %495
  %497 = vadd.xlane.f32.xlu0 %v486
  %v498 = vpop.xlane.xlu0 %497
  %499 = vadd.xlane.f32.xlu0 %v487
  %v500 = vpop.xlane.xlu0 %499
  %501 = vadd.xlane.f32.xlu0 %v488
  %v502 = vpop.xlane.xlu0 %501
  %503 = vadd.xlane.f32.xlu0 %v489
  %v504 = vpop.xlane.xlu0 %503
  %505 = vadd.xlane.f32.xlu0 %v490
  %v506 = vpop.xlane.xlu0 %505
  %vm507 = vcmask 7168
  %508 = vst.msk [vmem:[%s4] sm:$0xff] %vm507, %v492
  %509 = vst.msk [vmem:[%s4 + $0x8] sm:$0xff] %vm507, %v494
  %510 = vst.msk [vmem:[%s4 + $0x10] sm:$0xff] %vm507, %v496
  %511 = vst.msk [vmem:[%s4 + $0x18] sm:$0xff] %vm507, %v498
  %512 = vst.msk [vmem:[%s4 + $0x20] sm:$0xff] %vm507, %v500
  %513 = vst.msk [vmem:[%s4 + $0x28] sm:$0xff] %vm507, %v502
  %514 = vst.msk [vmem:[%s4 + $0x30] sm:$0xff] %vm507, %v504
  %515 = vst.msk [vmem:[%s4 + $0x38] sm:$0xff] %vm507, %v506
  %v516 = vmul.f32 %v483, %v483
  %v517 = vmul.f32 %v484, %v484
  %v518 = vmul.f32 %v485, %v485
  %v519 = vmul.f32 %v486, %v486
  %v520 = vmul.f32 %v487, %v487
  %v521 = vmul.f32 %v488, %v488
  %v522 = vmul.f32 %v489, %v489
  %v523 = vmul.f32 %v490, %v490
  %524 = vadd.xlane.f32.xlu0 %v516
  %v525 = vpop.xlane.xlu0 %524
  %526 = vadd.xlane.f32.xlu0 %v517
  %v527 = vpop.xlane.xlu0 %526
  %528 = vadd.xlane.f32.xlu0 %v518
  %v529 = vpop.xlane.xlu0 %528
  %530 = vadd.xlane.f32.xlu0 %v519
  %v531 = vpop.xlane.xlu0 %530
  %532 = vadd.xlane.f32.xlu0 %v520
  %v533 = vpop.xlane.xlu0 %532
  %534 = vadd.xlane.f32.xlu0 %v521
  %v535 = vpop.xlane.xlu0 %534
  %536 = vadd.xlane.f32.xlu0 %v522
  %v537 = vpop.xlane.xlu0 %536
  %538 = vadd.xlane.f32.xlu0 %v523
  %v539 = vpop.xlane.xlu0 %538
  %540 = vst.msk [vmem:[%s5] sm:$0xff] %vm507, %v525
  %541 = vst.msk [vmem:[%s5 + $0x8] sm:$0xff] %vm507, %v527
  %542 = vst.msk [vmem:[%s5 + $0x10] sm:$0xff] %vm507, %v529
  %543 = vst.msk [vmem:[%s5 + $0x18] sm:$0xff] %vm507, %v531
  %544 = vst.msk [vmem:[%s5 + $0x20] sm:$0xff] %vm507, %v533
  %545 = vst.msk [vmem:[%s5 + $0x28] sm:$0xff] %vm507, %v535
  %546 = vst.msk [vmem:[%s5 + $0x30] sm:$0xff] %vm507, %v537
  %547 = vst.msk [vmem:[%s5 + $0x38] sm:$0xff] %vm507, %v539
  // Predicated region
  $region14: #{generator2_forward.7} parent=0 // pred_check
    _
  $region15: #{generator2_forward.7} parent=0 // pred_check_branch
    %549 = sbr.rel (0) target = $region17
  $region16: #{generator2_forward.7} parent=0 // pred_region
    _
  $region17: #{generator2_forward.7} parent=0 // pred_fallthru
    _
  // Predicated region
  $region18: #{generator2_forward.7} parent=0 // pred_check
    _
  $region19: #{generator2_forward.7} parent=0 // pred_check_branch
    %551 = sbr.rel (0) target = $region21
  $region20: #{generator2_forward.7} parent=0 // pred_region
    _
  $region21: #{generator2_forward.7} parent=0 // pred_fallthru
    _
  // Predicated region
  $region22: #{generator2_forward.7} parent=0 // pred_check
    _
  $region23: #{generator2_forward.7} parent=0 // pred_check_branch
    %553 = sbr.rel (0) target = $region25
  $region24: #{generator2_forward.7} parent=0 // pred_region
    _
  $region25: #{generator2_forward.7} parent=0 // pred_fallthru
    _
  // Predicated region
  $region26: #{generator2_forward.7} parent=0 // pred_check
    _
  $region27: #{generator2_forward.7} parent=0 // pred_check_branch
    %555 = sbr.rel (0) target = $region29
  $region28: #{generator2_forward.7} parent=0 // pred_region
    _
  $region29: #{generator2_forward.7} parent=0 // pred_fallthru
    _
  // Predicated region
  $region30: #{generator2_forward.7} parent=0 // pred_check
    _
  $region31: #{generator2_forward.7} parent=0 // pred_check_branch
    %557 = sbr.rel (0) target = $region33
  $region32: #{generator2_forward.7} parent=0 // pred_region
    _
  $region33: #{generator2_forward.7} parent=0 // pred_fallthru
    _
  // Predicated region
  $region34: #{generator2_forward.7} parent=0 // pred_check
    _
  $region35: #{generator2_forward.7} parent=0 // pred_check_branch
    %559 = sbr.rel (0) target = $region37
  $region36: #{generator2_forward.7} parent=0 // pred_region
    _
  $region37: #{generator2_forward.7} parent=0 // pred_fallthru
    _

// kernel: mul.25
$region0: #{mul.25}
  #allocation0 [shape = 's32[1]{0}', space=sflag, size = 0x4, scoped, tag = 'scoped memory for mul.25']
  %s0 = inlined_call_operand.vmem [shape: f32[144], index: 0, kind: input, shape index: {}]
  %s1 = inlined_call_operand.vmem [shape: f32[144], index: 1, kind: input, shape index: {}]
  %s2 = inlined_call_operand.vmem [shape: f32[144], index: 2, kind: output, shape index: {}]
  %v3 = vld [vmem:[%s0] sm:$0x3]
  %v4 = vld [vmem:[%s1] sm:$0x3]
  %5 = xla_tuple %v3, %v4
  %6 = xla_tuple %5
  %v7 = vmul.f32 %v3, %v4
  %8 = xla_tuple %v7
  %9 = vst [vmem:[%s2] sm:$0x3] %v7

// kernel: tile.77
$region0: #{tile.77}
  #allocation0 [shape = 's32[1]{0}', space=sflag, size = 0x4, scoped, tag = 'scoped memory for tile.77']
  %s0 = inlined_call_operand.vmem [shape: f32[8], index: 0, kind: input, shape index: {}]
  %s1 = inlined_call_operand.vmem [shape: f32[4,8], index: 1, kind: output, shape index: {}]
  // Predicated region
  $region2: #{tile.77} parent=0 // pred_check
    _
  $region3: #{tile.77} parent=0 // pred_check_branch
    %3 = sbr.rel (0) target = $region5
  $region4: #{tile.77} parent=0 // pred_region
    _
  $region5: #{tile.77} parent=0 // pred_fallthru
    _
  %v4 = vld [vmem:[%s0] ss:$0 sm:$0xff]
  %5 = vst [vmem:[%s1] sm:$0xf] %v4

// kernel: generator2_forward.8
$region0: #{generator2_forward.8}
  #allocation0 [shape = 'u32[]', space=smem, size = 0x4, offset = 0x4, fixed_abs, tag = 'smem constant byte address 0x4 - core index']
  #allocation1 [shape = 'u32[144,128]{1,0:T(1,128)}', space=vmem, size = 0x12000, scoped, tag = 'internal scratch']
  %s0 = inlined_call_operand.vmem [shape: bf16[32,144], index: 0, kind: input, shape index: {}]
  %s1 = inlined_call_operand.vmem [shape: f32[32,1], index: 1, kind: input, shape index: {}]
  %s2 = inlined_call_operand.vmem [shape: bf16[144,128], index: 2, kind: input, shape index: {}]
  %s3 = inlined_call_operand.vmem [shape: bf16[32,128], index: 3, kind: output, shape index: {0}]
  %s4 = inlined_call_operand.vmem [shape: f32[1,32,1], index: 4, kind: output, shape index: {1}]
  %s5 = inlined_call_operand.vmem [shape: f32[1,32,1], index: 5, kind: output, shape index: {2}]
  %6 = xla_tuple %s3, %s4, %s5
  %s7 = sld [smem:[#allocation0]]
  $region38: #{generator2_forward.8} parent=0
    _
  %s9 = ssub.s32 1, %s7
  %s10 = scalar_select 0, %s9, %s7
  // Predicated region
  $region2: #{generator2_forward.8} parent=0 // pred_check
    _
  $region3: #{generator2_forward.8} parent=0 // pred_check_branch
    %12 = sbr.rel (0) target = $region5
  $region4: #{generator2_forward.8} parent=0 // pred_region
    _
  $region5: #{generator2_forward.8} parent=0 // pred_fallthru
    _
  // Predicated region
  $region6: #{generator2_forward.8} parent=0 // pred_check
    _
  $region7: #{generator2_forward.8} parent=0 // pred_check_branch
    %14 = sbr.rel (0) target = $region9
  $region8: #{generator2_forward.8} parent=0 // pred_region
    _
  $region9: #{generator2_forward.8} parent=0 // pred_fallthru
    _
  // Predicated region
  $region10: #{generator2_forward.8} parent=0 // pred_check
    _
  $region11: #{generator2_forward.8} parent=0 // pred_check_branch
    %16 = sbr.rel (0) target = $region13
  $region12: #{generator2_forward.8} parent=0 // pred_region
    _
  $region13: #{generator2_forward.8} parent=0 // pred_fallthru
    _
  %v18 = vld [vmem:[%s0] sm:$0xff]
  %v19 = vld [vmem:[%s0 + $0x8] sm:$0xff]
  %v20 = vld [vmem:[%s0 + $0x10] sm:$0xff]
  %v21 = vld [vmem:[%s0 + $0x18] sm:$0xff]
  %v22 = vld [vmem:[%s2] sm:$0xf]
  %v23 = vld [vmem:[%s2 + $0x4] sm:$0xf]
  %v24 = vld [vmem:[%s2 + $0x8] sm:$0xf]
  %v25 = vld [vmem:[%s2 + $0xc] sm:$0xf]
  %v26 = vld [vmem:[%s2 + $0x10] sm:$0xf]
  %v27 = vld [vmem:[%s2 + $0x14] sm:$0xf]
  %v28 = vld [vmem:[%s2 + $0x18] sm:$0xf]
  %v29 = vld [vmem:[%s2 + $0x1c] sm:$0xf]
  %v30 = vld [vmem:[%s2 + $0x20] sm:$0xf]
  %v31 = vld [vmem:[%s2 + $0x24] sm:$0xf]
  %v32 = vld [vmem:[%s2 + $0x28] sm:$0xf]
  %v33 = vld [vmem:[%s2 + $0x2c] sm:$0xf]
  %v34 = vld [vmem:[%s2 + $0x30] sm:$0xf]
  %v35 = vld [vmem:[%s2 + $0x34] sm:$0xf]
  %v36 = vld [vmem:[%s2 + $0x38] sm:$0xf]
  %v37 = vld [vmem:[%s2 + $0x3c] sm:$0xf]
  %v38 = vld [vmem:[%s2 + $0x40] sm:$0xf]
  %v39 = vld [vmem:[%s2 + $0x44] sm:$0xf]
  %v40 = vld [vmem:[%s1] sm:$0xff]
  %v41 = vld [vmem:[%s1 + $0x8] sm:$0xff]
  %v42 = vld [vmem:[%s1 + $0x10] sm:$0xff]
  %v43 = vld [vmem:[%s1 + $0x18] sm:$0xff]
  %45 = vset.pattern.permute.xlu0 0
  %46 = vperm.xlu0 %45, %v40
  %v47 = vpop.permute.xlu0 %46
  %50 = vset.pattern.permute.xlu0 0
  %51 = vperm.xlu0 %50, %v41
  %v52 = vpop.permute.xlu0 %51
  %55 = vset.pattern.permute.xlu0 0
  %56 = vperm.xlu0 %55, %v42
  %v57 = vpop.permute.xlu0 %56
  %60 = vset.pattern.permute.xlu0 0
  %61 = vperm.xlu0 %60, %v43
  %v62 = vpop.permute.xlu0 %61
  %v68 = vunpack.c.l.b16 %v18
  %v69 = vunpack.c.h.b16 %v18
  %v70 = vunpack.c.l.b16 %v19
  %v71 = vunpack.c.h.b16 %v19
  %v72 = vunpack.c.l.b16 %v20
  %v73 = vunpack.c.h.b16 %v20
  %v74 = vunpack.c.l.b16 %v21
  %v75 = vunpack.c.h.b16 %v21
  %v76 = vpack.c.b16 %v70, %v68
  %v77 = vpack.c.b16 %v71, %v69
  %v78 = vpack.c.b16 %v74, %v72
  %v79 = vpack.c.b16 %v75, %v73
  %v100 = vunpack.c.l.b16 %v22
  %v101 = vunpack.c.l.b16 %v23
  %v102 = vunpack.c.l.b16 %v24
  %v103 = vunpack.c.l.b16 %v25
  %v104 = vunpack.c.l.b16 %v26
  %v105 = vunpack.c.l.b16 %v27
  %v106 = vunpack.c.l.b16 %v28
  %v107 = vunpack.c.l.b16 %v29
  %v108 = vunpack.c.l.b16 %v30
  %v109 = vunpack.c.l.b16 %v31
  %v110 = vunpack.c.l.b16 %v32
  %v111 = vunpack.c.l.b16 %v33
  %v112 = vunpack.c.l.b16 %v34
  %v113 = vunpack.c.l.b16 %v35
  %v114 = vunpack.c.l.b16 %v36
  %v115 = vunpack.c.l.b16 %v37
  %v116 = vunpack.c.l.b16 %v38
  %v117 = vunpack.c.l.b16 %v39
  %v118 = vpack.c.b16 %v101, %v100
  %v119 = vpack.c.b16 %v103, %v102
  %v120 = vpack.c.b16 %v105, %v104
  %v121 = vpack.c.b16 %v107, %v106
  %v122 = vpack.c.b16 %v109, %v108
  %v123 = vpack.c.b16 %v111, %v110
  %v124 = vpack.c.b16 %v113, %v112
  %v125 = vpack.c.b16 %v115, %v114
  %v126 = vpack.c.b16 %v117, %v116
  %vm136 = vcmask 130048
  %v138 = vsel %vm136, %v77, 0
  %v141 = vsel %vm136, %v79, 0
  %143 = vmatprep.subr.bf16.mxu0 0
  %144 = vmatpush1.bf16.msra.mxu0 %v125
  %145 = vmatprep.subr.bf16.mxu0 0
  %146 = vmatpush1.bf16.msra.mxu0 %v124
  %147 = vmatprep.subr.bf16.mxu0 0
  %148 = vmatpush1.bf16.msra.mxu0 %v123
  %149 = vmatprep.subr.bf16.mxu0 0
  %150 = vmatpush1.bf16.msra.mxu0 %v122
  %151 = vmatprep.subr.bf16.mxu0 0
  %152 = vmatpush1.bf16.msra.mxu0 %v121
  %153 = vmatprep.subr.bf16.mxu0 0
  %154 = vmatpush1.bf16.msra.mxu0 %v120
  %155 = vmatprep.subr.bf16.mxu0 0
  %156 = vmatpush1.bf16.msra.mxu0 %v119
  %157 = vmatprep.subr.bf16.mxu0 0
  %158 = vmatpush1.bf16.msra.mxu0 %v118
  %159 = vmatprep.subr.bf16.mxu0 0
  %160 = vmatpush2.bf16.msra.mxu0 0
  %161 = vmatprep.subr.bf16.mxu0 0
  %162 = vmatpush2.bf16.msra.mxu0 0
  %163 = vmatprep.subr.bf16.mxu0 0
  %164 = vmatpush2.bf16.msra.mxu0 0
  %165 = vmatprep.subr.bf16.mxu0 0
  %166 = vmatpush2.bf16.msra.mxu0 0
  %167 = vmatprep.subr.bf16.mxu0 0
  %168 = vmatpush2.bf16.msra.mxu0 0
  %169 = vmatprep.subr.bf16.mxu0 0
  %170 = vmatpush2.bf16.msra.mxu0 0
  %171 = vmatprep.subr.bf16.mxu0 0
  %172 = vmatpush2.bf16.msra.mxu0 0
  %173 = vmatprep.subr.bf16.mxu0 0
  %174 = vmatpush2.bf16.msra.mxu0 %v126
  %175 = vmatprep.mubr.bf16.mxu0 %v138
  %176 = vmatmul.mubr.bf16.gmra.mxu0 %v76
  %v177 = vpop.f32.mrf.mxu0
  %v178 = vadd.f32 %v47, %v177
  %v179 = vpop.f32.mrf.mxu0
  %v180 = vpop.f32.mrf.mxu0
  %v181 = vadd.f32 %v52, %v180
  %v182 = vpop.f32.mrf.mxu0
  %183 = vmatprep.mubr.bf16.mxu0 %v141
  %184 = vmatmul.mubr.bf16.gmra.mxu0 %v78
  %v185 = vpop.f32.mrf.mxu0
  %v186 = vadd.f32 %v57, %v185
  %v187 = vpop.f32.mrf.mxu0
  %v188 = vpop.f32.mrf.mxu0
  %v189 = vadd.f32 %v62, %v188
  %v190 = vpop.f32.mrf.mxu0
  %191 = vdwg.mxu0
  %v192 = vmax.f32 %v178, 0.0
  %v193 = vmax.f32 %v181, 0.0
  %v194 = vmax.f32 %v186, 0.0
  %v195 = vmax.f32 %v189, 0.0
  %v196 = vpack.c.bf16 %v193, %v192
  %v197 = vpack.c.bf16 %v195, %v194
  %v200 = vunpack.c.l.b16 %v196
  %v201 = vunpack.c.h.b16 %v196
  %v202 = vunpack.c.l.b16 %v197
  %v203 = vunpack.c.h.b16 %v197
  %v204 = vpack.c.b16 %v200, %v200
  %v205 = vpack.c.b16 %v201, %v201
  %v206 = vpack.c.b16 %v202, %v202
  %v207 = vpack.c.b16 %v203, %v203
  %212 = vst [vmem:[%s3] sm:$0xf] %v204
  %213 = vst [vmem:[%s3 + $0x4] sm:$0xf] %v205
  %214 = vst [vmem:[%s3 + $0x8] sm:$0xf] %v206
  %215 = vst [vmem:[%s3 + $0xc] sm:$0xf] %v207
  %216 = vadd.xlane.f32.xlu0 %v192
  %v217 = vpop.xlane.xlu0 %216
  %218 = vadd.xlane.f32.xlu0 %v193
  %v219 = vpop.xlane.xlu0 %218
  %220 = vadd.xlane.f32.xlu0 %v194
  %v221 = vpop.xlane.xlu0 %220
  %222 = vadd.xlane.f32.xlu0 %v195
  %v223 = vpop.xlane.xlu0 %222
  %vm224 = vcmask 7168
  %225 = vst.msk [vmem:[%s4] sm:$0xff] %vm224, %v217
  %226 = vst.msk [vmem:[%s4 + $0x8] sm:$0xff] %vm224, %v219
  %227 = vst.msk [vmem:[%s4 + $0x10] sm:$0xff] %vm224, %v221
  %228 = vst.msk [vmem:[%s4 + $0x18] sm:$0xff] %vm224, %v223
  %v229 = vmul.f32 %v192, %v192
  %v230 = vmul.f32 %v193, %v193
  %v231 = vmul.f32 %v194, %v194
  %v232 = vmul.f32 %v195, %v195
  %233 = vadd.xlane.f32.xlu0 %v229
  %v234 = vpop.xlane.xlu0 %233
  %235 = vadd.xlane.f32.xlu0 %v230
  %v236 = vpop.xlane.xlu0 %235
  %237 = vadd.xlane.f32.xlu0 %v231
  %v238 = vpop.xlane.xlu0 %237
  %239 = vadd.xlane.f32.xlu0 %v232
  %v240 = vpop.xlane.xlu0 %239
  %241 = vst.msk [vmem:[%s5] sm:$0xff] %vm224, %v234
  %242 = vst.msk [vmem:[%s5 + $0x8] sm:$0xff] %vm224, %v236
  %243 = vst.msk [vmem:[%s5 + $0x10] sm:$0xff] %vm224, %v238
  %244 = vst.msk [vmem:[%s5 + $0x18] sm:$0xff] %vm224, %v240
  // Predicated region
  $region14: #{generator2_forward.8} parent=0 // pred_check
    _
  $region15: #{generator2_forward.8} parent=0 // pred_check_branch
    %246 = sbr.rel (0) target = $region17
  $region16: #{generator2_forward.8} parent=0 // pred_region
    _
  $region17: #{generator2_forward.8} parent=0 // pred_fallthru
    _
  // Predicated region
  $region18: #{generator2_forward.8} parent=0 // pred_check
    _
  $region19: #{generator2_forward.8} parent=0 // pred_check_branch
    %248 = sbr.rel (0) target = $region21
  $region20: #{generator2_forward.8} parent=0 // pred_region
    _
  $region21: #{generator2_forward.8} parent=0 // pred_fallthru
    _
  // Predicated region
  $region22: #{generator2_forward.8} parent=0 // pred_check
    _
  $region23: #{generator2_forward.8} parent=0 // pred_check_branch
    %250 = sbr.rel (0) target = $region25
  $region24: #{generator2_forward.8} parent=0 // pred_region
    _
  $region25: #{generator2_forward.8} parent=0 // pred_fallthru
    _
  // Predicated region
  $region26: #{generator2_forward.8} parent=0 // pred_check
    _
  $region27: #{generator2_forward.8} parent=0 // pred_check_branch
    %252 = sbr.rel (0) target = $region29
  $region28: #{generator2_forward.8} parent=0 // pred_region
    _
  $region29: #{generator2_forward.8} parent=0 // pred_fallthru
    _
  // Predicated region
  $region30: #{generator2_forward.8} parent=0 // pred_check
    _
  $region31: #{generator2_forward.8} parent=0 // pred_check_branch
    %254 = sbr.rel (0) target = $region33
  $region32: #{generator2_forward.8} parent=0 // pred_region
    _
  $region33: #{generator2_forward.8} parent=0 // pred_fallthru
    _
  // Predicated region
  $region34: #{generator2_forward.8} parent=0 // pred_check
    _
  $region35: #{generator2_forward.8} parent=0 // pred_check_branch
    %256 = sbr.rel (0) target = $region37
  $region36: #{generator2_forward.8} parent=0 // pred_region
    _
  $region37: #{generator2_forward.8} parent=0 // pred_fallthru
    _

// kernel: tile.98
$region0: #{tile.98}
  #allocation0 [shape = 's32[1]{0}', space=sflag, size = 0x4, scoped, tag = 'scoped memory for tile.98']
  %s0 = inlined_call_operand.vmem [shape: f32[8], index: 0, kind: input, shape index: {}]
  %s1 = inlined_call_operand.vmem [shape: f32[9,8], index: 1, kind: output, shape index: {}]
  // Predicated region
  $region2: #{tile.98} parent=0 // pred_check
    _
  $region3: #{tile.98} parent=0 // pred_check_branch
    %3 = sbr.rel (0) target = $region5
  $region4: #{tile.98} parent=0 // pred_region
    _
  $region5: #{tile.98} parent=0 // pred_fallthru
    _
  %v4 = vld [vmem:[%s0] ss:$0 sm:$0xff]
  %5 = vst [vmem:[%s1] sm:$0xff] %v4
  %s6 = scalar_lea.vmem %s1, 8
  %7 = vst [vmem:[%s6] sm:$0xff] %v4

// kernel: mul.33
$region0: #{mul.33}
  %s0 = inlined_call_operand.vmem [shape: f32[9,8], index: 0, kind: input, shape index: {}]
  %s1 = inlined_call_operand.vmem [shape: f32[72], index: 1, kind: output, shape index: {}]
  $region1: #{mul.33} parent=0
    #allocation0 [shape = 'u8[4096]{0}', space=vmem, size = 0x1000, scoped, tag = 'scoped mem for output reshape']
    %v2 = vld [vmem:[%s0] sm:$0x1]
    %vm3 = vcmask 64512
    %4 = vst.msk [vmem:[#allocation0] sm:$0x1] %vm3, %v2
    %s5 = scalar_lea.vmem %s0, 8
    %v6 = vld [vmem:[%s5] sm:$0x1]
    %7 = vrot.lane.b32.xlu0 %v6, 64
    %v8 = vpop.permute.xlu0 %7
    %vm9 = vcmask 589312
    %10 = vst.msk [vmem:[#allocation0] sm:$0x1] %vm9, %v8
    %s11 = scalar_lea.vmem %s0, 7
    %v12 = vld [vmem:[%s11] sm:$0x1]
    %13 = vrot.lane.b32.xlu0 %v12, 56
    %v14 = vpop.permute.xlu0 %13
    %vm15 = vcmask 523712
    %16 = vst.msk [vmem:[#allocation0] sm:$0x1] %vm15, %v14
    %s17 = scalar_lea.vmem %s0, 6
    %v18 = vld [vmem:[%s17] sm:$0x1]
    %19 = vrot.lane.b32.xlu0 %v18, 48
    %v20 = vpop.permute.xlu0 %19
    %vm21 = vcmask 458112
    %22 = vst.msk [vmem:[#allocation0] sm:$0x1] %vm21, %v20
    %s23 = scalar_lea.vmem %s0, 5
    %v24 = vld [vmem:[%s23] sm:$0x1]
    %25 = vrot.lane.b32.xlu0 %v24, 40
    %v26 = vpop.permute.xlu0 %25
    %vm27 = vcmask 392512
    %28 = vst.msk [vmem:[#allocation0] sm:$0x1] %vm27, %v26
    %s29 = scalar_lea.vmem %s0, 4
    %v30 = vld [vmem:[%s29] sm:$0x1]
    %31 = vrot.lane.b32.xlu0 %v30, 32
    %v32 = vpop.permute.xlu0 %31
    %vm33 = vcmask 326912
    %34 = vst.msk [vmem:[#allocation0] sm:$0x1] %vm33, %v32
    %s35 = scalar_lea.vmem %s0, 3
    %v36 = vld [vmem:[%s35] sm:$0x1]
    %37 = vrot.lane.b32.xlu0 %v36, 24
    %v38 = vpop.permute.xlu0 %37
    %vm39 = vcmask 261312
    %40 = vst.msk [vmem:[#allocation0] sm:$0x1] %vm39, %v38
    %s41 = scalar_lea.vmem %s0, 2
    %v42 = vld [vmem:[%s41] sm:$0x1]
    %43 = vrot.lane.b32.xlu0 %v42, 16
    %v44 = vpop.permute.xlu0 %43
    %vm45 = vcmask 195712
    %46 = vst.msk [vmem:[#allocation0] sm:$0x1] %vm45, %v44
    %s47 = scalar_lea.vmem %s0, 1
    %v48 = vld [vmem:[%s47] sm:$0x1]
    %49 = vrot.lane.b32.xlu0 %v48, 8
    %v50 = vpop.permute.xlu0 %49
    %vm51 = vcmask 130112
    %52 = vst.msk [vmem:[#allocation0] sm:$0x1] %vm51, %v50
    %s54 = sshll.u32 1, 1
    %s55 = ssub.s32 %s54, 1
    %v57 = vld [vmem:[#allocation0] sm:%s55]
    %s58 = sshll.u32 1, 1
    %s59 = ssub.s32 %s58, 1
    %60 = vst [vmem:[%s1] sm:%s59] %v57

// kernel: mul.31
$region0: #{mul.31}
  #allocation0 [shape = 's32[1]{0}', space=sflag, size = 0x4, scoped, tag = 'scoped memory for mul.31']
  %s0 = inlined_call_operand.vmem [shape: f32[72], index: 0, kind: input, shape index: {}]
  %s1 = inlined_call_operand.vmem [shape: f32[72], index: 1, kind: input, shape index: {}]
  %s2 = inlined_call_operand.vmem [shape: f32[72], index: 2, kind: output, shape index: {}]
  %v3 = vld [vmem:[%s0] sm:$0x1]
  %v4 = vld [vmem:[%s1] sm:$0x1]
  %5 = xla_tuple %v3, %v4
  %6 = xla_tuple %5
  %v7 = vmul.f32 %v3, %v4
  %8 = xla_tuple %v7
  %9 = vst [vmem:[%s2] sm:$0x1] %v7

// kernel: generator2_forward.9
$region0: #{generator2_forward.9}
  #allocation0 [shape = 'u32[]', space=smem, size = 0x4, offset = 0x4, fixed_abs, tag = 'smem constant byte address 0x4 - core index']
  #allocation1 [shape = 'u32[144,128]{1,0:T(1,128)}', space=vmem, size = 0x12000, scoped, tag = 'internal scratch']
  %s0 = inlined_call_operand.vmem [shape: bf16[4,72], index: 0, kind: input, shape index: {}]
  %s1 = inlined_call_operand.vmem [shape: f32[4,1], index: 1, kind: input, shape index: {}]
  %s2 = inlined_call_operand.vmem [shape: bf16[72,512], index: 2, kind: input, shape index: {}]
  %s3 = inlined_call_operand.vmem [shape: f32[4,512], index: 3, kind: output, shape index: {}]
  %s4 = sld [smem:[#allocation0]]
  $region22: #{generator2_forward.9} parent=0
    _
  %s6 = ssub.s32 1, %s4
  %s7 = scalar_select 0, %s6, %s4
  // Predicated region
  $region2: #{generator2_forward.9} parent=0 // pred_check
    _
  $region3: #{generator2_forward.9} parent=0 // pred_check_branch
    %9 = sbr.rel (0) target = $region5
  $region4: #{generator2_forward.9} parent=0 // pred_region
    _
  $region5: #{generator2_forward.9} parent=0 // pred_fallthru
    _
  // Predicated region
  $region6: #{generator2_forward.9} parent=0 // pred_check
    _
  $region7: #{generator2_forward.9} parent=0 // pred_check_branch
    %11 = sbr.rel (0) target = $region9
  $region8: #{generator2_forward.9} parent=0 // pred_region
    _
  $region9: #{generator2_forward.9} parent=0 // pred_fallthru
    _
  // Predicated region
  $region10: #{generator2_forward.9} parent=0 // pred_check
    _
  $region11: #{generator2_forward.9} parent=0 // pred_check_branch
    %13 = sbr.rel (0) target = $region13
  $region12: #{generator2_forward.9} parent=0 // pred_region
    _
  $region13: #{generator2_forward.9} parent=0 // pred_fallthru
    _
  %v15 = vld [vmem:[%s0] sm:$0x3]
  %v16 = vld [vmem:[%s2] sm:$0xff]
  %v17 = vld [vmem:[%s2 + $0x8] sm:$0xff]
  %v18 = vld [vmem:[%s2 + $0x10] sm:$0xff]
  %v19 = vld [vmem:[%s2 + $0x18] sm:$0xff]
  %v20 = vld [vmem:[%s2 + $0x20] sm:$0xff]
  %v21 = vld [vmem:[%s2 + $0x28] sm:$0xff]
  %v22 = vld [vmem:[%s2 + $0x30] sm:$0xff]
  %v23 = vld [vmem:[%s2 + $0x38] sm:$0xff]
  %v24 = vld [vmem:[%s2 + $0x40] sm:$0xff]
  %v25 = vld [vmem:[%s2 + $0x48] sm:$0xff]
  %v26 = vld [vmem:[%s2 + $0x50] sm:$0xff]
  %v27 = vld [vmem:[%s2 + $0x58] sm:$0xff]
  %v28 = vld [vmem:[%s2 + $0x60] sm:$0xff]
  %v29 = vld [vmem:[%s2 + $0x68] sm:$0xff]
  %v30 = vld [vmem:[%s2 + $0x70] sm:$0xff]
  %v31 = vld [vmem:[%s2 + $0x78] sm:$0xff]
  %v32 = vld [vmem:[%s2 + $0x80] sm:$0xff]
  %v33 = vld [vmem:[%s2 + $0x88] sm:$0xff]
  %v34 = vld [vmem:[%s1] sm:$0xf]
  %36 = vset.pattern.permute.xlu0 0
  %37 = vperm.xlu0 %36, %v34
  %v38 = vpop.permute.xlu0 %37
  %v58 = vunpack.c.l.b16 %v16
  %v59 = vunpack.c.h.b16 %v16
  %v60 = vunpack.c.l.b16 %v17
  %v61 = vunpack.c.h.b16 %v17
  %v62 = vunpack.c.l.b16 %v18
  %v63 = vunpack.c.h.b16 %v18
  %v64 = vunpack.c.l.b16 %v19
  %v65 = vunpack.c.h.b16 %v19
  %v66 = vunpack.c.l.b16 %v20
  %v67 = vunpack.c.h.b16 %v20
  %v68 = vunpack.c.l.b16 %v21
  %v69 = vunpack.c.h.b16 %v21
  %v70 = vunpack.c.l.b16 %v22
  %v71 = vunpack.c.h.b16 %v22
  %v72 = vunpack.c.l.b16 %v23
  %v73 = vunpack.c.h.b16 %v23
  %v74 = vunpack.c.l.b16 %v24
  %v75 = vunpack.c.h.b16 %v24
  %v76 = vunpack.c.l.b16 %v25
  %v77 = vunpack.c.h.b16 %v25
  %v78 = vunpack.c.l.b16 %v26
  %v79 = vunpack.c.h.b16 %v26
  %v80 = vunpack.c.l.b16 %v27
  %v81 = vunpack.c.h.b16 %v27
  %v82 = vunpack.c.l.b16 %v28
  %v83 = vunpack.c.h.b16 %v28
  %v84 = vunpack.c.l.b16 %v29
  %v85 = vunpack.c.h.b16 %v29
  %v86 = vunpack.c.l.b16 %v30
  %v87 = vunpack.c.h.b16 %v30
  %v88 = vunpack.c.l.b16 %v31
  %v89 = vunpack.c.h.b16 %v31
  %v90 = vunpack.c.l.b16 %v32
  %v91 = vunpack.c.h.b16 %v32
  %v92 = vunpack.c.l.b16 %v33
  %v93 = vunpack.c.h.b16 %v33
  %v94 = vpack.c.b16 %v62, %v58
  %v95 = vpack.c.b16 %v63, %v59
  %v96 = vpack.c.b16 %v64, %v60
  %v97 = vpack.c.b16 %v65, %v61
  %v98 = vpack.c.b16 %v70, %v66
  %v99 = vpack.c.b16 %v71, %v67
  %v100 = vpack.c.b16 %v72, %v68
  %v101 = vpack.c.b16 %v73, %v69
  %v102 = vpack.c.b16 %v78, %v74
  %v103 = vpack.c.b16 %v79, %v75
  %v104 = vpack.c.b16 %v80, %v76
  %v105 = vpack.c.b16 %v81, %v77
  %v106 = vpack.c.b16 %v86, %v82
  %v107 = vpack.c.b16 %v87, %v83
  %v108 = vpack.c.b16 %v88, %v84
  %v109 = vpack.c.b16 %v89, %v85
  %v110 = vpack.c.b16 %v90, %v90
  %v111 = vpack.c.b16 %v91, %v91
  %v112 = vpack.c.b16 %v92, %v92
  %v113 = vpack.c.b16 %v93, %v93
  %vm130 = vcmask 588800
  %v132 = vsel %vm130, %v15, 0
  %vm134 = vcmask 1043456
  %v136 = vsel %vm134, %v110, 0
  %v139 = vsel %vm134, %v111, 0
  %v142 = vsel %vm134, %v112, 0
  %v145 = vsel %vm134, %v113, 0
  %147 = vmatprep.subr.bf16.mxu0 0
  %148 = vmatpush1.bf16.msra.mxu0 0
  %149 = vmatprep.subr.bf16.mxu0 0
  %150 = vmatpush1.bf16.msra.mxu0 0
  %151 = vmatprep.subr.bf16.mxu0 0
  %152 = vmatpush1.bf16.msra.mxu0 0
  %153 = vmatprep.subr.bf16.mxu0 %v139
  %154 = vmatpush1.bf16.msra.mxu0 %v136
  %155 = vmatprep.subr.bf16.mxu0 %v107
  %156 = vmatpush1.bf16.msra.mxu0 %v106
  %157 = vmatprep.subr.bf16.mxu0 %v103
  %158 = vmatpush1.bf16.msra.mxu0 %v102
  %159 = vmatprep.subr.bf16.mxu0 %v99
  %160 = vmatpush1.bf16.msra.mxu0 %v98
  %161 = vmatprep.subr.bf16.mxu0 %v95
  %162 = vmatpush1.bf16.msra.mxu0 %v94
  %163 = vmatprep.subr.bf16.mxu0 0
  %164 = vmatpush2.bf16.msra.mxu0 0
  %165 = vmatprep.subr.bf16.mxu0 0
  %166 = vmatpush2.bf16.msra.mxu0 0
  %167 = vmatprep.subr.bf16.mxu0 0
  %168 = vmatpush2.bf16.msra.mxu0 0
  %169 = vmatprep.subr.bf16.mxu0 0
  %170 = vmatpush2.bf16.msra.mxu0 0
  %171 = vmatprep.subr.bf16.mxu0 0
  %172 = vmatpush2.bf16.msra.mxu0 0
  %173 = vmatprep.subr.bf16.mxu0 0
  %174 = vmatpush2.bf16.msra.mxu0 0
  %175 = vmatprep.subr.bf16.mxu0 0
  %176 = vmatpush2.bf16.msra.mxu0 0
  %177 = vmatprep.subr.bf16.mxu0 0
  %178 = vmatpush2.bf16.msra.mxu0 0
  %179 = vmatprep.mubr.bf16.mxu0 0
  %180 = vmatmul.mubr.bf16.gmra.mxu0 %v132
  %v181 = vpop.f32.mrf.mxu0
  %v182 = vadd.f32 %v38, %v181
  %v183 = vpop.f32.mrf.mxu0
  %v184 = vadd.f32 %v38, %v183
  %v185 = vpop.f32.mrf.mxu0
  %v186 = vpop.f32.mrf.mxu0
  %187 = vdwg.mxu0
  %188 = vmatprep.subr.bf16.mxu0 0
  %189 = vmatpush1.bf16.msra.mxu0 0
  %190 = vmatprep.subr.bf16.mxu0 0
  %191 = vmatpush1.bf16.msra.mxu0 0
  %192 = vmatprep.subr.bf16.mxu0 0
  %193 = vmatpush1.bf16.msra.mxu0 0
  %194 = vmatprep.subr.bf16.mxu0 %v145
  %195 = vmatpush1.bf16.msra.mxu0 %v142
  %196 = vmatprep.subr.bf16.mxu0 %v109
  %197 = vmatpush1.bf16.msra.mxu0 %v108
  %198 = vmatprep.subr.bf16.mxu0 %v105
  %199 = vmatpush1.bf16.msra.mxu0 %v104
  %200 = vmatprep.subr.bf16.mxu0 %v101
  %201 = vmatpush1.bf16.msra.mxu0 %v100
  %202 = vmatprep.subr.bf16.mxu0 %v97
  %203 = vmatpush1.bf16.msra.mxu0 %v96
  %204 = vmatprep.subr.bf16.mxu0 0
  %205 = vmatpush2.bf16.msra.mxu0 0
  %206 = vmatprep.subr.bf16.mxu0 0
  %207 = vmatpush2.bf16.msra.mxu0 0
  %208 = vmatprep.subr.bf16.mxu0 0
  %209 = vmatpush2.bf16.msra.mxu0 0
  %210 = vmatprep.subr.bf16.mxu0 0
  %211 = vmatpush2.bf16.msra.mxu0 0
  %212 = vmatprep.subr.bf16.mxu0 0
  %213 = vmatpush2.bf16.msra.mxu0 0
  %214 = vmatprep.subr.bf16.mxu0 0
  %215 = vmatpush2.bf16.msra.mxu0 0
  %216 = vmatprep.subr.bf16.mxu0 0
  %217 = vmatpush2.bf16.msra.mxu0 0
  %218 = vmatprep.subr.bf16.mxu0 0
  %219 = vmatpush2.bf16.msra.mxu0 0
  %220 = vmatprep.mubr.bf16.mxu0 0
  %221 = vmatmul.mubr.bf16.gmra.mxu0 %v132
  %v222 = vpop.f32.mrf.mxu0
  %v223 = vadd.f32 %v38, %v222
  %v224 = vpop.f32.mrf.mxu0
  %v225 = vadd.f32 %v38, %v224
  %v226 = vpop.f32.mrf.mxu0
  %v227 = vpop.f32.mrf.mxu0
  %228 = vdwg.mxu0
  %v229 = vmax.f32 %v182, -30.0
  %v230 = vmax.f32 %v184, -30.0
  %v231 = vmax.f32 %v223, -30.0
  %v232 = vmax.f32 %v225, -30.0
  %v233 = vmin.f32 %v229, 30.0
  %v234 = vmin.f32 %v230, 30.0
  %v235 = vmin.f32 %v231, 30.0
  %v236 = vmin.f32 %v232, 30.0
  %v237 = vsub.f32 0.0, %v233
  %v238 = vsub.f32 0.0, %v234
  %v239 = vsub.f32 0.0, %v235
  %v240 = vsub.f32 0.0, %v236
  %v241 = vmul.f32 %v237, 1.442695
  %v242 = vpow.pop %v241
  %v243 = vmul.f32 %v238, 1.442695
  %v244 = vpow.pop %v243
  %v245 = vmul.f32 %v239, 1.442695
  %v246 = vpow.pop %v245
  %v247 = vmul.f32 %v240, 1.442695
  %v248 = vpow.pop %v247
  %v249 = vadd.f32 %v242, 1.0
  %v250 = vadd.f32 %v244, 1.0
  %v251 = vadd.f32 %v246, 1.0
  %v252 = vadd.f32 %v248, 1.0
  %v253 = vrcp.pop %v249
  %v254 = vrcp.pop %v250
  %v255 = vrcp.pop %v251
  %v256 = vrcp.pop %v252
  %v257 = vmax.f32 %v253, 0.0
  %v258 = vmax.f32 %v254, 0.0
  %v259 = vmax.f32 %v255, 0.0
  %v260 = vmax.f32 %v256, 0.0
  %v261 = vmin.f32 %v257, 1.0
  %v262 = vmin.f32 %v258, 1.0
  %v263 = vmin.f32 %v259, 1.0
  %v264 = vmin.f32 %v260, 1.0
  %v269 = vcombine.low %v261, %v262
  %v270 = vcombine.low %v263, %v264
  %273 = vst [vmem:[%s3] sm:$0xff] %v269
  %274 = vst [vmem:[%s3 + $0x8] sm:$0xff] %v270
  // Predicated region
  $region14: #{generator2_forward.9} parent=0 // pred_check
    _
  $region15: #{generator2_forward.9} parent=0 // pred_check_branch
    %276 = sbr.rel (0) target = $region17
  $region16: #{generator2_forward.9} parent=0 // pred_region
    _
  $region17: #{generator2_forward.9} parent=0 // pred_fallthru
    _
  // Predicated region
  $region18: #{generator2_forward.9} parent=0 // pred_check
    _
  $region19: #{generator2_forward.9} parent=0 // pred_check_branch
    %278 = sbr.rel (0) target = $region21
  $region20: #{generator2_forward.9} parent=0 // pred_region
    _
  $region21: #{generator2_forward.9} parent=0 // pred_fallthru
    _

</llo_original>
